<compile_context>
chip_gen: v5e
topology: v5e:2x2
jax: 0.10.0
libtpu: 0.0.40
codegen_flags: <defaults>
</compile_context>

<pallas_src>
import functools
import math

import jax
import jax.numpy as jnp
from jax.experimental import pallas as pl
from jax.experimental.pallas import tpu as pltpu

VMEM_SPEC = pl.BlockSpec(memory_space=pltpu.MemorySpace.VMEM)


# --------------------------------------------------------------------- conv-path kernels

def _matmul_bias_act_kernel(x_ref, w_ref, b_ref, o_ref, *, act):
    y = jnp.dot(x_ref[...], w_ref[...], preferred_element_type=jnp.float32) + b_ref[...]
    if act == "relu":
        y = jnp.maximum(y, 0.0)
    o_ref[...] = y.astype(o_ref.dtype)


def matmul_bias_act(x, w, b, act="none"):
    M, K = x.shape
    _, N = w.shape
    return pl.pallas_call(
        functools.partial(_matmul_bias_act_kernel, act=act),
        out_shape=jax.ShapeDtypeStruct((M, N), jnp.float32),
        in_specs=[VMEM_SPEC] * 3,
        out_specs=VMEM_SPEC,
    )(x, w, b.reshape(1, N))


def _matmul_bias_res_relu_kernel(x_ref, w_ref, b_ref, r_ref, o_ref):
    # conv matmul with fused residual-add + relu epilogue
    y = jnp.dot(x_ref[...], w_ref[...], preferred_element_type=jnp.float32)
    y = y + b_ref[...] + r_ref[...].astype(jnp.float32)
    o_ref[...] = jnp.maximum(y, 0.0).astype(o_ref.dtype)


def matmul_bias_res_relu(x, w, b, residual):
    M, K = x.shape
    _, N = w.shape
    return pl.pallas_call(
        _matmul_bias_res_relu_kernel,
        out_shape=jax.ShapeDtypeStruct((M, N), jnp.float32),
        in_specs=[VMEM_SPEC] * 4,
        out_specs=VMEM_SPEC,
    )(x, w, b.reshape(1, N), residual)


def _im2col(x_nhwc, kh, kw, stride, pad):
    # TODO(synk): at real (224x224) resnet18 sizes, do patch extraction inside a gridded
    # Pallas kernel (tile M, lane-dense N, explicit vmem_limit_bytes) instead of this
    # XLA-side slice+concat which materializes the cols buffer in HBM.
    x = jnp.pad(x_nhwc, ((0, 0), (pad, pad), (pad, pad), (0, 0)))
    B, H, W, C = x.shape
    oh = (H - kh) // stride + 1
    ow = (W - kw) // stride + 1
    patches = []
    for i in range(kh):
        for j in range(kw):
            patches.append(x[:, i:i + stride * oh:stride, j:j + stride * ow:stride, :])
    cols = jnp.concatenate(patches, axis=-1)            # (B, oh, ow, kh*kw*C)
    return cols.reshape(B * oh * ow, kh * kw * C), oh, ow


def conv2d(x_nhwc, w, b, *, stride, pad, act, residual=None):
    # w: (Cout, Cin, kh, kw) in PyTorch layout
    Cout, Cin, kh, kw = w.shape
    cols, oh, ow = _im2col(x_nhwc, kh, kw, stride, pad)
    w2 = jnp.transpose(w, (2, 3, 1, 0)).reshape(kh * kw * Cin, Cout)
    B = x_nhwc.shape[0]
    if residual is not None:
        y = matmul_bias_res_relu(cols, w2, b, residual.reshape(B * oh * ow, Cout))
    else:
        y = matmul_bias_act(cols, w2, b, act=act)
    return y.reshape(B, oh, ow, Cout)


def encoder_forward(p, images_nchw):
    x = jnp.transpose(images_nchw, (0, 2, 3, 1))                               # NHWC
    x = conv2d(x, p["stem_w"], p["stem_b"], stride=2, pad=1, act="relu")       # (B,8,8,16)
    h = conv2d(x, p["res_w1"], p["res_b1"], stride=1, pad=1, act="relu")
    x = conv2d(h, p["res_w2"], p["res_b2"], stride=1, pad=1, act="none",
               residual=x)                                 # fused residual add + relu
    x = conv2d(x, p["down_w"], p["down_b"], stride=2, pad=1, act="relu")       # (B,4,4,D)
    B, H, W, C = x.shape
    return x.reshape(B, H * W, C)                                              # (B, S, D)


# ---------------------------------------------- fused transformer stack + MoE alignment

def _vit_moe_kernel(x_ref,
                    wqkv_ref, bqkv_ref, wo_ref, bo_ref,
                    ln1g_ref, ln1b_ref, w1_ref, b1_ref, w2_ref, b2_ref,
                    ln2g_ref, ln2b_ref,
                    gw_ref, gb_ref, ew_ref, eb_ref,
                    o_ref, *, seq_len, nhead, num_layers, num_experts, d_model, eps):
    x = x_ref[0].astype(jnp.float32)                       # (SP, D) — one batch element
    SP, D = x.shape
    Dh = D // nhead
    scale = 1.0 / math.sqrt(Dh)

    # padded key positions (>= seq_len) must not be attended to
    key_mask = jax.lax.broadcasted_iota(jnp.int32, (1, SP), 1) < seq_len

    def layernorm(v, g, b):
        mean = jnp.mean(v, axis=-1, keepdims=True)
        vc = v - mean
        var = jnp.mean(vc * vc, axis=-1, keepdims=True)
        return vc * jax.lax.rsqrt(var + eps) * g + b

    for l in range(num_layers):                            # static, unrolled layer loop
        # fused QKV projection: one (SP, D) x (D, 3D) MXU matmul, lane-dense 3D output
        qkv = jnp.dot(x, wqkv_ref[l], preferred_element_type=jnp.float32) + bqkv_ref[l]
        q, k, v = qkv[:, :D], qkv[:, D:2 * D], qkv[:, 2 * D:]

        heads = []
        for h in range(nhead):                             # static, unrolled head loop
            lo, hi = h * Dh, (h + 1) * Dh
            qh, kh, vh = q[:, lo:hi], k[:, lo:hi], v[:, lo:hi]
            s = jnp.einsum("qd,kd->qk", qh, kh,
                           preferred_element_type=jnp.float32) * scale
            s = jnp.where(key_mask, s, -1e30)
            s = s - jnp.max(s, axis=-1, keepdims=True)
            p = jnp.exp(s)
            p = p * pl.reciprocal(jnp.sum(p, axis=-1, keepdims=True), approx=True)
            heads.append(jnp.einsum("qk,kd->qd", p, vh,
                                    preferred_element_type=jnp.float32))
        attn = jnp.concatenate(heads, axis=-1)             # (SP, D)
        attn = jnp.dot(attn, wo_ref[l], preferred_element_type=jnp.float32) + bo_ref[l]

        # post-norm residual 1 (no HBM round trip)
        x = layernorm(x + attn, ln1g_ref[l], ln1b_ref[l])

        # FFN
        h1 = jnp.maximum(
            jnp.dot(x, w1_ref[l], preferred_element_type=jnp.float32) + b1_ref[l], 0.0)
        h2 = jnp.dot(h1, w2_ref[l], preferred_element_type=jnp.float32) + b2_ref[l]

        # post-norm residual 2
        x = layernorm(x + h2, ln2g_ref[l], ln2b_ref[l])

    # ---- MoE alignment on the dynamic-token position (row 0) only, same kernel ----
    t = x[0:1, :]                                          # (1, D)
    logits = jnp.dot(t, gw_ref[...], preferred_element_type=jnp.float32) + gb_ref[...]
    logits = logits - jnp.max(logits, axis=-1, keepdims=True)
    g = jnp.exp(logits)
    g = g * pl.reciprocal(jnp.sum(g, axis=-1, keepdims=True), approx=True)   # (1, E)
    # single lane-dense (D, E*D) expert matmul instead of E tiny 32-wide matmuls
    y = jnp.dot(t, ew_ref[...], preferred_element_type=jnp.float32) + eb_ref[...]
    out = g[:, 0:1] * y[:, :d_model]
    for e in range(1, num_experts):                        # static unrolled gated reduce
        out = out + g[:, e:e + 1] * y[:, e * d_model:(e + 1) * d_model]
    o_ref[...] = out.reshape(1, 1, d_model).astype(o_ref.dtype)


def vit_moe_forward(vit_params, moe_params, x, *, seq_len, nhead):
    B, SP, D = x.shape
    L = len(vit_params)
    dff = vit_params[0]["w1"].shape[1]
    E = moe_params["expert_w"].shape[0]

    # stack per-layer weights on a leading layer axis (statically indexed in-kernel)
    wqkv = jnp.stack([jnp.concatenate([lp["wq"], lp["wk"], lp["wv"]], axis=1)
                      for lp in vit_params])                                   # (L, D, 3D)
    bqkv = jnp.stack([jnp.concatenate([lp["bq"], lp["bk"], lp["bv"]]).reshape(1, 3 * D)
                      for lp in vit_params])                                   # (L, 1, 3D)
    wo = jnp.stack([lp["wo"] for lp in vit_params])
    bo = jnp.stack([lp["bo"].reshape(1, D) for lp in vit_params])
    ln1g = jnp.stack([lp["ln1_g"].reshape(1, D) for lp in vit_params])
    ln1b = jnp.stack([lp["ln1_b"].reshape(1, D) for lp in vit_params])
    w1 = jnp.stack([lp["w1"] for lp in vit_params])
    b1 = jnp.stack([lp["b1"].reshape(1, dff) for lp in vit_params])
    w2 = jnp.stack([lp["w2"] for lp in vit_params])
    b2 = jnp.stack([lp["b2"].reshape(1, D) for lp in vit_params])
    ln2g = jnp.stack([lp["ln2_g"].reshape(1, D) for lp in vit_params])
    ln2b = jnp.stack([lp["ln2_b"].reshape(1, D) for lp in vit_params])

    gw = moe_params["gate_w"]                                                  # (D, E)
    gb = moe_params["gate_b"].reshape(1, E)
    ew = jnp.transpose(moe_params["expert_w"], (1, 0, 2)).reshape(D, E * D)    # (D, E*D)
    eb = moe_params["expert_b"].reshape(1, E * D)

    weights = [wqkv, bqkv, wo, bo, ln1g, ln1b, w1, b1, w2, b2, ln2g, ln2b,
               gw, gb, ew, eb]

    def rep_spec(a):                               # full-array block, replicated per step
        nd = a.ndim
        return pl.BlockSpec(a.shape, lambda b, _nd=nd: (0,) * _nd)

    out = pl.pallas_call(
        functools.partial(_vit_moe_kernel, seq_len=seq_len, nhead=nhead,
                          num_layers=L, num_experts=E, d_model=D, eps=1e-5),
        out_shape=jax.ShapeDtypeStruct((B, 1, D), jnp.float32),
        grid=(B,),
        in_specs=[pl.BlockSpec((1, SP, D), lambda b: (b, 0, 0))] +
                 [rep_spec(a) for a in weights],
        out_specs=pl.BlockSpec((1, 1, D), lambda b: (b, 0, 0)),
        compiler_params=pltpu.CompilerParams(dimension_semantics=("parallel",)),
    )(x, *weights)
    return out.reshape(B, D)


# -------------------------------------------------------------------------- full forward

def vision_module_forward(params, images_nchw, config, token_key):
    d_model = config["vision"]["d_model"]
    nhead = config["vision"]["nhead"]
    enc = encoder_forward(params["encoder"], images_nchw)                # (B, S0, d_model)
    B = enc.shape[0]
    dynamic_token = jax.random.normal(token_key, (B, 1, d_model), enc.dtype)  # torch.randn
    x = jnp.concatenate([dynamic_token, enc], axis=1)                    # (B, S, d_model)
    S = x.shape[1]                                                       # 1 + S0 (=17)
    SP = ((S + 7) // 8) * 8                                              # pad to sublane mult
    x = jnp.pad(x, ((0, 0), (0, SP - S), (0, 0)))
    return vit_moe_forward(params["vit"], params["moe"], x,
                           seq_len=S, nhead=nhead)                       # (B, d_model)


# ----------------------------------------------------------------------------- param init

def init_params(key, config):
    d = config["vision"]["d_model"]
    nlayers = config["vision"]["num_layers"]
    dff = config["vision"]["dim_feedforward"]
    nexp = config["moe"]["num_experts"]
    c_stem, c_res = 16, 16

    keys = iter(jax.random.split(key, 128))

    def w(shape, scale=0.05):
        return scale * jax.random.normal(next(keys), shape, jnp.float32)

    def z(shape):
        return jnp.zeros(shape, jnp.float32)

    encoder = dict(
        stem_w=w((c_stem, 3, 3, 3)), stem_b=z((c_stem,)),
        res_w1=w((c_res, c_stem, 3, 3)), res_b1=z((c_res,)),
        res_w2=w((c_res, c_res, 3, 3)), res_b2=z((c_res,)),
        down_w=w((d, c_res, 3, 3)), down_b=z((d,)),
    )
    vit = []
    for _ in range(nlayers):
        vit.append(dict(
            wq=w((d, d)), bq=z((d,)), wk=w((d, d)), bk=z((d,)),
            wv=w((d, d)), bv=z((d,)), wo=w((d, d)), bo=z((d,)),
            ln1_g=jnp.ones((d,), jnp.float32), ln1_b=z((d,)),
            w1=w((d, dff)), b1=z((dff,)), w2=w((dff, d)), b2=z((d,)),
            ln2_g=jnp.ones((d,), jnp.float32), ln2_b=z((d,)),
        ))
    moe = dict(
        gate_w=w((d, nexp)), gate_b=z((nexp,)),
        expert_w=w((nexp, d, d)), expert_b=z((nexp, 1, d)),
    )
    return dict(encoder=encoder, vit=vit, moe=moe)


# ---------------------------------------------------------------------------------- main

if __name__ == "__main__":
    config = {
        "vision": {"d_model": 32, "nhead": 4, "num_layers": 2, "dim_feedforward": 64},
        "moe": {"num_experts": 4},
    }
    key = jax.random.PRNGKey(0)
    pkey, xkey, tkey = jax.random.split(key, 3)

    params = init_params(pkey, config)
    images = jax.random.normal(xkey, (2, 3, 16, 16), jnp.float32)   # NCHW like PyTorch

    @jax.jit
    def forward(params, images, token_key):
        return vision_module_forward(params, images, config, token_key)

    out = jax.block_until_ready(forward(params, images, tkey))
    assert out.shape == (2, config["vision"]["d_model"]), out.shape
    assert bool(jnp.all(jnp.isfinite(out)))
    print("KERNEL_OK")
</pallas_src>

<mosaic_0001>
module attributes {stable_mosaic.version = 11 : i64} {
  func.func @_matmul_bias_act_kernel(%arg0: memref<128x27xf32, #tpu.memory_space<vmem>>, %arg1: memref<27x16xf32, #tpu.memory_space<vmem>>, %arg2: memref<1x16xf32, #tpu.memory_space<vmem>>, %arg3: memref<128x16xf32, #tpu.memory_space<vmem>>) attributes {dimension_semantics = [], scalar_prefetch = 0 : i64, scratch_operands = 0 : i64, tpu.core_type = #tpu.core_type<tc>} {
    %c0 = arith.constant 0 : index
    %c0_0 = arith.constant 0 : index
    %0 = vector.load %arg0[%c0, %c0_0] : memref<128x27xf32, #tpu.memory_space<vmem>>, vector<128x27xf32>
    %c0_1 = arith.constant 0 : index
    %c0_2 = arith.constant 0 : index
    %1 = vector.load %arg1[%c0_1, %c0_2] : memref<27x16xf32, #tpu.memory_space<vmem>>, vector<27x16xf32>
    %cst = arith.constant dense<0.000000e+00> : vector<128x16xf32>
    %2 = tpu.matmul %0, %1, %cst {dimension_numbers = #tpu.dot_dimension_numbers<[1], [0], [0], [1], [0, 0, 1, 1], [], []>} : vector<128x27xf32>, vector<27x16xf32>, vector<128x16xf32> -> vector<128x16xf32>
    %c0_3 = arith.constant 0 : index
    %c0_4 = arith.constant 0 : index
    %3 = vector.load %arg2[%c0_3, %c0_4] : memref<1x16xf32, #tpu.memory_space<vmem>>, vector<1x16xf32>
    %4 = vector.broadcast %3 : vector<1x16xf32> to vector<128x16xf32>
    %5 = arith.addf %2, %4 : vector<128x16xf32>
    %cst_5 = arith.constant 0.000000e+00 : f32
    %6 = vector.broadcast %cst_5 : f32 to vector<128x16xf32>
    %7 = arith.maximumf %5, %6 : vector<128x16xf32>
    %c0_6 = arith.constant 0 : index
    %c0_7 = arith.constant 0 : index
    %8 = vector.load %arg3[%c0_6, %c0_7] : memref<128x16xf32, #tpu.memory_space<vmem>>, vector<128x16xf32>
    tpu.vector_store %arg3[%c0_6, %c0_7], %7 {strides = array<i32>} : memref<128x16xf32, #tpu.memory_space<vmem>>, vector<128x16xf32>,
    return
  }
}

module attributes {stable_mosaic.version = 11 : i64} {
  func.func @_matmul_bias_act_kernel(%arg0: memref<128x144xf32, #tpu.memory_space<vmem>>, %arg1: memref<144x16xf32, #tpu.memory_space<vmem>>, %arg2: memref<1x16xf32, #tpu.memory_space<vmem>>, %arg3: memref<128x16xf32, #tpu.memory_space<vmem>>) attributes {dimension_semantics = [], scalar_prefetch = 0 : i64, scratch_operands = 0 : i64, tpu.core_type = #tpu.core_type<tc>} {
    %c0 = arith.constant 0 : index
    %c0_0 = arith.constant 0 : index
    %0 = vector.load %arg0[%c0, %c0_0] : memref<128x144xf32, #tpu.memory_space<vmem>>, vector<128x144xf32>
    %c0_1 = arith.constant 0 : index
    %c0_2 = arith.constant 0 : index
    %1 = vector.load %arg1[%c0_1, %c0_2] : memref<144x16xf32, #tpu.memory_space<vmem>>, vector<144x16xf32>
    %cst = arith.constant dense<0.000000e+00> : vector<128x16xf32>
    %2 = tpu.matmul %0, %1, %cst {dimension_numbers = #tpu.dot_dimension_numbers<[1], [0], [0], [1], [0, 0, 1, 1], [], []>} : vector<128x144xf32>, vector<144x16xf32>, vector<128x16xf32> -> vector<128x16xf32>
    %c0_3 = arith.constant 0 : index
    %c0_4 = arith.constant 0 : index
    %3 = vector.load %arg2[%c0_3, %c0_4] : memref<1x16xf32, #tpu.memory_space<vmem>>, vector<1x16xf32>
    %4 = vector.broadcast %3 : vector<1x16xf32> to vector<128x16xf32>
    %5 = arith.addf %2, %4 : vector<128x16xf32>
    %cst_5 = arith.constant 0.000000e+00 : f32
    %6 = vector.broadcast %cst_5 : f32 to vector<128x16xf32>
    %7 = arith.maximumf %5, %6 : vector<128x16xf32>
    %c0_6 = arith.constant 0 : index
    %c0_7 = arith.constant 0 : index
    %8 = vector.load %arg3[%c0_6, %c0_7] : memref<128x16xf32, #tpu.memory_space<vmem>>, vector<128x16xf32>
    tpu.vector_store %arg3[%c0_6, %c0_7], %7 {strides = array<i32>} : memref<128x16xf32, #tpu.memory_space<vmem>>, vector<128x16xf32>,
    return
  }
}

module attributes {stable_mosaic.version = 11 : i64} {
  func.func @_matmul_bias_res_relu_kernel(%arg0: memref<128x144xf32, #tpu.memory_space<vmem>>, %arg1: memref<144x16xf32, #tpu.memory_space<vmem>>, %arg2: memref<1x16xf32, #tpu.memory_space<vmem>>, %arg3: memref<128x16xf32, #tpu.memory_space<vmem>>, %arg4: memref<128x16xf32, #tpu.memory_space<vmem>>) attributes {dimension_semantics = [], scalar_prefetch = 0 : i64, scratch_operands = 0 : i64, tpu.core_type = #tpu.core_type<tc>} {
    %c0 = arith.constant 0 : index
    %c0_0 = arith.constant 0 : index
    %0 = vector.load %arg0[%c0, %c0_0] : memref<128x144xf32, #tpu.memory_space<vmem>>, vector<128x144xf32>
    %c0_1 = arith.constant 0 : index
    %c0_2 = arith.constant 0 : index
    %1 = vector.load %arg1[%c0_1, %c0_2] : memref<144x16xf32, #tpu.memory_space<vmem>>, vector<144x16xf32>
    %cst = arith.constant dense<0.000000e+00> : vector<128x16xf32>
    %2 = tpu.matmul %0, %1, %cst {dimension_numbers = #tpu.dot_dimension_numbers<[1], [0], [0], [1], [0, 0, 1, 1], [], []>} : vector<128x144xf32>, vector<144x16xf32>, vector<128x16xf32> -> vector<128x16xf32>
    %c0_3 = arith.constant 0 : index
    %c0_4 = arith.constant 0 : index
    %3 = vector.load %arg2[%c0_3, %c0_4] : memref<1x16xf32, #tpu.memory_space<vmem>>, vector<1x16xf32>
    %4 = vector.broadcast %3 : vector<1x16xf32> to vector<128x16xf32>
    %5 = arith.addf %2, %4 : vector<128x16xf32>
    %c0_5 = arith.constant 0 : index
    %c0_6 = arith.constant 0 : index
    %6 = vector.load %arg3[%c0_5, %c0_6] : memref<128x16xf32, #tpu.memory_space<vmem>>, vector<128x16xf32>
    %7 = arith.addf %5, %6 : vector<128x16xf32>
    %cst_7 = arith.constant 0.000000e+00 : f32
    %8 = vector.broadcast %cst_7 : f32 to vector<128x16xf32>
    %9 = arith.maximumf %7, %8 : vector<128x16xf32>
    %c0_8 = arith.constant 0 : index
    %c0_9 = arith.constant 0 : index
    %10 = vector.load %arg4[%c0_8, %c0_9] : memref<128x16xf32, #tpu.memory_space<vmem>>, vector<128x16xf32>
    tpu.vector_store %arg4[%c0_8, %c0_9], %9 {strides = array<i32>} : memref<128x16xf32, #tpu.memory_space<vmem>>, vector<128x16xf32>,
    return
  }
}

module attributes {stable_mosaic.version = 11 : i64} {
  func.func @_matmul_bias_act_kernel(%arg0: memref<32x144xf32, #tpu.memory_space<vmem>>, %arg1: memref<144x32xf32, #tpu.memory_space<vmem>>, %arg2: memref<1x32xf32, #tpu.memory_space<vmem>>, %arg3: memref<32x32xf32, #tpu.memory_space<vmem>>) attributes {dimension_semantics = [], scalar_prefetch = 0 : i64, scratch_operands = 0 : i64, tpu.core_type = #tpu.core_type<tc>} {
    %c0 = arith.constant 0 : index
    %c0_0 = arith.constant 0 : index
    %0 = vector.load %arg0[%c0, %c0_0] : memref<32x144xf32, #tpu.memory_space<vmem>>, vector<32x144xf32>
    %c0_1 = arith.constant 0 : index
    %c0_2 = arith.constant 0 : index
    %1 = vector.load %arg1[%c0_1, %c0_2] : memref<144x32xf32, #tpu.memory_space<vmem>>, vector<144x32xf32>
    %cst = arith.constant dense<0.000000e+00> : vector<32x32xf32>
    %2 = tpu.matmul %0, %1, %cst {dimension_numbers = #tpu.dot_dimension_numbers<[1], [0], [0], [1], [0, 0, 1, 1], [], []>} : vector<32x144xf32>, vector<144x32xf32>, vector<32x32xf32> -> vector<32x32xf32>
    %c0_3 = arith.constant 0 : index
    %c0_4 = arith.constant 0 : index
    %3 = vector.load %arg2[%c0_3, %c0_4] : memref<1x32xf32, #tpu.memory_space<vmem>>, vector<1x32xf32>
    %4 = vector.broadcast %3 : vector<1x32xf32> to vector<32x32xf32>
    %5 = arith.addf %2, %4 : vector<32x32xf32>
    %cst_5 = arith.constant 0.000000e+00 : f32
    %6 = vector.broadcast %cst_5 : f32 to vector<32x32xf32>
    %7 = arith.maximumf %5, %6 : vector<32x32xf32>
    %c0_6 = arith.constant 0 : index
    %c0_7 = arith.constant 0 : index
    %8 = vector.load %arg3[%c0_6, %c0_7] : memref<32x32xf32, #tpu.memory_space<vmem>>, vector<32x32xf32>
    tpu.vector_store %arg3[%c0_6, %c0_7], %7 {strides = array<i32>} : memref<32x32xf32, #tpu.memory_space<vmem>>, vector<32x32xf32>,
    return
  }
}

module attributes {stable_mosaic.version = 11 : i64} {
  func.func @_vit_moe_kernel(%arg0: i32, %arg1: memref<1x24x32xf32, #tpu.memory_space<vmem>>, %arg2: memref<2x32x96xf32, #tpu.memory_space<vmem>>, %arg3: memref<2x1x96xf32, #tpu.memory_space<vmem>>, %arg4: memref<2x32x32xf32, #tpu.memory_space<vmem>>, %arg5: memref<2x1x32xf32, #tpu.memory_space<vmem>>, %arg6: memref<2x1x32xf32, #tpu.memory_space<vmem>>, %arg7: memref<2x1x32xf32, #tpu.memory_space<vmem>>, %arg8: memref<2x32x64xf32, #tpu.memory_space<vmem>>, %arg9: memref<2x1x64xf32, #tpu.memory_space<vmem>>, %arg10: memref<2x64x32xf32, #tpu.memory_space<vmem>>, %arg11: memref<2x1x32xf32, #tpu.memory_space<vmem>>, %arg12: memref<2x1x32xf32, #tpu.memory_space<vmem>>, %arg13: memref<2x1x32xf32, #tpu.memory_space<vmem>>, %arg14: memref<32x4xf32, #tpu.memory_space<vmem>>, %arg15: memref<1x4xf32, #tpu.memory_space<vmem>>, %arg16: memref<32x128xf32, #tpu.memory_space<vmem>>, %arg17: memref<1x128xf32, #tpu.memory_space<vmem>>, %arg18: memref<1x1x32xf32, #tpu.memory_space<vmem>>) attributes {dimension_semantics = [#tpu.dimension_semantics<parallel>], iteration_bounds = array<i64: 2>, scalar_prefetch = 0 : i64, scratch_operands = 0 : i64, tpu.core_type = #tpu.core_type<tc>, window_params = [{transform_indices = @transform_0, window_bounds = array<i64: 1, 24, 32>}, {pipeline_mode = #tpu.pipeline_mode<synchronous>, transform_indices = @transform_1, window_bounds = array<i64: 2, 32, 96>}, {pipeline_mode = #tpu.pipeline_mode<synchronous>, transform_indices = @transform_2, window_bounds = array<i64: 2, 1, 96>}, {pipeline_mode = #tpu.pipeline_mode<synchronous>, transform_indices = @transform_3, window_bounds = array<i64: 2, 32, 32>}, {pipeline_mode = #tpu.pipeline_mode<synchronous>, transform_indices = @transform_4, window_bounds = array<i64: 2, 1, 32>}, {pipeline_mode = #tpu.pipeline_mode<synchronous>, transform_indices = @transform_5, window_bounds = array<i64: 2, 1, 32>}, {pipeline_mode = #tpu.pipeline_mode<synchronous>, transform_indices = @transform_6, window_bounds = array<i64: 2, 1, 32>}, {pipeline_mode = #tpu.pipeline_mode<synchronous>, transform_indices = @transform_7, window_bounds = array<i64: 2, 32, 64>}, {pipeline_mode = #tpu.pipeline_mode<synchronous>, transform_indices = @transform_8, window_bounds = array<i64: 2, 1, 64>}, {pipeline_mode = #tpu.pipeline_mode<synchronous>, transform_indices = @transform_9, window_bounds = array<i64: 2, 64, 32>}, {pipeline_mode = #tpu.pipeline_mode<synchronous>, transform_indices = @transform_10, window_bounds = array<i64: 2, 1, 32>}, {pipeline_mode = #tpu.pipeline_mode<synchronous>, transform_indices = @transform_11, window_bounds = array<i64: 2, 1, 32>}, {pipeline_mode = #tpu.pipeline_mode<synchronous>, transform_indices = @transform_12, window_bounds = array<i64: 2, 1, 32>}, {pipeline_mode = #tpu.pipeline_mode<synchronous>, transform_indices = @transform_13, window_bounds = array<i64: 32, 4>}, {pipeline_mode = #tpu.pipeline_mode<synchronous>, transform_indices = @transform_14, window_bounds = array<i64: 1, 4>}, {pipeline_mode = #tpu.pipeline_mode<synchronous>, transform_indices = @transform_15, window_bounds = array<i64: 32, 128>}, {pipeline_mode = #tpu.pipeline_mode<synchronous>, transform_indices = @transform_16, window_bounds = array<i64: 1, 128>}, {transform_indices = @transform_17, window_bounds = array<i64: 1, 1, 32>}]} {
    %c0 = arith.constant 0 : index
    %c0_0 = arith.constant 0 : index
    %c0_1 = arith.constant 0 : index
    %0 = vector.load %arg1[%c0, %c0_0, %c0_1] : memref<1x24x32xf32, #tpu.memory_space<vmem>>, vector<1x24x32xf32>
    %1 = vector.shape_cast %0 : vector<1x24x32xf32> to vector<24x32xf32>
    %2 = tpu.iota {dimensions = array<i32: 1>} : vector<1x24xi32>
    %c17_i32 = arith.constant 17 : i32
    %3 = vector.broadcast %c17_i32 : i32 to vector<1x24xi32>
    %4 = arith.cmpi slt, %2, %3 : vector<1x24xi32>
    %c0_2 = arith.constant 0 : index
    %c0_3 = arith.constant 0 : index
    %c0_4 = arith.constant 0 : index
    %5 = vector.load %arg2[%c0_2, %c0_3, %c0_4] : memref<2x32x96xf32, #tpu.memory_space<vmem>>, vector<1x32x96xf32>
    %6 = vector.shape_cast %5 : vector<1x32x96xf32> to vector<32x96xf32>
    %cst = arith.constant dense<0.000000e+00> : vector<24x96xf32>
    %7 = tpu.matmul %1, %6, %cst {dimension_numbers = #tpu.dot_dimension_numbers<[1], [0], [0], [1], [0, 0, 1, 1], [], []>} : vector<24x32xf32>, vector<32x96xf32>, vector<24x96xf32> -> vector<24x96xf32>
    %c0_5 = arith.constant 0 : index
    %c0_6 = arith.constant 0 : index
    %c0_7 = arith.constant 0 : index
    %8 = vector.load %arg3[%c0_5, %c0_6, %c0_7] : memref<2x1x96xf32, #tpu.memory_space<vmem>>, vector<1x1x96xf32>
    %9 = vector.shape_cast %8 : vector<1x1x96xf32> to vector<1x96xf32>
    %10 = vector.broadcast %9 : vector<1x96xf32> to vector<24x96xf32>
    %11 = arith.addf %7, %10 : vector<24x96xf32>
    %12 = vector.extract_strided_slice %11 {offsets = [0, 0], sizes = [24, 32], strides = [1, 1]} : vector<24x96xf32> to vector<24x32xf32>
    %13 = vector.extract_strided_slice %11 {offsets = [0, 32], sizes = [24, 32], strides = [1, 1]} : vector<24x96xf32> to vector<24x32xf32>
    %14 = vector.extract_strided_slice %11 {offsets = [0, 64], sizes = [24, 32], strides = [1, 1]} : vector<24x96xf32> to vector<24x32xf32>
    %15 = vector.extract_strided_slice %12 {offsets = [0, 0], sizes = [24, 8], strides = [1, 1]} : vector<24x32xf32> to vector<24x8xf32>
    %16 = vector.extract_strided_slice %13 {offsets = [0, 0], sizes = [24, 8], strides = [1, 1]} : vector<24x32xf32> to vector<24x8xf32>
    %17 = vector.extract_strided_slice %14 {offsets = [0, 0], sizes = [24, 8], strides = [1, 1]} : vector<24x32xf32> to vector<24x8xf32>
    "tpu.trace_start"() <{level = 10 : i32, message = "qd,kd->qk"}> : () -> ()
    %cst_8 = arith.constant dense<0.000000e+00> : vector<24x24xf32>
    %18 = tpu.matmul %15, %16, %cst_8 {dimension_numbers = #tpu.dot_dimension_numbers<[1], [1], [0], [0], [0, 0, 1, 0], [], []>} : vector<24x8xf32>, vector<24x8xf32>, vector<24x24xf32> -> vector<24x24xf32>
    "tpu.trace_stop"() : () -> ()
    %cst_9 = arith.constant 0.353553385 : f32
    %19 = vector.broadcast %cst_9 : f32 to vector<24x24xf32>
    %20 = arith.mulf %18, %19 : vector<24x24xf32>
    %cst_10 = arith.constant -1.000000e+30 : f32
    %21 = vector.shape_cast %4 : vector<1x24xi1> to vector<1x24xi1>
    %22 = vector.broadcast %21 : vector<1x24xi1> to vector<24x24xi1>
    %23 = vector.broadcast %cst_10 : f32 to vector<24x24xf32>
    %24 = arith.select %22, %20, %23 : vector<24x24xi1>, vector<24x24xf32>
    %cst_11 = arith.constant dense<0xFF800000> : vector<24xf32>
    %25 = vector.multi_reduction <maximumf>, %24, %cst_11 [1] : vector<24x24xf32> to vector<24xf32>
    %26 = vector.shape_cast %25 : vector<24xf32> to vector<24x1xf32>
    %27 = vector.broadcast %26 : vector<24x1xf32> to vector<24x24xf32>
    %28 = arith.subf %24, %27 : vector<24x24xf32>
    %29 = math.exp %28 : vector<24x24xf32>
    %cst_12 = arith.constant dense<0.000000e+00> : vector<24xf32>
    %30 = vector.multi_reduction <add>, %29, %cst_12 [1] : vector<24x24xf32> to vector<24xf32>
    %31 = vector.shape_cast %30 : vector<24xf32> to vector<24x1xf32>
    %32 = tpu.reciprocal %31 {approx = true} : vector<24x1xf32> -> vector<24x1xf32>
    %33 = vector.broadcast %32 : vector<24x1xf32> to vector<24x24xf32>
    %34 = arith.mulf %29, %33 : vector<24x24xf32>
    "tpu.trace_start"() <{level = 10 : i32, message = "qk,kd->qd"}> : () -> ()
    %cst_13 = arith.constant dense<0.000000e+00> : vector<24x8xf32>
    %35 = tpu.matmul %34, %17, %cst_13 {dimension_numbers = #tpu.dot_dimension_numbers<[1], [0], [0], [1], [0, 0, 1, 1], [], []>} : vector<24x24xf32>, vector<24x8xf32>, vector<24x8xf32> -> vector<24x8xf32>
    "tpu.trace_stop"() : () -> ()
    %36 = vector.extract_strided_slice %12 {offsets = [0, 8], sizes = [24, 8], strides = [1, 1]} : vector<24x32xf32> to vector<24x8xf32>
    %37 = vector.extract_strided_slice %13 {offsets = [0, 8], sizes = [24, 8], strides = [1, 1]} : vector<24x32xf32> to vector<24x8xf32>
    %38 = vector.extract_strided_slice %14 {offsets = [0, 8], sizes = [24, 8], strides = [1, 1]} : vector<24x32xf32> to vector<24x8xf32>
    "tpu.trace_start"() <{level = 10 : i32, message = "qd,kd->qk"}> : () -> ()
    %cst_14 = arith.constant dense<0.000000e+00> : vector<24x24xf32>
    %39 = tpu.matmul %36, %37, %cst_14 {dimension_numbers = #tpu.dot_dimension_numbers<[1], [1], [0], [0], [0, 0, 1, 0], [], []>} : vector<24x8xf32>, vector<24x8xf32>, vector<24x24xf32> -> vector<24x24xf32>
    "tpu.trace_stop"() : () -> ()
    %cst_15 = arith.constant 0.353553385 : f32
    %40 = vector.broadcast %cst_15 : f32 to vector<24x24xf32>
    %41 = arith.mulf %39, %40 : vector<24x24xf32>
    %cst_16 = arith.constant -1.000000e+30 : f32
    %42 = vector.shape_cast %4 : vector<1x24xi1> to vector<1x24xi1>
    %43 = vector.broadcast %42 : vector<1x24xi1> to vector<24x24xi1>
    %44 = vector.broadcast %cst_16 : f32 to vector<24x24xf32>
    %45 = arith.select %43, %41, %44 : vector<24x24xi1>, vector<24x24xf32>
    %cst_17 = arith.constant dense<0xFF800000> : vector<24xf32>
    %46 = vector.multi_reduction <maximumf>, %45, %cst_17 [1] : vector<24x24xf32> to vector<24xf32>
    %47 = vector.shape_cast %46 : vector<24xf32> to vector<24x1xf32>
    %48 = vector.broadcast %47 : vector<24x1xf32> to vector<24x24xf32>
    %49 = arith.subf %45, %48 : vector<24x24xf32>
    %50 = math.exp %49 : vector<24x24xf32>
    %cst_18 = arith.constant dense<0.000000e+00> : vector<24xf32>
    %51 = vector.multi_reduction <add>, %50, %cst_18 [1] : vector<24x24xf32> to vector<24xf32>
    %52 = vector.shape_cast %51 : vector<24xf32> to vector<24x1xf32>
    %53 = tpu.reciprocal %52 {approx = true} : vector<24x1xf32> -> vector<24x1xf32>
    %54 = vector.broadcast %53 : vector<24x1xf32> to vector<24x24xf32>
    %55 = arith.mulf %50, %54 : vector<24x24xf32>
    "tpu.trace_start"() <{level = 10 : i32, message = "qk,kd->qd"}> : () -> ()
    %cst_19 = arith.constant dense<0.000000e+00> : vector<24x8xf32>
    %56 = tpu.matmul %55, %38, %cst_19 {dimension_numbers = #tpu.dot_dimension_numbers<[1], [0], [0], [1], [0, 0, 1, 1], [], []>} : vector<24x24xf32>, vector<24x8xf32>, vector<24x8xf32> -> vector<24x8xf32>
    "tpu.trace_stop"() : () -> ()
    %57 = vector.extract_strided_slice %12 {offsets = [0, 16], sizes = [24, 8], strides = [1, 1]} : vector<24x32xf32> to vector<24x8xf32>
    %58 = vector.extract_strided_slice %13 {offsets = [0, 16], sizes = [24, 8], strides = [1, 1]} : vector<24x32xf32> to vector<24x8xf32>
    %59 = vector.extract_strided_slice %14 {offsets = [0, 16], sizes = [24, 8], strides = [1, 1]} : vector<24x32xf32> to vector<24x8xf32>
    "tpu.trace_start"() <{level = 10 : i32, message = "qd,kd->qk"}> : () -> ()
    %cst_20 = arith.constant dense<0.000000e+00> : vector<24x24xf32>
    %60 = tpu.matmul %57, %58, %cst_20 {dimension_numbers = #tpu.dot_dimension_numbers<[1], [1], [0], [0], [0, 0, 1, 0], [], []>} : vector<24x8xf32>, vector<24x8xf32>, vector<24x24xf32> -> vector<24x24xf32>
    "tpu.trace_stop"() : () -> ()
    %cst_21 = arith.constant 0.353553385 : f32
    %61 = vector.broadcast %cst_21 : f32 to vector<24x24xf32>
    %62 = arith.mulf %60, %61 : vector<24x24xf32>
    %cst_22 = arith.constant -1.000000e+30 : f32
    %63 = vector.shape_cast %4 : vector<1x24xi1> to vector<1x24xi1>
    %64 = vector.broadcast %63 : vector<1x24xi1> to vector<24x24xi1>
    %65 = vector.broadcast %cst_22 : f32 to vector<24x24xf32>
    %66 = arith.select %64, %62, %65 : vector<24x24xi1>, vector<24x24xf32>
    %cst_23 = arith.constant dense<0xFF800000> : vector<24xf32>
    %67 = vector.multi_reduction <maximumf>, %66, %cst_23 [1] : vector<24x24xf32> to vector<24xf32>
    %68 = vector.shape_cast %67 : vector<24xf32> to vector<24x1xf32>
    %69 = vector.broadcast %68 : vector<24x1xf32> to vector<24x24xf32>
    %70 = arith.subf %66, %69 : vector<24x24xf32>
    %71 = math.exp %70 : vector<24x24xf32>
    %cst_24 = arith.constant dense<0.000000e+00> : vector<24xf32>
    %72 = vector.multi_reduction <add>, %71, %cst_24 [1] : vector<24x24xf32> to vector<24xf32>
    %73 = vector.shape_cast %72 : vector<24xf32> to vector<24x1xf32>
    %74 = tpu.reciprocal %73 {approx = true} : vector<24x1xf32> -> vector<24x1xf32>
    %75 = vector.broadcast %74 : vector<24x1xf32> to vector<24x24xf32>
    %76 = arith.mulf %71, %75 : vector<24x24xf32>
    "tpu.trace_start"() <{level = 10 : i32, message = "qk,kd->qd"}> : () -> ()
    %cst_25 = arith.constant dense<0.000000e+00> : vector<24x8xf32>
    %77 = tpu.matmul %76, %59, %cst_25 {dimension_numbers = #tpu.dot_dimension_numbers<[1], [0], [0], [1], [0, 0, 1, 1], [], []>} : vector<24x24xf32>, vector<24x8xf32>, vector<24x8xf32> -> vector<24x8xf32>
    "tpu.trace_stop"() : () -> ()
    %78 = vector.extract_strided_slice %12 {offsets = [0, 24], sizes = [24, 8], strides = [1, 1]} : vector<24x32xf32> to vector<24x8xf32>
    %79 = vector.extract_strided_slice %13 {offsets = [0, 24], sizes = [24, 8], strides = [1, 1]} : vector<24x32xf32> to vector<24x8xf32>
    %80 = vector.extract_strided_slice %14 {offsets = [0, 24], sizes = [24, 8], strides = [1, 1]} : vector<24x32xf32> to vector<24x8xf32>
    "tpu.trace_start"() <{level = 10 : i32, message = "qd,kd->qk"}> : () -> ()
    %cst_26 = arith.constant dense<0.000000e+00> : vector<24x24xf32>
    %81 = tpu.matmul %78, %79, %cst_26 {dimension_numbers = #tpu.dot_dimension_numbers<[1], [1], [0], [0], [0, 0, 1, 0], [], []>} : vector<24x8xf32>, vector<24x8xf32>, vector<24x24xf32> -> vector<24x24xf32>
    "tpu.trace_stop"() : () -> ()
    %cst_27 = arith.constant 0.353553385 : f32
    %82 = vector.broadcast %cst_27 : f32 to vector<24x24xf32>
    %83 = arith.mulf %81, %82 : vector<24x24xf32>
    %cst_28 = arith.constant -1.000000e+30 : f32
    %84 = vector.shape_cast %4 : vector<1x24xi1> to vector<1x24xi1>
    %85 = vector.broadcast %84 : vector<1x24xi1> to vector<24x24xi1>
    %86 = vector.broadcast %cst_28 : f32 to vector<24x24xf32>
    %87 = arith.select %85, %83, %86 : vector<24x24xi1>, vector<24x24xf32>
    %cst_29 = arith.constant dense<0xFF800000> : vector<24xf32>
    %88 = vector.multi_reduction <maximumf>, %87, %cst_29 [1] : vector<24x24xf32> to vector<24xf32>
    %89 = vector.shape_cast %88 : vector<24xf32> to vector<24x1xf32>
    %90 = vector.broadcast %89 : vector<24x1xf32> to vector<24x24xf32>
    %91 = arith.subf %87, %90 : vector<24x24xf32>
    %92 = math.exp %91 : vector<24x24xf32>
    %cst_30 = arith.constant dense<0.000000e+00> : vector<24xf32>
    %93 = vector.multi_reduction <add>, %92, %cst_30 [1] : vector<24x24xf32> to vector<24xf32>
    %94 = vector.shape_cast %93 : vector<24xf32> to vector<24x1xf32>
    %95 = tpu.reciprocal %94 {approx = true} : vector<24x1xf32> -> vector<24x1xf32>
    %96 = vector.broadcast %95 : vector<24x1xf32> to vector<24x24xf32>
    %97 = arith.mulf %92, %96 : vector<24x24xf32>
    "tpu.trace_start"() <{level = 10 : i32, message = "qk,kd->qd"}> : () -> ()
    %cst_31 = arith.constant dense<0.000000e+00> : vector<24x8xf32>
    %98 = tpu.matmul %97, %80, %cst_31 {dimension_numbers = #tpu.dot_dimension_numbers<[1], [0], [0], [1], [0, 0, 1, 1], [], []>} : vector<24x24xf32>, vector<24x8xf32>, vector<24x8xf32> -> vector<24x8xf32>
    "tpu.trace_stop"() : () -> ()
    %99 = tpu.concatenate %35, %56, %77, %98 in 1 : vector<24x8xf32>, vector<24x8xf32>, vector<24x8xf32>, vector<24x8xf32> -> vector<24x32xf32>
    %c0_32 = arith.constant 0 : index
    %c0_33 = arith.constant 0 : index
    %c0_34 = arith.constant 0 : index
    %100 = vector.load %arg4[%c0_32, %c0_33, %c0_34] : memref<2x32x32xf32, #tpu.memory_space<vmem>>, vector<1x32x32xf32>
    %101 = vector.shape_cast %100 : vector<1x32x32xf32> to vector<32x32xf32>
    %cst_35 = arith.constant dense<0.000000e+00> : vector<24x32xf32>
    %102 = tpu.matmul %99, %101, %cst_35 {dimension_numbers = #tpu.dot_dimension_numbers<[1], [0], [0], [1], [0, 0, 1, 1], [], []>} : vector<24x32xf32>, vector<32x32xf32>, vector<24x32xf32> -> vector<24x32xf32>
    %c0_36 = arith.constant 0 : index
    %c0_37 = arith.constant 0 : index
    %c0_38 = arith.constant 0 : index
    %103 = vector.load %arg5[%c0_36, %c0_37, %c0_38] : memref<2x1x32xf32, #tpu.memory_space<vmem>>, vector<1x1x32xf32>
    %104 = vector.shape_cast %103 : vector<1x1x32xf32> to vector<1x32xf32>
    %105 = vector.broadcast %104 : vector<1x32xf32> to vector<24x32xf32>
    %106 = arith.addf %102, %105 : vector<24x32xf32>
    %107 = arith.addf %1, %106 : vector<24x32xf32>
    %c0_39 = arith.constant 0 : index
    %c0_40 = arith.constant 0 : index
    %c0_41 = arith.constant 0 : index
    %108 = vector.load %arg6[%c0_39, %c0_40, %c0_41] : memref<2x1x32xf32, #tpu.memory_space<vmem>>, vector<1x1x32xf32>
    %109 = vector.shape_cast %108 : vector<1x1x32xf32> to vector<1x32xf32>
    %c0_42 = arith.constant 0 : index
    %c0_43 = arith.constant 0 : index
    %c0_44 = arith.constant 0 : index
    %110 = vector.load %arg7[%c0_42, %c0_43, %c0_44] : memref<2x1x32xf32, #tpu.memory_space<vmem>>, vector<1x1x32xf32>
    %111 = vector.shape_cast %110 : vector<1x1x32xf32> to vector<1x32xf32>
    %cst_45 = arith.constant dense<0.000000e+00> : vector<24xf32>
    %112 = vector.multi_reduction <add>, %107, %cst_45 [1] : vector<24x32xf32> to vector<24xf32>
    %113 = vector.shape_cast %112 : vector<24xf32> to vector<24x1xf32>
    %cst_46 = arith.constant 3.200000e+01 : f32
    %114 = vector.broadcast %cst_46 : f32 to vector<24x1xf32>
    %115 = arith.divf %113, %114 : vector<24x1xf32>
    %116 = vector.broadcast %115 : vector<24x1xf32> to vector<24x32xf32>
    %117 = arith.subf %107, %116 : vector<24x32xf32>
    %118 = arith.mulf %117, %117 : vector<24x32xf32>
    %cst_47 = arith.constant dense<0.000000e+00> : vector<24xf32>
    %119 = vector.multi_reduction <add>, %118, %cst_47 [1] : vector<24x32xf32> to vector<24xf32>
    %120 = vector.shape_cast %119 : vector<24xf32> to vector<24x1xf32>
    %cst_48 = arith.constant 3.200000e+01 : f32
    %121 = vector.broadcast %cst_48 : f32 to vector<24x1xf32>
    %122 = arith.divf %120, %121 : vector<24x1xf32>
    %cst_49 = arith.constant 9.99999974E-6 : f32
    %123 = vector.broadcast %cst_49 : f32 to vector<24x1xf32>
    %124 = arith.addf %122, %123 : vector<24x1xf32>
    %125 = math.rsqrt %124 : vector<24x1xf32>
    %126 = vector.broadcast %125 : vector<24x1xf32> to vector<24x32xf32>
    %127 = arith.mulf %117, %126 : vector<24x32xf32>
    %128 = vector.broadcast %109 : vector<1x32xf32> to vector<24x32xf32>
    %129 = arith.mulf %127, %128 : vector<24x32xf32>
    %130 = vector.broadcast %111 : vector<1x32xf32> to vector<24x32xf32>
    %131 = arith.addf %129, %130 : vector<24x32xf32>
    %c0_50 = arith.constant 0 : index
    %c0_51 = arith.constant 0 : index
    %c0_52 = arith.constant 0 : index
    %132 = vector.load %arg8[%c0_50, %c0_51, %c0_52] : memref<2x32x64xf32, #tpu.memory_space<vmem>>, vector<1x32x64xf32>
    %133 = vector.shape_cast %132 : vector<1x32x64xf32> to vector<32x64xf32>
    %cst_53 = arith.constant dense<0.000000e+00> : vector<24x64xf32>
    %134 = tpu.matmul %131, %133, %cst_53 {dimension_numbers = #tpu.dot_dimension_numbers<[1], [0], [0], [1], [0, 0, 1, 1], [], []>} : vector<24x32xf32>, vector<32x64xf32>, vector<24x64xf32> -> vector<24x64xf32>
    %c0_54 = arith.constant 0 : index
    %c0_55 = arith.constant 0 : index
    %c0_56 = arith.constant 0 : index
    %135 = vector.load %arg9[%c0_54, %c0_55, %c0_56] : memref<2x1x64xf32, #tpu.memory_space<vmem>>, vector<1x1x64xf32>
    %136 = vector.shape_cast %135 : vector<1x1x64xf32> to vector<1x64xf32>
    %137 = vector.broadcast %136 : vector<1x64xf32> to vector<24x64xf32>
    %138 = arith.addf %134, %137 : vector<24x64xf32>
    %cst_57 = arith.constant 0.000000e+00 : f32
    %139 = vector.broadcast %cst_57 : f32 to vector<24x64xf32>
    %140 = arith.maximumf %138, %139 : vector<24x64xf32>
    %c0_58 = arith.constant 0 : index
    %c0_59 = arith.constant 0 : index
    %c0_60 = arith.constant 0 : index
    %141 = vector.load %arg10[%c0_58, %c0_59, %c0_60] : memref<2x64x32xf32, #tpu.memory_space<vmem>>, vector<1x64x32xf32>
    %142 = vector.shape_cast %141 : vector<1x64x32xf32> to vector<64x32xf32>
    %cst_61 = arith.constant dense<0.000000e+00> : vector<24x32xf32>
    %143 = tpu.matmul %140, %142, %cst_61 {dimension_numbers = #tpu.dot_dimension_numbers<[1], [0], [0], [1], [0, 0, 1, 1], [], []>} : vector<24x64xf32>, vector<64x32xf32>, vector<24x32xf32> -> vector<24x32xf32>
    %c0_62 = arith.constant 0 : index
    %c0_63 = arith.constant 0 : index
    %c0_64 = arith.constant 0 : index
    %144 = vector.load %arg11[%c0_62, %c0_63, %c0_64] : memref<2x1x32xf32, #tpu.memory_space<vmem>>, vector<1x1x32xf32>
    %145 = vector.shape_cast %144 : vector<1x1x32xf32> to vector<1x32xf32>
    %146 = vector.broadcast %145 : vector<1x32xf32> to vector<24x32xf32>
    %147 = arith.addf %143, %146 : vector<24x32xf32>
    %148 = arith.addf %131, %147 : vector<24x32xf32>
    %c0_65 = arith.constant 0 : index
    %c0_66 = arith.constant 0 : index
    %c0_67 = arith.constant 0 : index
    %149 = vector.load %arg12[%c0_65, %c0_66, %c0_67] : memref<2x1x32xf32, #tpu.memory_space<vmem>>, vector<1x1x32xf32>
    %150 = vector.shape_cast %149 : vector<1x1x32xf32> to vector<1x32xf32>
    %c0_68 = arith.constant 0 : index
    %c0_69 = arith.constant 0 : index
    %c0_70 = arith.constant 0 : index
    %151 = vector.load %arg13[%c0_68, %c0_69, %c0_70] : memref<2x1x32xf32, #tpu.memory_space<vmem>>, vector<1x1x32xf32>
    %152 = vector.shape_cast %151 : vector<1x1x32xf32> to vector<1x32xf32>
    %cst_71 = arith.constant dense<0.000000e+00> : vector<24xf32>
    %153 = vector.multi_reduction <add>, %148, %cst_71 [1] : vector<24x32xf32> to vector<24xf32>
    %154 = vector.shape_cast %153 : vector<24xf32> to vector<24x1xf32>
    %cst_72 = arith.constant 3.200000e+01 : f32
    %155 = vector.broadcast %cst_72 : f32 to vector<24x1xf32>
    %156 = arith.divf %154, %155 : vector<24x1xf32>
    %157 = vector.broadcast %156 : vector<24x1xf32> to vector<24x32xf32>
    %158 = arith.subf %148, %157 : vector<24x32xf32>
    %159 = arith.mulf %158, %158 : vector<24x32xf32>
    %cst_73 = arith.constant dense<0.000000e+00> : vector<24xf32>
    %160 = vector.multi_reduction <add>, %159, %cst_73 [1] : vector<24x32xf32> to vector<24xf32>
    %161 = vector.shape_cast %160 : vector<24xf32> to vector<24x1xf32>
    %cst_74 = arith.constant 3.200000e+01 : f32
    %162 = vector.broadcast %cst_74 : f32 to vector<24x1xf32>
    %163 = arith.divf %161, %162 : vector<24x1xf32>
    %cst_75 = arith.constant 9.99999974E-6 : f32
    %164 = vector.broadcast %cst_75 : f32 to vector<24x1xf32>
    %165 = arith.addf %163, %164 : vector<24x1xf32>
    %166 = math.rsqrt %165 : vector<24x1xf32>
    %167 = vector.broadcast %166 : vector<24x1xf32> to vector<24x32xf32>
    %168 = arith.mulf %158, %167 : vector<24x32xf32>
    %169 = vector.broadcast %150 : vector<1x32xf32> to vector<24x32xf32>
    %170 = arith.mulf %168, %169 : vector<24x32xf32>
    %171 = vector.broadcast %152 : vector<1x32xf32> to vector<24x32xf32>
    %172 = arith.addf %170, %171 : vector<24x32xf32>
    %c1 = arith.constant 1 : index
    %c0_76 = arith.constant 0 : index
    %c0_77 = arith.constant 0 : index
    %173 = vector.load %arg2[%c1, %c0_76, %c0_77] : memref<2x32x96xf32, #tpu.memory_space<vmem>>, vector<1x32x96xf32>
    %174 = vector.shape_cast %173 : vector<1x32x96xf32> to vector<32x96xf32>
    %cst_78 = arith.constant dense<0.000000e+00> : vector<24x96xf32>
    %175 = tpu.matmul %172, %174, %cst_78 {dimension_numbers = #tpu.dot_dimension_numbers<[1], [0], [0], [1], [0, 0, 1, 1], [], []>} : vector<24x32xf32>, vector<32x96xf32>, vector<24x96xf32> -> vector<24x96xf32>
    %c1_79 = arith.constant 1 : index
    %c0_80 = arith.constant 0 : index
    %c0_81 = arith.constant 0 : index
    %176 = vector.load %arg3[%c1_79, %c0_80, %c0_81] : memref<2x1x96xf32, #tpu.memory_space<vmem>>, vector<1x1x96xf32>
    %177 = vector.shape_cast %176 : vector<1x1x96xf32> to vector<1x96xf32>
    %178 = vector.broadcast %177 : vector<1x96xf32> to vector<24x96xf32>
    %179 = arith.addf %175, %178 : vector<24x96xf32>
    %180 = vector.extract_strided_slice %179 {offsets = [0, 0], sizes = [24, 32], strides = [1, 1]} : vector<24x96xf32> to vector<24x32xf32>
    %181 = vector.extract_strided_slice %179 {offsets = [0, 32], sizes = [24, 32], strides = [1, 1]} : vector<24x96xf32> to vector<24x32xf32>
    %182 = vector.extract_strided_slice %179 {offsets = [0, 64], sizes = [24, 32], strides = [1, 1]} : vector<24x96xf32> to vector<24x32xf32>
    %183 = vector.extract_strided_slice %180 {offsets = [0, 0], sizes = [24, 8], strides = [1, 1]} : vector<24x32xf32> to vector<24x8xf32>
    %184 = vector.extract_strided_slice %181 {offsets = [0, 0], sizes = [24, 8], strides = [1, 1]} : vector<24x32xf32> to vector<24x8xf32>
    %185 = vector.extract_strided_slice %182 {offsets = [0, 0], sizes = [24, 8], strides = [1, 1]} : vector<24x32xf32> to vector<24x8xf32>
    "tpu.trace_start"() <{level = 10 : i32, message = "qd,kd->qk"}> : () -> ()
    %cst_82 = arith.constant dense<0.000000e+00> : vector<24x24xf32>
    %186 = tpu.matmul %183, %184, %cst_82 {dimension_numbers = #tpu.dot_dimension_numbers<[1], [1], [0], [0], [0, 0, 1, 0], [], []>} : vector<24x8xf32>, vector<24x8xf32>, vector<24x24xf32> -> vector<24x24xf32>
    "tpu.trace_stop"() : () -> ()
    %cst_83 = arith.constant 0.353553385 : f32
    %187 = vector.broadcast %cst_83 : f32 to vector<24x24xf32>
    %188 = arith.mulf %186, %187 : vector<24x24xf32>
    %cst_84 = arith.constant -1.000000e+30 : f32
    %189 = vector.shape_cast %4 : vector<1x24xi1> to vector<1x24xi1>
    %190 = vector.broadcast %189 : vector<1x24xi1> to vector<24x24xi1>
    %191 = vector.broadcast %cst_84 : f32 to vector<24x24xf32>
    %192 = arith.select %190, %188, %191 : vector<24x24xi1>, vector<24x24xf32>
    %cst_85 = arith.constant dense<0xFF800000> : vector<24xf32>
    %193 = vector.multi_reduction <maximumf>, %192, %cst_85 [1] : vector<24x24xf32> to vector<24xf32>
    %194 = vector.shape_cast %193 : vector<24xf32> to vector<24x1xf32>
    %195 = vector.broadcast %194 : vector<24x1xf32> to vector<24x24xf32>
    %196 = arith.subf %192, %195 : vector<24x24xf32>
    %197 = math.exp %196 : vector<24x24xf32>
    %cst_86 = arith.constant dense<0.000000e+00> : vector<24xf32>
    %198 = vector.multi_reduction <add>, %197, %cst_86 [1] : vector<24x24xf32> to vector<24xf32>
    %199 = vector.shape_cast %198 : vector<24xf32> to vector<24x1xf32>
    %200 = tpu.reciprocal %199 {approx = true} : vector<24x1xf32> -> vector<24x1xf32>
    %201 = vector.broadcast %200 : vector<24x1xf32> to vector<24x24xf32>
    %202 = arith.mulf %197, %201 : vector<24x24xf32>
    "tpu.trace_start"() <{level = 10 : i32, message = "qk,kd->qd"}> : () -> ()
    %cst_87 = arith.constant dense<0.000000e+00> : vector<24x8xf32>
    %203 = tpu.matmul %202, %185, %cst_87 {dimension_numbers = #tpu.dot_dimension_numbers<[1], [0], [0], [1], [0, 0, 1, 1], [], []>} : vector<24x24xf32>, vector<24x8xf32>, vector<24x8xf32> -> vector<24x8xf32>
    "tpu.trace_stop"() : () -> ()
    %204 = vector.extract_strided_slice %180 {offsets = [0, 8], sizes = [24, 8], strides = [1, 1]} : vector<24x32xf32> to vector<24x8xf32>
    %205 = vector.extract_strided_slice %181 {offsets = [0, 8], sizes = [24, 8], strides = [1, 1]} : vector<24x32xf32> to vector<24x8xf32>
    %206 = vector.extract_strided_slice %182 {offsets = [0, 8], sizes = [24, 8], strides = [1, 1]} : vector<24x32xf32> to vector<24x8xf32>
    "tpu.trace_start"() <{level = 10 : i32, message = "qd,kd->qk"}> : () -> ()
    %cst_88 = arith.constant dense<0.000000e+00> : vector<24x24xf32>
    %207 = tpu.matmul %204, %205, %cst_88 {dimension_numbers = #tpu.dot_dimension_numbers<[1], [1], [0], [0], [0, 0, 1, 0], [], []>} : vector<24x8xf32>, vector<24x8xf32>, vector<24x24xf32> -> vector<24x24xf32>
    "tpu.trace_stop"() : () -> ()
    %cst_89 = arith.constant 0.353553385 : f32
    %208 = vector.broadcast %cst_89 : f32 to vector<24x24xf32>
    %209 = arith.mulf %207, %208 : vector<24x24xf32>
    %cst_90 = arith.constant -1.000000e+30 : f32
    %210 = vector.shape_cast %4 : vector<1x24xi1> to vector<1x24xi1>
    %211 = vector.broadcast %210 : vector<1x24xi1> to vector<24x24xi1>
    %212 = vector.broadcast %cst_90 : f32 to vector<24x24xf32>
    %213 = arith.select %211, %209, %212 : vector<24x24xi1>, vector<24x24xf32>
    %cst_91 = arith.constant dense<0xFF800000> : vector<24xf32>
    %214 = vector.multi_reduction <maximumf>, %213, %cst_91 [1] : vector<24x24xf32> to vector<24xf32>
    %215 = vector.shape_cast %214 : vector<24xf32> to vector<24x1xf32>
    %216 = vector.broadcast %215 : vector<24x1xf32> to vector<24x24xf32>
    %217 = arith.subf %213, %216 : vector<24x24xf32>
    %218 = math.exp %217 : vector<24x24xf32>
    %cst_92 = arith.constant dense<0.000000e+00> : vector<24xf32>
    %219 = vector.multi_reduction <add>, %218, %cst_92 [1] : vector<24x24xf32> to vector<24xf32>
    %220 = vector.shape_cast %219 : vector<24xf32> to vector<24x1xf32>
    %221 = tpu.reciprocal %220 {approx = true} : vector<24x1xf32> -> vector<24x1xf32>
    %222 = vector.broadcast %221 : vector<24x1xf32> to vector<24x24xf32>
    %223 = arith.mulf %218, %222 : vector<24x24xf32>
    "tpu.trace_start"() <{level = 10 : i32, message = "qk,kd->qd"}> : () -> ()
    %cst_93 = arith.constant dense<0.000000e+00> : vector<24x8xf32>
    %224 = tpu.matmul %223, %206, %cst_93 {dimension_numbers = #tpu.dot_dimension_numbers<[1], [0], [0], [1], [0, 0, 1, 1], [], []>} : vector<24x24xf32>, vector<24x8xf32>, vector<24x8xf32> -> vector<24x8xf32>
    "tpu.trace_stop"() : () -> ()
    %225 = vector.extract_strided_slice %180 {offsets = [0, 16], sizes = [24, 8], strides = [1, 1]} : vector<24x32xf32> to vector<24x8xf32>
    %226 = vector.extract_strided_slice %181 {offsets = [0, 16], sizes = [24, 8], strides = [1, 1]} : vector<24x32xf32> to vector<24x8xf32>
    %227 = vector.extract_strided_slice %182 {offsets = [0, 16], sizes = [24, 8], strides = [1, 1]} : vector<24x32xf32> to vector<24x8xf32>
    "tpu.trace_start"() <{level = 10 : i32, message = "qd,kd->qk"}> : () -> ()
    %cst_94 = arith.constant dense<0.000000e+00> : vector<24x24xf32>
    %228 = tpu.matmul %225, %226, %cst_94 {dimension_numbers = #tpu.dot_dimension_numbers<[1], [1], [0], [0], [0, 0, 1, 0], [], []>} : vector<24x8xf32>, vector<24x8xf32>, vector<24x24xf32> -> vector<24x24xf32>
    "tpu.trace_stop"() : () -> ()
    %cst_95 = arith.constant 0.353553385 : f32
    %229 = vector.broadcast %cst_95 : f32 to vector<24x24xf32>
    %230 = arith.mulf %228, %229 : vector<24x24xf32>
    %cst_96 = arith.constant -1.000000e+30 : f32
    %231 = vector.shape_cast %4 : vector<1x24xi1> to vector<1x24xi1>
    %232 = vector.broadcast %231 : vector<1x24xi1> to vector<24x24xi1>
    %233 = vector.broadcast %cst_96 : f32 to vector<24x24xf32>
    %234 = arith.select %232, %230, %233 : vector<24x24xi1>, vector<24x24xf32>
    %cst_97 = arith.constant dense<0xFF800000> : vector<24xf32>
    %235 = vector.multi_reduction <maximumf>, %234, %cst_97 [1] : vector<24x24xf32> to vector<24xf32>
    %236 = vector.shape_cast %235 : vector<24xf32> to vector<24x1xf32>
    %237 = vector.broadcast %236 : vector<24x1xf32> to vector<24x24xf32>
    %238 = arith.subf %234, %237 : vector<24x24xf32>
    %239 = math.exp %238 : vector<24x24xf32>
    %cst_98 = arith.constant dense<0.000000e+00> : vector<24xf32>
    %240 = vector.multi_reduction <add>, %239, %cst_98 [1] : vector<24x24xf32> to vector<24xf32>
    %241 = vector.shape_cast %240 : vector<24xf32> to vector<24x1xf32>
    %242 = tpu.reciprocal %241 {approx = true} : vector<24x1xf32> -> vector<24x1xf32>
    %243 = vector.broadcast %242 : vector<24x1xf32> to vector<24x24xf32>
    %244 = arith.mulf %239, %243 : vector<24x24xf32>
    "tpu.trace_start"() <{level = 10 : i32, message = "qk,kd->qd"}> : () -> ()
    %cst_99 = arith.constant dense<0.000000e+00> : vector<24x8xf32>
    %245 = tpu.matmul %244, %227, %cst_99 {dimension_numbers = #tpu.dot_dimension_numbers<[1], [0], [0], [1], [0, 0, 1, 1], [], []>} : vector<24x24xf32>, vector<24x8xf32>, vector<24x8xf32> -> vector<24x8xf32>
    "tpu.trace_stop"() : () -> ()
    %246 = vector.extract_strided_slice %180 {offsets = [0, 24], sizes = [24, 8], strides = [1, 1]} : vector<24x32xf32> to vector<24x8xf32>
    %247 = vector.extract_strided_slice %181 {offsets = [0, 24], sizes = [24, 8], strides = [1, 1]} : vector<24x32xf32> to vector<24x8xf32>
    %248 = vector.extract_strided_slice %182 {offsets = [0, 24], sizes = [24, 8], strides = [1, 1]} : vector<24x32xf32> to vector<24x8xf32>
    "tpu.trace_start"() <{level = 10 : i32, message = "qd,kd->qk"}> : () -> ()
    %cst_100 = arith.constant dense<0.000000e+00> : vector<24x24xf32>
    %249 = tpu.matmul %246, %247, %cst_100 {dimension_numbers = #tpu.dot_dimension_numbers<[1], [1], [0], [0], [0, 0, 1, 0], [], []>} : vector<24x8xf32>, vector<24x8xf32>, vector<24x24xf32> -> vector<24x24xf32>
    "tpu.trace_stop"() : () -> ()
    %cst_101 = arith.constant 0.353553385 : f32
    %250 = vector.broadcast %cst_101 : f32 to vector<24x24xf32>
    %251 = arith.mulf %249, %250 : vector<24x24xf32>
    %cst_102 = arith.constant -1.000000e+30 : f32
    %252 = vector.shape_cast %4 : vector<1x24xi1> to vector<1x24xi1>
    %253 = vector.broadcast %252 : vector<1x24xi1> to vector<24x24xi1>
    %254 = vector.broadcast %cst_102 : f32 to vector<24x24xf32>
    %255 = arith.select %253, %251, %254 : vector<24x24xi1>, vector<24x24xf32>
    %cst_103 = arith.constant dense<0xFF800000> : vector<24xf32>
    %256 = vector.multi_reduction <maximumf>, %255, %cst_103 [1] : vector<24x24xf32> to vector<24xf32>
    %257 = vector.shape_cast %256 : vector<24xf32> to vector<24x1xf32>
    %258 = vector.broadcast %257 : vector<24x1xf32> to vector<24x24xf32>
    %259 = arith.subf %255, %258 : vector<24x24xf32>
    %260 = math.exp %259 : vector<24x24xf32>
    %cst_104 = arith.constant dense<0.000000e+00> : vector<24xf32>
    %261 = vector.multi_reduction <add>, %260, %cst_104 [1] : vector<24x24xf32> to vector<24xf32>
    %262 = vector.shape_cast %261 : vector<24xf32> to vector<24x1xf32>
    %263 = tpu.reciprocal %262 {approx = true} : vector<24x1xf32> -> vector<24x1xf32>
    %264 = vector.broadcast %263 : vector<24x1xf32> to vector<24x24xf32>
    %265 = arith.mulf %260, %264 : vector<24x24xf32>
    "tpu.trace_start"() <{level = 10 : i32, message = "qk,kd->qd"}> : () -> ()
    %cst_105 = arith.constant dense<0.000000e+00> : vector<24x8xf32>
    %266 = tpu.matmul %265, %248, %cst_105 {dimension_numbers = #tpu.dot_dimension_numbers<[1], [0], [0], [1], [0, 0, 1, 1], [], []>} : vector<24x24xf32>, vector<24x8xf32>, vector<24x8xf32> -> vector<24x8xf32>
    "tpu.trace_stop"() : () -> ()
    %267 = tpu.concatenate %203, %224, %245, %266 in 1 : vector<24x8xf32>, vector<24x8xf32>, vector<24x8xf32>, vector<24x8xf32> -> vector<24x32xf32>
    %c1_106 = arith.constant 1 : index
    %c0_107 = arith.constant 0 : index
    %c0_108 = arith.constant 0 : index
    %268 = vector.load %arg4[%c1_106, %c0_107, %c0_108] : memref<2x32x32xf32, #tpu.memory_space<vmem>>, vector<1x32x32xf32>
    %269 = vector.shape_cast %268 : vector<1x32x32xf32> to vector<32x32xf32>
    %cst_109 = arith.constant dense<0.000000e+00> : vector<24x32xf32>
    %270 = tpu.matmul %267, %269, %cst_109 {dimension_numbers = #tpu.dot_dimension_numbers<[1], [0], [0], [1], [0, 0, 1, 1], [], []>} : vector<24x32xf32>, vector<32x32xf32>, vector<24x32xf32> -> vector<24x32xf32>
    %c1_110 = arith.constant 1 : index
    %c0_111 = arith.constant 0 : index
    %c0_112 = arith.constant 0 : index
    %271 = vector.load %arg5[%c1_110, %c0_111, %c0_112] : memref<2x1x32xf32, #tpu.memory_space<vmem>>, vector<1x1x32xf32>
    %272 = vector.shape_cast %271 : vector<1x1x32xf32> to vector<1x32xf32>
    %273 = vector.broadcast %272 : vector<1x32xf32> to vector<24x32xf32>
    %274 = arith.addf %270, %273 : vector<24x32xf32>
    %275 = arith.addf %172, %274 : vector<24x32xf32>
    %c1_113 = arith.constant 1 : index
    %c0_114 = arith.constant 0 : index
    %c0_115 = arith.constant 0 : index
    %276 = vector.load %arg6[%c1_113, %c0_114, %c0_115] : memref<2x1x32xf32, #tpu.memory_space<vmem>>, vector<1x1x32xf32>
    %277 = vector.shape_cast %276 : vector<1x1x32xf32> to vector<1x32xf32>
    %c1_116 = arith.constant 1 : index
    %c0_117 = arith.constant 0 : index
    %c0_118 = arith.constant 0 : index
    %278 = vector.load %arg7[%c1_116, %c0_117, %c0_118] : memref<2x1x32xf32, #tpu.memory_space<vmem>>, vector<1x1x32xf32>
    %279 = vector.shape_cast %278 : vector<1x1x32xf32> to vector<1x32xf32>
    %cst_119 = arith.constant dense<0.000000e+00> : vector<24xf32>
    %280 = vector.multi_reduction <add>, %275, %cst_119 [1] : vector<24x32xf32> to vector<24xf32>
    %281 = vector.shape_cast %280 : vector<24xf32> to vector<24x1xf32>
    %cst_120 = arith.constant 3.200000e+01 : f32
    %282 = vector.broadcast %cst_120 : f32 to vector<24x1xf32>
    %283 = arith.divf %281, %282 : vector<24x1xf32>
    %284 = vector.broadcast %283 : vector<24x1xf32> to vector<24x32xf32>
    %285 = arith.subf %275, %284 : vector<24x32xf32>
    %286 = arith.mulf %285, %285 : vector<24x32xf32>
    %cst_121 = arith.constant dense<0.000000e+00> : vector<24xf32>
    %287 = vector.multi_reduction <add>, %286, %cst_121 [1] : vector<24x32xf32> to vector<24xf32>
    %288 = vector.shape_cast %287 : vector<24xf32> to vector<24x1xf32>
    %cst_122 = arith.constant 3.200000e+01 : f32
    %289 = vector.broadcast %cst_122 : f32 to vector<24x1xf32>
    %290 = arith.divf %288, %289 : vector<24x1xf32>
    %cst_123 = arith.constant 9.99999974E-6 : f32
    %291 = vector.broadcast %cst_123 : f32 to vector<24x1xf32>
    %292 = arith.addf %290, %291 : vector<24x1xf32>
    %293 = math.rsqrt %292 : vector<24x1xf32>
    %294 = vector.broadcast %293 : vector<24x1xf32> to vector<24x32xf32>
    %295 = arith.mulf %285, %294 : vector<24x32xf32>
    %296 = vector.broadcast %277 : vector<1x32xf32> to vector<24x32xf32>
    %297 = arith.mulf %295, %296 : vector<24x32xf32>
    %298 = vector.broadcast %279 : vector<1x32xf32> to vector<24x32xf32>
    %299 = arith.addf %297, %298 : vector<24x32xf32>
    %c1_124 = arith.constant 1 : index
    %c0_125 = arith.constant 0 : index
    %c0_126 = arith.constant 0 : index
    %300 = vector.load %arg8[%c1_124, %c0_125, %c0_126] : memref<2x32x64xf32, #tpu.memory_space<vmem>>, vector<1x32x64xf32>
    %301 = vector.shape_cast %300 : vector<1x32x64xf32> to vector<32x64xf32>
    %cst_127 = arith.constant dense<0.000000e+00> : vector<24x64xf32>
    %302 = tpu.matmul %299, %301, %cst_127 {dimension_numbers = #tpu.dot_dimension_numbers<[1], [0], [0], [1], [0, 0, 1, 1], [], []>} : vector<24x32xf32>, vector<32x64xf32>, vector<24x64xf32> -> vector<24x64xf32>
    %c1_128 = arith.constant 1 : index
    %c0_129 = arith.constant 0 : index
    %c0_130 = arith.constant 0 : index
    %303 = vector.load %arg9[%c1_128, %c0_129, %c0_130] : memref<2x1x64xf32, #tpu.memory_space<vmem>>, vector<1x1x64xf32>
    %304 = vector.shape_cast %303 : vector<1x1x64xf32> to vector<1x64xf32>
    %305 = vector.broadcast %304 : vector<1x64xf32> to vector<24x64xf32>
    %306 = arith.addf %302, %305 : vector<24x64xf32>
    %cst_131 = arith.constant 0.000000e+00 : f32
    %307 = vector.broadcast %cst_131 : f32 to vector<24x64xf32>
    %308 = arith.maximumf %306, %307 : vector<24x64xf32>
    %c1_132 = arith.constant 1 : index
    %c0_133 = arith.constant 0 : index
    %c0_134 = arith.constant 0 : index
    %309 = vector.load %arg10[%c1_132, %c0_133, %c0_134] : memref<2x64x32xf32, #tpu.memory_space<vmem>>, vector<1x64x32xf32>
    %310 = vector.shape_cast %309 : vector<1x64x32xf32> to vector<64x32xf32>
    %cst_135 = arith.constant dense<0.000000e+00> : vector<24x32xf32>
    %311 = tpu.matmul %308, %310, %cst_135 {dimension_numbers = #tpu.dot_dimension_numbers<[1], [0], [0], [1], [0, 0, 1, 1], [], []>} : vector<24x64xf32>, vector<64x32xf32>, vector<24x32xf32> -> vector<24x32xf32>
    %c1_136 = arith.constant 1 : index
    %c0_137 = arith.constant 0 : index
    %c0_138 = arith.constant 0 : index
    %312 = vector.load %arg11[%c1_136, %c0_137, %c0_138] : memref<2x1x32xf32, #tpu.memory_space<vmem>>, vector<1x1x32xf32>
    %313 = vector.shape_cast %312 : vector<1x1x32xf32> to vector<1x32xf32>
    %314 = vector.broadcast %313 : vector<1x32xf32> to vector<24x32xf32>
    %315 = arith.addf %311, %314 : vector<24x32xf32>
    %316 = arith.addf %299, %315 : vector<24x32xf32>
    %c1_139 = arith.constant 1 : index
    %c0_140 = arith.constant 0 : index
    %c0_141 = arith.constant 0 : index
    %317 = vector.load %arg12[%c1_139, %c0_140, %c0_141] : memref<2x1x32xf32, #tpu.memory_space<vmem>>, vector<1x1x32xf32>
    %318 = vector.shape_cast %317 : vector<1x1x32xf32> to vector<1x32xf32>
    %c1_142 = arith.constant 1 : index
    %c0_143 = arith.constant 0 : index
    %c0_144 = arith.constant 0 : index
    %319 = vector.load %arg13[%c1_142, %c0_143, %c0_144] : memref<2x1x32xf32, #tpu.memory_space<vmem>>, vector<1x1x32xf32>
    %320 = vector.shape_cast %319 : vector<1x1x32xf32> to vector<1x32xf32>
    %cst_145 = arith.constant dense<0.000000e+00> : vector<24xf32>
    %321 = vector.multi_reduction <add>, %316, %cst_145 [1] : vector<24x32xf32> to vector<24xf32>
    %322 = vector.shape_cast %321 : vector<24xf32> to vector<24x1xf32>
    %cst_146 = arith.constant 3.200000e+01 : f32
    %323 = vector.broadcast %cst_146 : f32 to vector<24x1xf32>
    %324 = arith.divf %322, %323 : vector<24x1xf32>
    %325 = vector.broadcast %324 : vector<24x1xf32> to vector<24x32xf32>
    %326 = arith.subf %316, %325 : vector<24x32xf32>
    %327 = arith.mulf %326, %326 : vector<24x32xf32>
    %cst_147 = arith.constant dense<0.000000e+00> : vector<24xf32>
    %328 = vector.multi_reduction <add>, %327, %cst_147 [1] : vector<24x32xf32> to vector<24xf32>
    %329 = vector.shape_cast %328 : vector<24xf32> to vector<24x1xf32>
    %cst_148 = arith.constant 3.200000e+01 : f32
    %330 = vector.broadcast %cst_148 : f32 to vector<24x1xf32>
    %331 = arith.divf %329, %330 : vector<24x1xf32>
    %cst_149 = arith.constant 9.99999974E-6 : f32
    %332 = vector.broadcast %cst_149 : f32 to vector<24x1xf32>
    %333 = arith.addf %331, %332 : vector<24x1xf32>
    %334 = math.rsqrt %333 : vector<24x1xf32>
    %335 = vector.broadcast %334 : vector<24x1xf32> to vector<24x32xf32>
    %336 = arith.mulf %326, %335 : vector<24x32xf32>
    %337 = vector.broadcast %318 : vector<1x32xf32> to vector<24x32xf32>
    %338 = arith.mulf %336, %337 : vector<24x32xf32>
    %339 = vector.broadcast %320 : vector<1x32xf32> to vector<24x32xf32>
    %340 = arith.addf %338, %339 : vector<24x32xf32>
    %341 = vector.extract_strided_slice %340 {offsets = [0, 0], sizes = [1, 32], strides = [1, 1]} : vector<24x32xf32> to vector<1x32xf32>
    %c0_150 = arith.constant 0 : index
    %c0_151 = arith.constant 0 : index
    %342 = vector.load %arg14[%c0_150, %c0_151] : memref<32x4xf32, #tpu.memory_space<vmem>>, vector<32x4xf32>
    %cst_152 = arith.constant dense<0.000000e+00> : vector<1x4xf32>
    %343 = tpu.matmul %341, %342, %cst_152 {dimension_numbers = #tpu.dot_dimension_numbers<[1], [0], [0], [1], [0, 0, 1, 1], [], []>} : vector<1x32xf32>, vector<32x4xf32>, vector<1x4xf32> -> vector<1x4xf32>
    %c0_153 = arith.constant 0 : index
    %c0_154 = arith.constant 0 : index
    %344 = vector.load %arg15[%c0_153, %c0_154] : memref<1x4xf32, #tpu.memory_space<vmem>>, vector<1x4xf32>
    %345 = arith.addf %343, %344 : vector<1x4xf32>
    %cst_155 = arith.constant dense<0xFF800000> : vector<1xf32>
    %346 = vector.multi_reduction <maximumf>, %345, %cst_155 [1] : vector<1x4xf32> to vector<1xf32>
    %347 = vector.shape_cast %346 : vector<1xf32> to vector<1x1xf32>
    %348 = vector.broadcast %347 : vector<1x1xf32> to vector<1x4xf32>
    %349 = arith.subf %345, %348 : vector<1x4xf32>
    %350 = math.exp %349 : vector<1x4xf32>
    %cst_156 = arith.constant dense<0.000000e+00> : vector<1xf32>
    %351 = vector.multi_reduction <add>, %350, %cst_156 [1] : vector<1x4xf32> to vector<1xf32>
    %352 = vector.shape_cast %351 : vector<1xf32> to vector<1x1xf32>
    %353 = tpu.reciprocal %352 {approx = true} : vector<1x1xf32> -> vector<1x1xf32>
    %354 = vector.broadcast %353 : vector<1x1xf32> to vector<1x4xf32>
    %355 = arith.mulf %350, %354 : vector<1x4xf32>
    %c0_157 = arith.constant 0 : index
    %c0_158 = arith.constant 0 : index
    %356 = vector.load %arg16[%c0_157, %c0_158] : memref<32x128xf32, #tpu.memory_space<vmem>>, vector<32x128xf32>
    %cst_159 = arith.constant dense<0.000000e+00> : vector<1x128xf32>
    %357 = tpu.matmul %341, %356, %cst_159 {dimension_numbers = #tpu.dot_dimension_numbers<[1], [0], [0], [1], [0, 0, 1, 1], [], []>} : vector<1x32xf32>, vector<32x128xf32>, vector<1x128xf32> -> vector<1x128xf32>
    %c0_160 = arith.constant 0 : index
    %c0_161 = arith.constant 0 : index
    %358 = vector.load %arg17[%c0_160, %c0_161] : memref<1x128xf32, #tpu.memory_space<vmem>>, vector<1x128xf32>
    %359 = arith.addf %357, %358 : vector<1x128xf32>
    %360 = vector.extract_strided_slice %355 {offsets = [0, 0], sizes = [1, 1], strides = [1, 1]} : vector<1x4xf32> to vector<1x1xf32>
    %361 = vector.extract_strided_slice %359 {offsets = [0, 0], sizes = [1, 32], strides = [1, 1]} : vector<1x128xf32> to vector<1x32xf32>
    %362 = vector.broadcast %360 : vector<1x1xf32> to vector<1x32xf32>
    %363 = arith.mulf %362, %361 : vector<1x32xf32>
    %364 = vector.extract_strided_slice %355 {offsets = [0, 1], sizes = [1, 1], strides = [1, 1]} : vector<1x4xf32> to vector<1x1xf32>
    %365 = vector.extract_strided_slice %359 {offsets = [0, 32], sizes = [1, 32], strides = [1, 1]} : vector<1x128xf32> to vector<1x32xf32>
    %366 = vector.broadcast %364 : vector<1x1xf32> to vector<1x32xf32>
    %367 = arith.mulf %366, %365 : vector<1x32xf32>
    %368 = arith.addf %363, %367 : vector<1x32xf32>
    %369 = vector.extract_strided_slice %355 {offsets = [0, 2], sizes = [1, 1], strides = [1, 1]} : vector<1x4xf32> to vector<1x1xf32>
    %370 = vector.extract_strided_slice %359 {offsets = [0, 64], sizes = [1, 32], strides = [1, 1]} : vector<1x128xf32> to vector<1x32xf32>
    %371 = vector.broadcast %369 : vector<1x1xf32> to vector<1x32xf32>
    %372 = arith.mulf %371, %370 : vector<1x32xf32>
    %373 = arith.addf %368, %372 : vector<1x32xf32>
    %374 = vector.extract_strided_slice %355 {offsets = [0, 3], sizes = [1, 1], strides = [1, 1]} : vector<1x4xf32> to vector<1x1xf32>
    %375 = vector.extract_strided_slice %359 {offsets = [0, 96], sizes = [1, 32], strides = [1, 1]} : vector<1x128xf32> to vector<1x32xf32>
    %376 = vector.broadcast %374 : vector<1x1xf32> to vector<1x32xf32>
    %377 = arith.mulf %376, %375 : vector<1x32xf32>
    %378 = arith.addf %373, %377 : vector<1x32xf32>
    %379 = vector.shape_cast %378 : vector<1x32xf32> to vector<1x1x32xf32>
    %c0_162 = arith.constant 0 : index
    %c0_163 = arith.constant 0 : index
    %c0_164 = arith.constant 0 : index
    %380 = vector.load %arg18[%c0_162, %c0_163, %c0_164] : memref<1x1x32xf32, #tpu.memory_space<vmem>>, vector<1x1x32xf32>
    tpu.vector_store %arg18[%c0_162, %c0_163, %c0_164], %379 {strides = array<i32>} : memref<1x1x32xf32, #tpu.memory_space<vmem>>, vector<1x1x32xf32>,
    return
  }
  func.func @transform_0(%arg0: i32) -> (i32, i32, i32) {
    %c0_i32 = arith.constant 0 : i32
    %c0_i32_0 = arith.constant 0 : i32
    %c0_i32_1 = arith.constant 0 : i32
    return %arg0, %c0_i32, %c0_i32_0 : i32, i32, i32
  }
  func.func @transform_1(%arg0: i32) -> (i32, i32, i32) {
    %c0_i32 = arith.constant 0 : i32
    %c0_i32_0 = arith.constant 0 : i32
    %c0_i32_1 = arith.constant 0 : i32
    %c0_i32_2 = arith.constant 0 : i32
    return %c0_i32, %c0_i32_0, %c0_i32_1 : i32, i32, i32
  }
  func.func @transform_2(%arg0: i32) -> (i32, i32, i32) {
    %c0_i32 = arith.constant 0 : i32
    %c0_i32_0 = arith.constant 0 : i32
    %c0_i32_1 = arith.constant 0 : i32
    %c0_i32_2 = arith.constant 0 : i32
    return %c0_i32, %c0_i32_0, %c0_i32_1 : i32, i32, i32
  }
  func.func @transform_3(%arg0: i32) -> (i32, i32, i32) {
    %c0_i32 = arith.constant 0 : i32
    %c0_i32_0 = arith.constant 0 : i32
    %c0_i32_1 = arith.constant 0 : i32
    %c0_i32_2 = arith.constant 0 : i32
    return %c0_i32, %c0_i32_0, %c0_i32_1 : i32, i32, i32
  }
  func.func @transform_4(%arg0: i32) -> (i32, i32, i32) {
    %c0_i32 = arith.constant 0 : i32
    %c0_i32_0 = arith.constant 0 : i32
    %c0_i32_1 = arith.constant 0 : i32
    %c0_i32_2 = arith.constant 0 : i32
    return %c0_i32, %c0_i32_0, %c0_i32_1 : i32, i32, i32
  }
  func.func @transform_5(%arg0: i32) -> (i32, i32, i32) {
    %c0_i32 = arith.constant 0 : i32
    %c0_i32_0 = arith.constant 0 : i32
    %c0_i32_1 = arith.constant 0 : i32
    %c0_i32_2 = arith.constant 0 : i32
    return %c0_i32, %c0_i32_0, %c0_i32_1 : i32, i32, i32
  }
  func.func @transform_6(%arg0: i32) -> (i32, i32, i32) {
    %c0_i32 = arith.constant 0 : i32
    %c0_i32_0 = arith.constant 0 : i32
    %c0_i32_1 = arith.constant 0 : i32
    %c0_i32_2 = arith.constant 0 : i32
    return %c0_i32, %c0_i32_0, %c0_i32_1 : i32, i32, i32
  }
  func.func @transform_7(%arg0: i32) -> (i32, i32, i32) {
    %c0_i32 = arith.constant 0 : i32
    %c0_i32_0 = arith.constant 0 : i32
    %c0_i32_1 = arith.constant 0 : i32
    %c0_i32_2 = arith.constant 0 : i32
    return %c0_i32, %c0_i32_0, %c0_i32_1 : i32, i32, i32
  }
  func.func @transform_8(%arg0: i32) -> (i32, i32, i32) {
    %c0_i32 = arith.constant 0 : i32
    %c0_i32_0 = arith.constant 0 : i32
    %c0_i32_1 = arith.constant 0 : i32
    %c0_i32_2 = arith.constant 0 : i32
    return %c0_i32, %c0_i32_0, %c0_i32_1 : i32, i32, i32
  }
  func.func @transform_9(%arg0: i32) -> (i32, i32, i32) {
    %c0_i32 = arith.constant 0 : i32
    %c0_i32_0 = arith.constant 0 : i32
    %c0_i32_1 = arith.constant 0 : i32
    %c0_i32_2 = arith.constant 0 : i32
    return %c0_i32, %c0_i32_0, %c0_i32_1 : i32, i32, i32
  }
  func.func @transform_10(%arg0: i32) -> (i32, i32, i32) {
    %c0_i32 = arith.constant 0 : i32
    %c0_i32_0 = arith.constant 0 : i32
    %c0_i32_1 = arith.constant 0 : i32
    %c0_i32_2 = arith.constant 0 : i32
    return %c0_i32, %c0_i32_0, %c0_i32_1 : i32, i32, i32
  }
  func.func @transform_11(%arg0: i32) -> (i32, i32, i32) {
    %c0_i32 = arith.constant 0 : i32
    %c0_i32_0 = arith.constant 0 : i32
    %c0_i32_1 = arith.constant 0 : i32
    %c0_i32_2 = arith.constant 0 : i32
    return %c0_i32, %c0_i32_0, %c0_i32_1 : i32, i32, i32
  }
  func.func @transform_12(%arg0: i32) -> (i32, i32, i32) {
    %c0_i32 = arith.constant 0 : i32
    %c0_i32_0 = arith.constant 0 : i32
    %c0_i32_1 = arith.constant 0 : i32
    %c0_i32_2 = arith.constant 0 : i32
    return %c0_i32, %c0_i32_0, %c0_i32_1 : i32, i32, i32
  }
  func.func @transform_13(%arg0: i32) -> (i32, i32) {
    %c0_i32 = arith.constant 0 : i32
    %c0_i32_0 = arith.constant 0 : i32
    %c0_i32_1 = arith.constant 0 : i32
    return %c0_i32, %c0_i32_0 : i32, i32
  }
  func.func @transform_14(%arg0: i32) -> (i32, i32) {
    %c0_i32 = arith.constant 0 : i32
    %c0_i32_0 = arith.constant 0 : i32
    %c0_i32_1 = arith.constant 0 : i32
    return %c0_i32, %c0_i32_0 : i32, i32
  }
  func.func @transform_15(%arg0: i32) -> (i32, i32) {
    %c0_i32 = arith.constant 0 : i32
    %c0_i32_0 = arith.constant 0 : i32
    %c0_i32_1 = arith.constant 0 : i32
    return %c0_i32, %c0_i32_0 : i32, i32
  }
  func.func @transform_16(%arg0: i32) -> (i32, i32) {
    %c0_i32 = arith.constant 0 : i32
    %c0_i32_0 = arith.constant 0 : i32
    %c0_i32_1 = arith.constant 0 : i32
    return %c0_i32, %c0_i32_0 : i32, i32
  }
  func.func @transform_17(%arg0: i32) -> (i32, i32, i32) {
    %c0_i32 = arith.constant 0 : i32
    %c0_i32_0 = arith.constant 0 : i32
    %c0_i32_1 = arith.constant 0 : i32
    return %arg0, %c0_i32, %c0_i32_0 : i32, i32, i32
  }
}

</mosaic_0001>

<llo_original>
// kernel: forward.5
$region0: #{forward.5}
  #allocation0 [shape = 'u32[]', space=smem, size = 0x4, offset = 0x4, fixed_abs, tag = 'smem constant byte address 0x4 - core index']
  #allocation1 [shape = 'u32[72,128]{1,0:T(1,128)}', space=vmem, size = 0x9000, scoped, tag = 'internal scratch']
  %s0 = inlined_call_operand.vmem [shape: f32[128,27], index: 0, kind: input, shape index: {}]
  %s1 = inlined_call_operand.vmem [shape: f32[27,16], index: 1, kind: input, shape index: {}]
  %s2 = inlined_call_operand.vmem [shape: f32[1,16], index: 2, kind: input, shape index: {}]
  %s3 = inlined_call_operand.vmem [shape: f32[128,16], index: 3, kind: output, shape index: {}]
  %s4 = sld [smem:[#allocation0]]
  $region22: #{forward.5} parent=0
    _
  %s6 = ssub.s32 1, %s4
  %s7 = scalar_select 0, %s6, %s4
  // Predicated region
  $region2: #{forward.5} parent=0 // pred_check
    _
  $region3: #{forward.5} parent=0 // pred_check_branch
    %9 = sbr.rel (0) target = $region5
  $region4: #{forward.5} parent=0 // pred_region
    _
  $region5: #{forward.5} parent=0 // pred_fallthru
    _
  // Predicated region
  $region6: #{forward.5} parent=0 // pred_check
    _
  $region7: #{forward.5} parent=0 // pred_check_branch
    %11 = sbr.rel (0) target = $region9
  $region8: #{forward.5} parent=0 // pred_region
    _
  $region9: #{forward.5} parent=0 // pred_fallthru
    _
  // Predicated region
  $region10: #{forward.5} parent=0 // pred_check
    _
  $region11: #{forward.5} parent=0 // pred_check_branch
    %13 = sbr.rel (0) target = $region13
  $region12: #{forward.5} parent=0 // pred_region
    _
  $region13: #{forward.5} parent=0 // pred_fallthru
    _
  %v14 = vld [vmem:[%s0] sm:$0xff]
  %v15 = vld [vmem:[%s0 + $0x8] sm:$0xff]
  %v16 = vld [vmem:[%s0 + $0x10] sm:$0xff]
  %v17 = vld [vmem:[%s0 + $0x18] sm:$0xff]
  %v18 = vld [vmem:[%s0 + $0x20] sm:$0xff]
  %v19 = vld [vmem:[%s0 + $0x28] sm:$0xff]
  %v20 = vld [vmem:[%s0 + $0x30] sm:$0xff]
  %v21 = vld [vmem:[%s0 + $0x38] sm:$0xff]
  %v22 = vld [vmem:[%s0 + $0x40] sm:$0xff]
  %v23 = vld [vmem:[%s0 + $0x48] sm:$0xff]
  %v24 = vld [vmem:[%s0 + $0x50] sm:$0xff]
  %v25 = vld [vmem:[%s0 + $0x58] sm:$0xff]
  %v26 = vld [vmem:[%s0 + $0x60] sm:$0xff]
  %v27 = vld [vmem:[%s0 + $0x68] sm:$0xff]
  %v28 = vld [vmem:[%s0 + $0x70] sm:$0xff]
  %v29 = vld [vmem:[%s0 + $0x78] sm:$0xff]
  %v30 = vld [vmem:[%s1] sm:$0xff]
  %v31 = vld [vmem:[%s1 + $0x8] sm:$0xff]
  %v32 = vld [vmem:[%s1 + $0x10] sm:$0xff]
  %v33 = vld [vmem:[%s1 + $0x18] sm:$0x7]
  %v34 = vld [vmem:[%s2] sm:$0x1]
  %v36 = vperm.slane %v34, 0
  %vm38 = vcmask 220160
  %v40 = vsel %vm38, %v14, 0
  %v43 = vsel %vm38, %v15, 0
  %v46 = vsel %vm38, %v16, 0
  %v49 = vsel %vm38, %v17, 0
  %v52 = vsel %vm38, %v18, 0
  %v55 = vsel %vm38, %v19, 0
  %v58 = vsel %vm38, %v20, 0
  %v61 = vsel %vm38, %v21, 0
  %v64 = vsel %vm38, %v22, 0
  %v67 = vsel %vm38, %v23, 0
  %v70 = vsel %vm38, %v24, 0
  %v73 = vsel %vm38, %v25, 0
  %v76 = vsel %vm38, %v26, 0
  %v79 = vsel %vm38, %v27, 0
  %v82 = vsel %vm38, %v28, 0
  %v85 = vsel %vm38, %v29, 0
  %vm87 = vcmask 1042432
  %v89 = vsel %vm87, %v33, 0
  %91 = vmatpush.msra.mxu0 0.0
  %92 = vmatpush.msra.mxu0 0.0
  %93 = vmatpush.msra.mxu0 0.0
  %94 = vmatpush.msra.mxu0 0.0
  %95 = vmatpush.msra.mxu0 0.0
  %96 = vmatpush.msra.mxu0 0.0
  %97 = vmatpush.msra.mxu0 0.0
  %98 = vmatpush.msra.mxu0 0.0
  %99 = vmatpush.msra.mxu0 0.0
  %100 = vmatpush.msra.mxu0 0.0
  %101 = vmatpush.msra.mxu0 0.0
  %102 = vmatpush.msra.mxu0 0.0
  %103 = vmatpush.msra.mxu0 %v89
  %104 = vmatpush.msra.mxu0 %v32
  %105 = vmatpush.msra.mxu0 %v31
  %106 = vmatpush.msra.mxu0 %v30
  %107 = vmatmul.f32.gmra.mxu0 %v40
  %v108 = vpop.f32.mrf.mxu0
  %v109 = vadd.f32 %v36, %v108
  %110 = vmatmul.f32.gmra.mxu0 %v43
  %v111 = vpop.f32.mrf.mxu0
  %v112 = vadd.f32 %v36, %v111
  %113 = vmatmul.f32.gmra.mxu0 %v46
  %v114 = vpop.f32.mrf.mxu0
  %v115 = vadd.f32 %v36, %v114
  %116 = vmatmul.f32.gmra.mxu0 %v49
  %v117 = vpop.f32.mrf.mxu0
  %v118 = vadd.f32 %v36, %v117
  %119 = vmatmul.f32.gmra.mxu0 %v52
  %v120 = vpop.f32.mrf.mxu0
  %v121 = vadd.f32 %v36, %v120
  %122 = vmatmul.f32.gmra.mxu0 %v55
  %v123 = vpop.f32.mrf.mxu0
  %v124 = vadd.f32 %v36, %v123
  %125 = vmatmul.f32.gmra.mxu0 %v58
  %v126 = vpop.f32.mrf.mxu0
  %v127 = vadd.f32 %v36, %v126
  %128 = vmatmul.f32.gmra.mxu0 %v61
  %v129 = vpop.f32.mrf.mxu0
  %v130 = vadd.f32 %v36, %v129
  %131 = vmatmul.f32.gmra.mxu0 %v64
  %v132 = vpop.f32.mrf.mxu0
  %v133 = vadd.f32 %v36, %v132
  %134 = vmatmul.f32.gmra.mxu0 %v67
  %v135 = vpop.f32.mrf.mxu0
  %v136 = vadd.f32 %v36, %v135
  %137 = vmatmul.f32.gmra.mxu0 %v70
  %v138 = vpop.f32.mrf.mxu0
  %v139 = vadd.f32 %v36, %v138
  %140 = vmatmul.f32.gmra.mxu0 %v73
  %v141 = vpop.f32.mrf.mxu0
  %v142 = vadd.f32 %v36, %v141
  %143 = vmatmul.f32.gmra.mxu0 %v76
  %v144 = vpop.f32.mrf.mxu0
  %v145 = vadd.f32 %v36, %v144
  %146 = vmatmul.f32.gmra.mxu0 %v79
  %v147 = vpop.f32.mrf.mxu0
  %v148 = vadd.f32 %v36, %v147
  %149 = vmatmul.f32.gmra.mxu0 %v82
  %v150 = vpop.f32.mrf.mxu0
  %v151 = vadd.f32 %v36, %v150
  %152 = vmatmul.f32.gmra.mxu0 %v85
  %v153 = vpop.f32.mrf.mxu0
  %v154 = vadd.f32 %v36, %v153
  %155 = vdwg.mxu0
  %v156 = vmax.f32 %v109, 0.0
  %v157 = vmax.f32 %v112, 0.0
  %v158 = vmax.f32 %v115, 0.0
  %v159 = vmax.f32 %v118, 0.0
  %v160 = vmax.f32 %v121, 0.0
  %v161 = vmax.f32 %v124, 0.0
  %v162 = vmax.f32 %v127, 0.0
  %v163 = vmax.f32 %v130, 0.0
  %v164 = vmax.f32 %v133, 0.0
  %v165 = vmax.f32 %v136, 0.0
  %v166 = vmax.f32 %v139, 0.0
  %v167 = vmax.f32 %v142, 0.0
  %v168 = vmax.f32 %v145, 0.0
  %v169 = vmax.f32 %v148, 0.0
  %v170 = vmax.f32 %v151, 0.0
  %v171 = vmax.f32 %v154, 0.0
  %vm172 = vcmask 130048
  %173 = vst.msk [vmem:[%s3] sm:$0xff] %vm172, %v156
  %174 = vst.msk [vmem:[%s3 + $0x8] sm:$0xff] %vm172, %v157
  %175 = vst.msk [vmem:[%s3 + $0x10] sm:$0xff] %vm172, %v158
  %176 = vst.msk [vmem:[%s3 + $0x18] sm:$0xff] %vm172, %v159
  %177 = vst.msk [vmem:[%s3 + $0x20] sm:$0xff] %vm172, %v160
  %178 = vst.msk [vmem:[%s3 + $0x28] sm:$0xff] %vm172, %v161
  %179 = vst.msk [vmem:[%s3 + $0x30] sm:$0xff] %vm172, %v162
  %180 = vst.msk [vmem:[%s3 + $0x38] sm:$0xff] %vm172, %v163
  %181 = vst.msk [vmem:[%s3 + $0x40] sm:$0xff] %vm172, %v164
  %182 = vst.msk [vmem:[%s3 + $0x48] sm:$0xff] %vm172, %v165
  %183 = vst.msk [vmem:[%s3 + $0x50] sm:$0xff] %vm172, %v166
  %184 = vst.msk [vmem:[%s3 + $0x58] sm:$0xff] %vm172, %v167
  %185 = vst.msk [vmem:[%s3 + $0x60] sm:$0xff] %vm172, %v168
  %186 = vst.msk [vmem:[%s3 + $0x68] sm:$0xff] %vm172, %v169
  %187 = vst.msk [vmem:[%s3 + $0x70] sm:$0xff] %vm172, %v170
  %188 = vst.msk [vmem:[%s3 + $0x78] sm:$0xff] %vm172, %v171
  // Predicated region
  $region14: #{forward.5} parent=0 // pred_check
    _
  $region15: #{forward.5} parent=0 // pred_check_branch
    %190 = sbr.rel (0) target = $region17
  $region16: #{forward.5} parent=0 // pred_region
    _
  $region17: #{forward.5} parent=0 // pred_fallthru
    _
  // Predicated region
  $region18: #{forward.5} parent=0 // pred_check
    _
  $region19: #{forward.5} parent=0 // pred_check_branch
    %192 = sbr.rel (0) target = $region21
  $region20: #{forward.5} parent=0 // pred_region
    _
  $region21: #{forward.5} parent=0 // pred_fallthru
    _

// kernel: forward.6
$region0: #{forward.6}
  #allocation0 [shape = 'u32[]', space=smem, size = 0x4, offset = 0x4, fixed_abs, tag = 'smem constant byte address 0x4 - core index']
  #allocation1 [shape = 'u32[72,128]{1,0:T(1,128)}', space=vmem, size = 0x9000, scoped, tag = 'internal scratch']
  %s0 = inlined_call_operand.vmem [shape: f32[128,144], index: 0, kind: input, shape index: {}]
  %s1 = inlined_call_operand.vmem [shape: f32[144,16], index: 1, kind: input, shape index: {}]
  %s2 = inlined_call_operand.vmem [shape: f32[1,16], index: 2, kind: input, shape index: {}]
  %s3 = inlined_call_operand.vmem [shape: f32[128,16], index: 3, kind: output, shape index: {}]
  %s4 = sld [smem:[#allocation0]]
  $region22: #{forward.6} parent=0
    _
  %s6 = ssub.s32 1, %s4
  %s7 = scalar_select 0, %s6, %s4
  // Predicated region
  $region2: #{forward.6} parent=0 // pred_check
    _
  $region3: #{forward.6} parent=0 // pred_check_branch
    %9 = sbr.rel (0) target = $region5
  $region4: #{forward.6} parent=0 // pred_region
    _
  $region5: #{forward.6} parent=0 // pred_fallthru
    _
  // Predicated region
  $region6: #{forward.6} parent=0 // pred_check
    _
  $region7: #{forward.6} parent=0 // pred_check_branch
    %11 = sbr.rel (0) target = $region9
  $region8: #{forward.6} parent=0 // pred_region
    _
  $region9: #{forward.6} parent=0 // pred_fallthru
    _
  // Predicated region
  $region10: #{forward.6} parent=0 // pred_check
    _
  $region11: #{forward.6} parent=0 // pred_check_branch
    %13 = sbr.rel (0) target = $region13
  $region12: #{forward.6} parent=0 // pred_region
    _
  $region13: #{forward.6} parent=0 // pred_fallthru
    _
  %v14 = vld [vmem:[%s0] sm:$0xff]
  %v15 = vld [vmem:[%s0 + $0x8] sm:$0xff]
  %v16 = vld [vmem:[%s0 + $0x10] sm:$0xff]
  %v17 = vld [vmem:[%s0 + $0x18] sm:$0xff]
  %v18 = vld [vmem:[%s0 + $0x20] sm:$0xff]
  %v19 = vld [vmem:[%s0 + $0x28] sm:$0xff]
  %v20 = vld [vmem:[%s0 + $0x30] sm:$0xff]
  %v21 = vld [vmem:[%s0 + $0x38] sm:$0xff]
  %v22 = vld [vmem:[%s0 + $0x40] sm:$0xff]
  %v23 = vld [vmem:[%s0 + $0x48] sm:$0xff]
  %v24 = vld [vmem:[%s0 + $0x50] sm:$0xff]
  %v25 = vld [vmem:[%s0 + $0x58] sm:$0xff]
  %v26 = vld [vmem:[%s0 + $0x60] sm:$0xff]
  %v27 = vld [vmem:[%s0 + $0x68] sm:$0xff]
  %v28 = vld [vmem:[%s0 + $0x70] sm:$0xff]
  %v29 = vld [vmem:[%s0 + $0x78] sm:$0xff]
  %v30 = vld [vmem:[%s0 + $0x80] sm:$0xff]
  %v31 = vld [vmem:[%s0 + $0x88] sm:$0xff]
  %v32 = vld [vmem:[%s0 + $0x90] sm:$0xff]
  %v33 = vld [vmem:[%s0 + $0x98] sm:$0xff]
  %v34 = vld [vmem:[%s0 + $0xa0] sm:$0xff]
  %v35 = vld [vmem:[%s0 + $0xa8] sm:$0xff]
  %v36 = vld [vmem:[%s0 + $0xb0] sm:$0xff]
  %v37 = vld [vmem:[%s0 + $0xb8] sm:$0xff]
  %v38 = vld [vmem:[%s0 + $0xc0] sm:$0xff]
  %v39 = vld [vmem:[%s0 + $0xc8] sm:$0xff]
  %v40 = vld [vmem:[%s0 + $0xd0] sm:$0xff]
  %v41 = vld [vmem:[%s0 + $0xd8] sm:$0xff]
  %v42 = vld [vmem:[%s0 + $0xe0] sm:$0xff]
  %v43 = vld [vmem:[%s0 + $0xe8] sm:$0xff]
  %v44 = vld [vmem:[%s0 + $0xf0] sm:$0xff]
  %v45 = vld [vmem:[%s0 + $0xf8] sm:$0xff]
  %v46 = vld [vmem:[%s1] sm:$0xff]
  %v47 = vld [vmem:[%s1 + $0x8] sm:$0xff]
  %v48 = vld [vmem:[%s1 + $0x10] sm:$0xff]
  %v49 = vld [vmem:[%s1 + $0x18] sm:$0xff]
  %v50 = vld [vmem:[%s1 + $0x20] sm:$0xff]
  %v51 = vld [vmem:[%s1 + $0x28] sm:$0xff]
  %v52 = vld [vmem:[%s1 + $0x30] sm:$0xff]
  %v53 = vld [vmem:[%s1 + $0x38] sm:$0xff]
  %v54 = vld [vmem:[%s1 + $0x40] sm:$0xff]
  %v55 = vld [vmem:[%s1 + $0x48] sm:$0xff]
  %v56 = vld [vmem:[%s1 + $0x50] sm:$0xff]
  %v57 = vld [vmem:[%s1 + $0x58] sm:$0xff]
  %v58 = vld [vmem:[%s1 + $0x60] sm:$0xff]
  %v59 = vld [vmem:[%s1 + $0x68] sm:$0xff]
  %v60 = vld [vmem:[%s1 + $0x70] sm:$0xff]
  %v61 = vld [vmem:[%s1 + $0x78] sm:$0xff]
  %v62 = vld [vmem:[%s1 + $0x80] sm:$0xff]
  %v63 = vld [vmem:[%s1 + $0x88] sm:$0xff]
  %v64 = vld [vmem:[%s2] sm:$0x1]
  %v66 = vperm.slane %v64, 0
  %vm68 = vcmask 130048
  %v70 = vsel %vm68, %v15, 0
  %v73 = vsel %vm68, %v17, 0
  %v76 = vsel %vm68, %v19, 0
  %v79 = vsel %vm68, %v21, 0
  %v82 = vsel %vm68, %v23, 0
  %v85 = vsel %vm68, %v25, 0
  %v88 = vsel %vm68, %v27, 0
  %v91 = vsel %vm68, %v29, 0
  %v94 = vsel %vm68, %v31, 0
  %v97 = vsel %vm68, %v33, 0
  %v100 = vsel %vm68, %v35, 0
  %v103 = vsel %vm68, %v37, 0
  %v106 = vsel %vm68, %v39, 0
  %v109 = vsel %vm68, %v41, 0
  %v112 = vsel %vm68, %v43, 0
  %v115 = vsel %vm68, %v45, 0
  %117 = vmatpush.msra.mxu0 %v61
  %118 = vmatpush.msra.mxu0 %v60
  %119 = vmatpush.msra.mxu0 %v59
  %120 = vmatpush.msra.mxu0 %v58
  %121 = vmatpush.msra.mxu0 %v57
  %122 = vmatpush.msra.mxu0 %v56
  %123 = vmatpush.msra.mxu0 %v55
  %124 = vmatpush.msra.mxu0 %v54
  %125 = vmatpush.msra.mxu0 %v53
  %126 = vmatpush.msra.mxu0 %v52
  %127 = vmatpush.msra.mxu0 %v51
  %128 = vmatpush.msra.mxu0 %v50
  %129 = vmatpush.msra.mxu0 %v49
  %130 = vmatpush.msra.mxu0 %v48
  %131 = vmatpush.msra.mxu0 %v47
  %132 = vmatpush.msra.mxu0 %v46
  %133 = vmatmul.f32.gmra.mxu0 %v14
  %v134 = vpop.f32.mrf.mxu0
  %v135 = vadd.f32 %v66, %v134
  %136 = vmatmul.f32.gmra.mxu0 %v16
  %v137 = vpop.f32.mrf.mxu0
  %v138 = vadd.f32 %v66, %v137
  %139 = vmatmul.f32.gmra.mxu0 %v18
  %v140 = vpop.f32.mrf.mxu0
  %v141 = vadd.f32 %v66, %v140
  %142 = vmatmul.f32.gmra.mxu0 %v20
  %v143 = vpop.f32.mrf.mxu0
  %v144 = vadd.f32 %v66, %v143
  %145 = vmatmul.f32.gmra.mxu0 %v22
  %v146 = vpop.f32.mrf.mxu0
  %v147 = vadd.f32 %v66, %v146
  %148 = vmatmul.f32.gmra.mxu0 %v24
  %v149 = vpop.f32.mrf.mxu0
  %v150 = vadd.f32 %v66, %v149
  %151 = vmatmul.f32.gmra.mxu0 %v26
  %v152 = vpop.f32.mrf.mxu0
  %v153 = vadd.f32 %v66, %v152
  %154 = vmatmul.f32.gmra.mxu0 %v28
  %v155 = vpop.f32.mrf.mxu0
  %v156 = vadd.f32 %v66, %v155
  %157 = vmatmul.f32.gmra.mxu0 %v30
  %v158 = vpop.f32.mrf.mxu0
  %v159 = vadd.f32 %v66, %v158
  %160 = vmatmul.f32.gmra.mxu0 %v32
  %v161 = vpop.f32.mrf.mxu0
  %v162 = vadd.f32 %v66, %v161
  %163 = vmatmul.f32.gmra.mxu0 %v34
  %v164 = vpop.f32.mrf.mxu0
  %v165 = vadd.f32 %v66, %v164
  %166 = vmatmul.f32.gmra.mxu0 %v36
  %v167 = vpop.f32.mrf.mxu0
  %v168 = vadd.f32 %v66, %v167
  %169 = vmatmul.f32.gmra.mxu0 %v38
  %v170 = vpop.f32.mrf.mxu0
  %v171 = vadd.f32 %v66, %v170
  %172 = vmatmul.f32.gmra.mxu0 %v40
  %v173 = vpop.f32.mrf.mxu0
  %v174 = vadd.f32 %v66, %v173
  %175 = vmatmul.f32.gmra.mxu0 %v42
  %v176 = vpop.f32.mrf.mxu0
  %v177 = vadd.f32 %v66, %v176
  %178 = vmatmul.f32.gmra.mxu0 %v44
  %v179 = vpop.f32.mrf.mxu0
  %v180 = vadd.f32 %v66, %v179
  %181 = vdwg.mxu0
  %182 = vmatpush.msra.mxu0 0.0
  %183 = vmatpush.msra.mxu0 0.0
  %184 = vmatpush.msra.mxu0 0.0
  %185 = vmatpush.msra.mxu0 0.0
  %186 = vmatpush.msra.mxu0 0.0
  %187 = vmatpush.msra.mxu0 0.0
  %188 = vmatpush.msra.mxu0 0.0
  %189 = vmatpush.msra.mxu0 0.0
  %190 = vmatpush.msra.mxu0 0.0
  %191 = vmatpush.msra.mxu0 0.0
  %192 = vmatpush.msra.mxu0 0.0
  %193 = vmatpush.msra.mxu0 0.0
  %194 = vmatpush.msra.mxu0 0.0
  %195 = vmatpush.msra.mxu0 0.0
  %196 = vmatpush.msra.mxu0 %v63
  %197 = vmatpush.msra.mxu0 %v62
  %198 = vmatmul.f32.gmra.mxu0 %v70
  %v199 = vpop.f32.mrf.mxu0
  %v200 = vadd.f32 %v135, %v199
  %201 = vmatmul.f32.gmra.mxu0 %v73
  %v202 = vpop.f32.mrf.mxu0
  %v203 = vadd.f32 %v138, %v202
  %204 = vmatmul.f32.gmra.mxu0 %v76
  %v205 = vpop.f32.mrf.mxu0
  %v206 = vadd.f32 %v141, %v205
  %207 = vmatmul.f32.gmra.mxu0 %v79
  %v208 = vpop.f32.mrf.mxu0
  %v209 = vadd.f32 %v144, %v208
  %210 = vmatmul.f32.gmra.mxu0 %v82
  %v211 = vpop.f32.mrf.mxu0
  %v212 = vadd.f32 %v147, %v211
  %213 = vmatmul.f32.gmra.mxu0 %v85
  %v214 = vpop.f32.mrf.mxu0
  %v215 = vadd.f32 %v150, %v214
  %216 = vmatmul.f32.gmra.mxu0 %v88
  %v217 = vpop.f32.mrf.mxu0
  %v218 = vadd.f32 %v153, %v217
  %219 = vmatmul.f32.gmra.mxu0 %v91
  %v220 = vpop.f32.mrf.mxu0
  %v221 = vadd.f32 %v156, %v220
  %222 = vmatmul.f32.gmra.mxu0 %v94
  %v223 = vpop.f32.mrf.mxu0
  %v224 = vadd.f32 %v159, %v223
  %225 = vmatmul.f32.gmra.mxu0 %v97
  %v226 = vpop.f32.mrf.mxu0
  %v227 = vadd.f32 %v162, %v226
  %228 = vmatmul.f32.gmra.mxu0 %v100
  %v229 = vpop.f32.mrf.mxu0
  %v230 = vadd.f32 %v165, %v229
  %231 = vmatmul.f32.gmra.mxu0 %v103
  %v232 = vpop.f32.mrf.mxu0
  %v233 = vadd.f32 %v168, %v232
  %234 = vmatmul.f32.gmra.mxu0 %v106
  %v235 = vpop.f32.mrf.mxu0
  %v236 = vadd.f32 %v171, %v235
  %237 = vmatmul.f32.gmra.mxu0 %v109
  %v238 = vpop.f32.mrf.mxu0
  %v239 = vadd.f32 %v174, %v238
  %240 = vmatmul.f32.gmra.mxu0 %v112
  %v241 = vpop.f32.mrf.mxu0
  %v242 = vadd.f32 %v177, %v241
  %243 = vmatmul.f32.gmra.mxu0 %v115
  %v244 = vpop.f32.mrf.mxu0
  %v245 = vadd.f32 %v180, %v244
  %246 = vdwg.mxu0
  %v247 = vmax.f32 %v200, 0.0
  %v248 = vmax.f32 %v203, 0.0
  %v249 = vmax.f32 %v206, 0.0
  %v250 = vmax.f32 %v209, 0.0
  %v251 = vmax.f32 %v212, 0.0
  %v252 = vmax.f32 %v215, 0.0
  %v253 = vmax.f32 %v218, 0.0
  %v254 = vmax.f32 %v221, 0.0
  %v255 = vmax.f32 %v224, 0.0
  %v256 = vmax.f32 %v227, 0.0
  %v257 = vmax.f32 %v230, 0.0
  %v258 = vmax.f32 %v233, 0.0
  %v259 = vmax.f32 %v236, 0.0
  %v260 = vmax.f32 %v239, 0.0
  %v261 = vmax.f32 %v242, 0.0
  %v262 = vmax.f32 %v245, 0.0
  %263 = vst.msk [vmem:[%s3] sm:$0xff] %vm68, %v247
  %264 = vst.msk [vmem:[%s3 + $0x8] sm:$0xff] %vm68, %v248
  %265 = vst.msk [vmem:[%s3 + $0x10] sm:$0xff] %vm68, %v249
  %266 = vst.msk [vmem:[%s3 + $0x18] sm:$0xff] %vm68, %v250
  %267 = vst.msk [vmem:[%s3 + $0x20] sm:$0xff] %vm68, %v251
  %268 = vst.msk [vmem:[%s3 + $0x28] sm:$0xff] %vm68, %v252
  %269 = vst.msk [vmem:[%s3 + $0x30] sm:$0xff] %vm68, %v253
  %270 = vst.msk [vmem:[%s3 + $0x38] sm:$0xff] %vm68, %v254
  %271 = vst.msk [vmem:[%s3 + $0x40] sm:$0xff] %vm68, %v255
  %272 = vst.msk [vmem:[%s3 + $0x48] sm:$0xff] %vm68, %v256
  %273 = vst.msk [vmem:[%s3 + $0x50] sm:$0xff] %vm68, %v257
  %274 = vst.msk [vmem:[%s3 + $0x58] sm:$0xff] %vm68, %v258
  %275 = vst.msk [vmem:[%s3 + $0x60] sm:$0xff] %vm68, %v259
  %276 = vst.msk [vmem:[%s3 + $0x68] sm:$0xff] %vm68, %v260
  %277 = vst.msk [vmem:[%s3 + $0x70] sm:$0xff] %vm68, %v261
  %278 = vst.msk [vmem:[%s3 + $0x78] sm:$0xff] %vm68, %v262
  // Predicated region
  $region14: #{forward.6} parent=0 // pred_check
    _
  $region15: #{forward.6} parent=0 // pred_check_branch
    %280 = sbr.rel (0) target = $region17
  $region16: #{forward.6} parent=0 // pred_region
    _
  $region17: #{forward.6} parent=0 // pred_fallthru
    _
  // Predicated region
  $region18: #{forward.6} parent=0 // pred_check
    _
  $region19: #{forward.6} parent=0 // pred_check_branch
    %282 = sbr.rel (0) target = $region21
  $region20: #{forward.6} parent=0 // pred_region
    _
  $region21: #{forward.6} parent=0 // pred_fallthru
    _

// kernel: forward.7
$region0: #{forward.7}
  #allocation0 [shape = 'u32[]', space=smem, size = 0x4, offset = 0x4, fixed_abs, tag = 'smem constant byte address 0x4 - core index']
  #allocation1 [shape = 'u32[72,128]{1,0:T(1,128)}', space=vmem, size = 0x9000, scoped, tag = 'internal scratch']
  %s0 = inlined_call_operand.vmem [shape: f32[128,144], index: 0, kind: input, shape index: {}]
  %s1 = inlined_call_operand.vmem [shape: f32[144,16], index: 1, kind: input, shape index: {}]
  %s2 = inlined_call_operand.vmem [shape: f32[1,16], index: 2, kind: input, shape index: {}]
  %s3 = inlined_call_operand.vmem [shape: f32[128,16], index: 3, kind: input, shape index: {}]
  %s4 = inlined_call_operand.vmem [shape: f32[128,16], index: 4, kind: output, shape index: {}]
  %s5 = sld [smem:[#allocation0]]
  $region26: #{forward.7} parent=0
    _
  %s7 = ssub.s32 1, %s5
  %s8 = scalar_select 0, %s7, %s5
  // Predicated region
  $region2: #{forward.7} parent=0 // pred_check
    _
  $region3: #{forward.7} parent=0 // pred_check_branch
    %10 = sbr.rel (0) target = $region5
  $region4: #{forward.7} parent=0 // pred_region
    _
  $region5: #{forward.7} parent=0 // pred_fallthru
    _
  // Predicated region
  $region6: #{forward.7} parent=0 // pred_check
    _
  $region7: #{forward.7} parent=0 // pred_check_branch
    %12 = sbr.rel (0) target = $region9
  $region8: #{forward.7} parent=0 // pred_region
    _
  $region9: #{forward.7} parent=0 // pred_fallthru
    _
  // Predicated region
  $region10: #{forward.7} parent=0 // pred_check
    _
  $region11: #{forward.7} parent=0 // pred_check_branch
    %14 = sbr.rel (0) target = $region13
  $region12: #{forward.7} parent=0 // pred_region
    _
  $region13: #{forward.7} parent=0 // pred_fallthru
    _
  // Predicated region
  $region14: #{forward.7} parent=0 // pred_check
    _
  $region15: #{forward.7} parent=0 // pred_check_branch
    %16 = sbr.rel (0) target = $region17
  $region16: #{forward.7} parent=0 // pred_region
    _
  $region17: #{forward.7} parent=0 // pred_fallthru
    _
  %v17 = vld [vmem:[%s0] sm:$0xff]
  %v18 = vld [vmem:[%s0 + $0x8] sm:$0xff]
  %v19 = vld [vmem:[%s0 + $0x10] sm:$0xff]
  %v20 = vld [vmem:[%s0 + $0x18] sm:$0xff]
  %v21 = vld [vmem:[%s0 + $0x20] sm:$0xff]
  %v22 = vld [vmem:[%s0 + $0x28] sm:$0xff]
  %v23 = vld [vmem:[%s0 + $0x30] sm:$0xff]
  %v24 = vld [vmem:[%s0 + $0x38] sm:$0xff]
  %v25 = vld [vmem:[%s0 + $0x40] sm:$0xff]
  %v26 = vld [vmem:[%s0 + $0x48] sm:$0xff]
  %v27 = vld [vmem:[%s0 + $0x50] sm:$0xff]
  %v28 = vld [vmem:[%s0 + $0x58] sm:$0xff]
  %v29 = vld [vmem:[%s0 + $0x60] sm:$0xff]
  %v30 = vld [vmem:[%s0 + $0x68] sm:$0xff]
  %v31 = vld [vmem:[%s0 + $0x70] sm:$0xff]
  %v32 = vld [vmem:[%s0 + $0x78] sm:$0xff]
  %v33 = vld [vmem:[%s0 + $0x80] sm:$0xff]
  %v34 = vld [vmem:[%s0 + $0x88] sm:$0xff]
  %v35 = vld [vmem:[%s0 + $0x90] sm:$0xff]
  %v36 = vld [vmem:[%s0 + $0x98] sm:$0xff]
  %v37 = vld [vmem:[%s0 + $0xa0] sm:$0xff]
  %v38 = vld [vmem:[%s0 + $0xa8] sm:$0xff]
  %v39 = vld [vmem:[%s0 + $0xb0] sm:$0xff]
  %v40 = vld [vmem:[%s0 + $0xb8] sm:$0xff]
  %v41 = vld [vmem:[%s0 + $0xc0] sm:$0xff]
  %v42 = vld [vmem:[%s0 + $0xc8] sm:$0xff]
  %v43 = vld [vmem:[%s0 + $0xd0] sm:$0xff]
  %v44 = vld [vmem:[%s0 + $0xd8] sm:$0xff]
  %v45 = vld [vmem:[%s0 + $0xe0] sm:$0xff]
  %v46 = vld [vmem:[%s0 + $0xe8] sm:$0xff]
  %v47 = vld [vmem:[%s0 + $0xf0] sm:$0xff]
  %v48 = vld [vmem:[%s0 + $0xf8] sm:$0xff]
  %v49 = vld [vmem:[%s1] sm:$0xff]
  %v50 = vld [vmem:[%s1 + $0x8] sm:$0xff]
  %v51 = vld [vmem:[%s1 + $0x10] sm:$0xff]
  %v52 = vld [vmem:[%s1 + $0x18] sm:$0xff]
  %v53 = vld [vmem:[%s1 + $0x20] sm:$0xff]
  %v54 = vld [vmem:[%s1 + $0x28] sm:$0xff]
  %v55 = vld [vmem:[%s1 + $0x30] sm:$0xff]
  %v56 = vld [vmem:[%s1 + $0x38] sm:$0xff]
  %v57 = vld [vmem:[%s1 + $0x40] sm:$0xff]
  %v58 = vld [vmem:[%s1 + $0x48] sm:$0xff]
  %v59 = vld [vmem:[%s1 + $0x50] sm:$0xff]
  %v60 = vld [vmem:[%s1 + $0x58] sm:$0xff]
  %v61 = vld [vmem:[%s1 + $0x60] sm:$0xff]
  %v62 = vld [vmem:[%s1 + $0x68] sm:$0xff]
  %v63 = vld [vmem:[%s1 + $0x70] sm:$0xff]
  %v64 = vld [vmem:[%s1 + $0x78] sm:$0xff]
  %v65 = vld [vmem:[%s1 + $0x80] sm:$0xff]
  %v66 = vld [vmem:[%s1 + $0x88] sm:$0xff]
  %v67 = vld [vmem:[%s2] sm:$0x1]
  %v69 = vperm.slane %v67, 0
  %vm71 = vcmask 130048
  %v73 = vsel %vm71, %v18, 0
  %v76 = vsel %vm71, %v20, 0
  %v79 = vsel %vm71, %v22, 0
  %v82 = vsel %vm71, %v24, 0
  %v85 = vsel %vm71, %v26, 0
  %v88 = vsel %vm71, %v28, 0
  %v91 = vsel %vm71, %v30, 0
  %v94 = vsel %vm71, %v32, 0
  %v97 = vsel %vm71, %v34, 0
  %v100 = vsel %vm71, %v36, 0
  %v103 = vsel %vm71, %v38, 0
  %v106 = vsel %vm71, %v40, 0
  %v109 = vsel %vm71, %v42, 0
  %v112 = vsel %vm71, %v44, 0
  %v115 = vsel %vm71, %v46, 0
  %v118 = vsel %vm71, %v48, 0
  %120 = vmatpush.msra.mxu0 %v64
  %121 = vmatpush.msra.mxu0 %v63
  %122 = vmatpush.msra.mxu0 %v62
  %123 = vmatpush.msra.mxu0 %v61
  %124 = vmatpush.msra.mxu0 %v60
  %125 = vmatpush.msra.mxu0 %v59
  %126 = vmatpush.msra.mxu0 %v58
  %127 = vmatpush.msra.mxu0 %v57
  %128 = vmatpush.msra.mxu0 %v56
  %129 = vmatpush.msra.mxu0 %v55
  %130 = vmatpush.msra.mxu0 %v54
  %131 = vmatpush.msra.mxu0 %v53
  %132 = vmatpush.msra.mxu0 %v52
  %133 = vmatpush.msra.mxu0 %v51
  %134 = vmatpush.msra.mxu0 %v50
  %135 = vmatpush.msra.mxu0 %v49
  %136 = vmatmul.f32.gmra.mxu0 %v17
  %v137 = vpop.f32.mrf.mxu0
  %v138 = vadd.f32 %v69, %v137
  %139 = vmatmul.f32.gmra.mxu0 %v19
  %v140 = vpop.f32.mrf.mxu0
  %v141 = vadd.f32 %v69, %v140
  %142 = vmatmul.f32.gmra.mxu0 %v21
  %v143 = vpop.f32.mrf.mxu0
  %v144 = vadd.f32 %v69, %v143
  %145 = vmatmul.f32.gmra.mxu0 %v23
  %v146 = vpop.f32.mrf.mxu0
  %v147 = vadd.f32 %v69, %v146
  %148 = vmatmul.f32.gmra.mxu0 %v25
  %v149 = vpop.f32.mrf.mxu0
  %v150 = vadd.f32 %v69, %v149
  %151 = vmatmul.f32.gmra.mxu0 %v27
  %v152 = vpop.f32.mrf.mxu0
  %v153 = vadd.f32 %v69, %v152
  %154 = vmatmul.f32.gmra.mxu0 %v29
  %v155 = vpop.f32.mrf.mxu0
  %v156 = vadd.f32 %v69, %v155
  %157 = vmatmul.f32.gmra.mxu0 %v31
  %v158 = vpop.f32.mrf.mxu0
  %v159 = vadd.f32 %v69, %v158
  %160 = vmatmul.f32.gmra.mxu0 %v33
  %v161 = vpop.f32.mrf.mxu0
  %v162 = vadd.f32 %v69, %v161
  %163 = vmatmul.f32.gmra.mxu0 %v35
  %v164 = vpop.f32.mrf.mxu0
  %v165 = vadd.f32 %v69, %v164
  %166 = vmatmul.f32.gmra.mxu0 %v37
  %v167 = vpop.f32.mrf.mxu0
  %v168 = vadd.f32 %v69, %v167
  %169 = vmatmul.f32.gmra.mxu0 %v39
  %v170 = vpop.f32.mrf.mxu0
  %v171 = vadd.f32 %v69, %v170
  %172 = vmatmul.f32.gmra.mxu0 %v41
  %v173 = vpop.f32.mrf.mxu0
  %v174 = vadd.f32 %v69, %v173
  %175 = vmatmul.f32.gmra.mxu0 %v43
  %v176 = vpop.f32.mrf.mxu0
  %v177 = vadd.f32 %v69, %v176
  %178 = vmatmul.f32.gmra.mxu0 %v45
  %v179 = vpop.f32.mrf.mxu0
  %v180 = vadd.f32 %v69, %v179
  %181 = vmatmul.f32.gmra.mxu0 %v47
  %v182 = vpop.f32.mrf.mxu0
  %v183 = vadd.f32 %v69, %v182
  %184 = vdwg.mxu0
  %185 = vmatpush.msra.mxu0 0.0
  %186 = vmatpush.msra.mxu0 0.0
  %187 = vmatpush.msra.mxu0 0.0
  %188 = vmatpush.msra.mxu0 0.0
  %189 = vmatpush.msra.mxu0 0.0
  %190 = vmatpush.msra.mxu0 0.0
  %191 = vmatpush.msra.mxu0 0.0
  %192 = vmatpush.msra.mxu0 0.0
  %193 = vmatpush.msra.mxu0 0.0
  %194 = vmatpush.msra.mxu0 0.0
  %195 = vmatpush.msra.mxu0 0.0
  %196 = vmatpush.msra.mxu0 0.0
  %197 = vmatpush.msra.mxu0 0.0
  %198 = vmatpush.msra.mxu0 0.0
  %199 = vmatpush.msra.mxu0 %v66
  %200 = vmatpush.msra.mxu0 %v65
  %201 = vmatmul.f32.gmra.mxu0 %v73
  %v202 = vpop.f32.mrf.mxu0
  %v203 = vadd.f32 %v138, %v202
  %204 = vmatmul.f32.gmra.mxu0 %v76
  %v205 = vpop.f32.mrf.mxu0
  %v206 = vadd.f32 %v141, %v205
  %207 = vmatmul.f32.gmra.mxu0 %v79
  %v208 = vpop.f32.mrf.mxu0
  %v209 = vadd.f32 %v144, %v208
  %210 = vmatmul.f32.gmra.mxu0 %v82
  %v211 = vpop.f32.mrf.mxu0
  %v212 = vadd.f32 %v147, %v211
  %213 = vmatmul.f32.gmra.mxu0 %v85
  %v214 = vpop.f32.mrf.mxu0
  %v215 = vadd.f32 %v150, %v214
  %216 = vmatmul.f32.gmra.mxu0 %v88
  %v217 = vpop.f32.mrf.mxu0
  %v218 = vadd.f32 %v153, %v217
  %219 = vmatmul.f32.gmra.mxu0 %v91
  %v220 = vpop.f32.mrf.mxu0
  %v221 = vadd.f32 %v156, %v220
  %222 = vmatmul.f32.gmra.mxu0 %v94
  %v223 = vpop.f32.mrf.mxu0
  %v224 = vadd.f32 %v159, %v223
  %225 = vmatmul.f32.gmra.mxu0 %v97
  %v226 = vpop.f32.mrf.mxu0
  %v227 = vadd.f32 %v162, %v226
  %228 = vmatmul.f32.gmra.mxu0 %v100
  %v229 = vpop.f32.mrf.mxu0
  %v230 = vadd.f32 %v165, %v229
  %231 = vmatmul.f32.gmra.mxu0 %v103
  %v232 = vpop.f32.mrf.mxu0
  %v233 = vadd.f32 %v168, %v232
  %234 = vmatmul.f32.gmra.mxu0 %v106
  %v235 = vpop.f32.mrf.mxu0
  %v236 = vadd.f32 %v171, %v235
  %237 = vmatmul.f32.gmra.mxu0 %v109
  %v238 = vpop.f32.mrf.mxu0
  %v239 = vadd.f32 %v174, %v238
  %240 = vmatmul.f32.gmra.mxu0 %v112
  %v241 = vpop.f32.mrf.mxu0
  %v242 = vadd.f32 %v177, %v241
  %243 = vmatmul.f32.gmra.mxu0 %v115
  %v244 = vpop.f32.mrf.mxu0
  %v245 = vadd.f32 %v180, %v244
  %246 = vmatmul.f32.gmra.mxu0 %v118
  %v247 = vpop.f32.mrf.mxu0
  %v248 = vadd.f32 %v183, %v247
  %249 = vdwg.mxu0
  %v250 = vld [vmem:[%s3] sm:$0xff]
  %v251 = vld [vmem:[%s3 + $0x8] sm:$0xff]
  %v252 = vld [vmem:[%s3 + $0x10] sm:$0xff]
  %v253 = vld [vmem:[%s3 + $0x18] sm:$0xff]
  %v254 = vld [vmem:[%s3 + $0x20] sm:$0xff]
  %v255 = vld [vmem:[%s3 + $0x28] sm:$0xff]
  %v256 = vld [vmem:[%s3 + $0x30] sm:$0xff]
  %v257 = vld [vmem:[%s3 + $0x38] sm:$0xff]
  %v258 = vld [vmem:[%s3 + $0x40] sm:$0xff]
  %v259 = vld [vmem:[%s3 + $0x48] sm:$0xff]
  %v260 = vld [vmem:[%s3 + $0x50] sm:$0xff]
  %v261 = vld [vmem:[%s3 + $0x58] sm:$0xff]
  %v262 = vld [vmem:[%s3 + $0x60] sm:$0xff]
  %v263 = vld [vmem:[%s3 + $0x68] sm:$0xff]
  %v264 = vld [vmem:[%s3 + $0x70] sm:$0xff]
  %v265 = vld [vmem:[%s3 + $0x78] sm:$0xff]
  %v266 = vadd.f32 %v203, %v250
  %v267 = vadd.f32 %v206, %v251
  %v268 = vadd.f32 %v209, %v252
  %v269 = vadd.f32 %v212, %v253
  %v270 = vadd.f32 %v215, %v254
  %v271 = vadd.f32 %v218, %v255
  %v272 = vadd.f32 %v221, %v256
  %v273 = vadd.f32 %v224, %v257
  %v274 = vadd.f32 %v227, %v258
  %v275 = vadd.f32 %v230, %v259
  %v276 = vadd.f32 %v233, %v260
  %v277 = vadd.f32 %v236, %v261
  %v278 = vadd.f32 %v239, %v262
  %v279 = vadd.f32 %v242, %v263
  %v280 = vadd.f32 %v245, %v264
  %v281 = vadd.f32 %v248, %v265
  %v282 = vmax.f32 %v266, 0.0
  %v283 = vmax.f32 %v267, 0.0
  %v284 = vmax.f32 %v268, 0.0
  %v285 = vmax.f32 %v269, 0.0
  %v286 = vmax.f32 %v270, 0.0
  %v287 = vmax.f32 %v271, 0.0
  %v288 = vmax.f32 %v272, 0.0
  %v289 = vmax.f32 %v273, 0.0
  %v290 = vmax.f32 %v274, 0.0
  %v291 = vmax.f32 %v275, 0.0
  %v292 = vmax.f32 %v276, 0.0
  %v293 = vmax.f32 %v277, 0.0
  %v294 = vmax.f32 %v278, 0.0
  %v295 = vmax.f32 %v279, 0.0
  %v296 = vmax.f32 %v280, 0.0
  %v297 = vmax.f32 %v281, 0.0
  %298 = vst.msk [vmem:[%s4] sm:$0xff] %vm71, %v282
  %299 = vst.msk [vmem:[%s4 + $0x8] sm:$0xff] %vm71, %v283
  %300 = vst.msk [vmem:[%s4 + $0x10] sm:$0xff] %vm71, %v284
  %301 = vst.msk [vmem:[%s4 + $0x18] sm:$0xff] %vm71, %v285
  %302 = vst.msk [vmem:[%s4 + $0x20] sm:$0xff] %vm71, %v286
  %303 = vst.msk [vmem:[%s4 + $0x28] sm:$0xff] %vm71, %v287
  %304 = vst.msk [vmem:[%s4 + $0x30] sm:$0xff] %vm71, %v288
  %305 = vst.msk [vmem:[%s4 + $0x38] sm:$0xff] %vm71, %v289
  %306 = vst.msk [vmem:[%s4 + $0x40] sm:$0xff] %vm71, %v290
  %307 = vst.msk [vmem:[%s4 + $0x48] sm:$0xff] %vm71, %v291
  %308 = vst.msk [vmem:[%s4 + $0x50] sm:$0xff] %vm71, %v292
  %309 = vst.msk [vmem:[%s4 + $0x58] sm:$0xff] %vm71, %v293
  %310 = vst.msk [vmem:[%s4 + $0x60] sm:$0xff] %vm71, %v294
  %311 = vst.msk [vmem:[%s4 + $0x68] sm:$0xff] %vm71, %v295
  %312 = vst.msk [vmem:[%s4 + $0x70] sm:$0xff] %vm71, %v296
  %313 = vst.msk [vmem:[%s4 + $0x78] sm:$0xff] %vm71, %v297
  // Predicated region
  $region18: #{forward.7} parent=0 // pred_check
    _
  $region19: #{forward.7} parent=0 // pred_check_branch
    %315 = sbr.rel (0) target = $region21
  $region20: #{forward.7} parent=0 // pred_region
    _
  $region21: #{forward.7} parent=0 // pred_fallthru
    _
  // Predicated region
  $region22: #{forward.7} parent=0 // pred_check
    _
  $region23: #{forward.7} parent=0 // pred_check_branch
    %317 = sbr.rel (0) target = $region25
  $region24: #{forward.7} parent=0 // pred_region
    _
  $region25: #{forward.7} parent=0 // pred_fallthru
    _

// kernel: forward.8
$region0: #{forward.8}
  #allocation0 [shape = 'u32[]', space=smem, size = 0x4, offset = 0x4, fixed_abs, tag = 'smem constant byte address 0x4 - core index']
  #allocation1 [shape = 'u32[72,128]{1,0:T(1,128)}', space=vmem, size = 0x9000, scoped, tag = 'internal scratch']
  %s0 = inlined_call_operand.vmem [shape: f32[32,144], index: 0, kind: input, shape index: {}]
  %s1 = inlined_call_operand.vmem [shape: f32[144,32], index: 1, kind: input, shape index: {}]
  %s2 = inlined_call_operand.vmem [shape: f32[1,32], index: 2, kind: input, shape index: {}]
  %s3 = inlined_call_operand.vmem [shape: f32[32,32], index: 3, kind: output, shape index: {}]
  %s4 = sld [smem:[#allocation0]]
  $region22: #{forward.8} parent=0
    _
  %s6 = ssub.s32 1, %s4
  %s7 = scalar_select 0, %s6, %s4
  // Predicated region
  $region2: #{forward.8} parent=0 // pred_check
    _
  $region3: #{forward.8} parent=0 // pred_check_branch
    %9 = sbr.rel (0) target = $region5
  $region4: #{forward.8} parent=0 // pred_region
    _
  $region5: #{forward.8} parent=0 // pred_fallthru
    _
  // Predicated region
  $region6: #{forward.8} parent=0 // pred_check
    _
  $region7: #{forward.8} parent=0 // pred_check_branch
    %11 = sbr.rel (0) target = $region9
  $region8: #{forward.8} parent=0 // pred_region
    _
  $region9: #{forward.8} parent=0 // pred_fallthru
    _
  // Predicated region
  $region10: #{forward.8} parent=0 // pred_check
    _
  $region11: #{forward.8} parent=0 // pred_check_branch
    %13 = sbr.rel (0) target = $region13
  $region12: #{forward.8} parent=0 // pred_region
    _
  $region13: #{forward.8} parent=0 // pred_fallthru
    _
  %v14 = vld [vmem:[%s0] sm:$0xff]
  %v15 = vld [vmem:[%s0 + $0x8] sm:$0xff]
  %v16 = vld [vmem:[%s0 + $0x10] sm:$0xff]
  %v17 = vld [vmem:[%s0 + $0x18] sm:$0xff]
  %v18 = vld [vmem:[%s0 + $0x20] sm:$0xff]
  %v19 = vld [vmem:[%s0 + $0x28] sm:$0xff]
  %v20 = vld [vmem:[%s0 + $0x30] sm:$0xff]
  %v21 = vld [vmem:[%s0 + $0x38] sm:$0xff]
  %v22 = vld [vmem:[%s1] sm:$0xff]
  %v23 = vld [vmem:[%s1 + $0x8] sm:$0xff]
  %v24 = vld [vmem:[%s1 + $0x10] sm:$0xff]
  %v25 = vld [vmem:[%s1 + $0x18] sm:$0xff]
  %v26 = vld [vmem:[%s1 + $0x20] sm:$0xff]
  %v27 = vld [vmem:[%s1 + $0x28] sm:$0xff]
  %v28 = vld [vmem:[%s1 + $0x30] sm:$0xff]
  %v29 = vld [vmem:[%s1 + $0x38] sm:$0xff]
  %v30 = vld [vmem:[%s1 + $0x40] sm:$0xff]
  %v31 = vld [vmem:[%s1 + $0x48] sm:$0xff]
  %v32 = vld [vmem:[%s1 + $0x50] sm:$0xff]
  %v33 = vld [vmem:[%s1 + $0x58] sm:$0xff]
  %v34 = vld [vmem:[%s1 + $0x60] sm:$0xff]
  %v35 = vld [vmem:[%s1 + $0x68] sm:$0xff]
  %v36 = vld [vmem:[%s1 + $0x70] sm:$0xff]
  %v37 = vld [vmem:[%s1 + $0x78] sm:$0xff]
  %v38 = vld [vmem:[%s1 + $0x80] sm:$0xff]
  %v39 = vld [vmem:[%s1 + $0x88] sm:$0xff]
  %v40 = vld [vmem:[%s2] sm:$0x1]
  %v42 = vperm.slane %v40, 0
  %vm44 = vcmask 130048
  %v46 = vsel %vm44, %v15, 0
  %v49 = vsel %vm44, %v17, 0
  %v52 = vsel %vm44, %v19, 0
  %v55 = vsel %vm44, %v21, 0
  %57 = vmatpush.msra.mxu0 %v37
  %58 = vmatpush.msra.mxu0 %v36
  %59 = vmatpush.msra.mxu0 %v35
  %60 = vmatpush.msra.mxu0 %v34
  %61 = vmatpush.msra.mxu0 %v33
  %62 = vmatpush.msra.mxu0 %v32
  %63 = vmatpush.msra.mxu0 %v31
  %64 = vmatpush.msra.mxu0 %v30
  %65 = vmatpush.msra.mxu0 %v29
  %66 = vmatpush.msra.mxu0 %v28
  %67 = vmatpush.msra.mxu0 %v27
  %68 = vmatpush.msra.mxu0 %v26
  %69 = vmatpush.msra.mxu0 %v25
  %70 = vmatpush.msra.mxu0 %v24
  %71 = vmatpush.msra.mxu0 %v23
  %72 = vmatpush.msra.mxu0 %v22
  %73 = vmatmul.f32.gmra.mxu0 %v14
  %v74 = vpop.f32.mrf.mxu0
  %v75 = vadd.f32 %v42, %v74
  %76 = vmatmul.f32.gmra.mxu0 %v16
  %v77 = vpop.f32.mrf.mxu0
  %v78 = vadd.f32 %v42, %v77
  %79 = vmatmul.f32.gmra.mxu0 %v18
  %v80 = vpop.f32.mrf.mxu0
  %v81 = vadd.f32 %v42, %v80
  %82 = vmatmul.f32.gmra.mxu0 %v20
  %v83 = vpop.f32.mrf.mxu0
  %v84 = vadd.f32 %v42, %v83
  %85 = vdwg.mxu0
  %86 = vmatpush.msra.mxu0 0.0
  %87 = vmatpush.msra.mxu0 0.0
  %88 = vmatpush.msra.mxu0 0.0
  %89 = vmatpush.msra.mxu0 0.0
  %90 = vmatpush.msra.mxu0 0.0
  %91 = vmatpush.msra.mxu0 0.0
  %92 = vmatpush.msra.mxu0 0.0
  %93 = vmatpush.msra.mxu0 0.0
  %94 = vmatpush.msra.mxu0 0.0
  %95 = vmatpush.msra.mxu0 0.0
  %96 = vmatpush.msra.mxu0 0.0
  %97 = vmatpush.msra.mxu0 0.0
  %98 = vmatpush.msra.mxu0 0.0
  %99 = vmatpush.msra.mxu0 0.0
  %100 = vmatpush.msra.mxu0 %v39
  %101 = vmatpush.msra.mxu0 %v38
  %102 = vmatmul.f32.gmra.mxu0 %v46
  %v103 = vpop.f32.mrf.mxu0
  %v104 = vadd.f32 %v75, %v103
  %105 = vmatmul.f32.gmra.mxu0 %v49
  %v106 = vpop.f32.mrf.mxu0
  %v107 = vadd.f32 %v78, %v106
  %108 = vmatmul.f32.gmra.mxu0 %v52
  %v109 = vpop.f32.mrf.mxu0
  %v110 = vadd.f32 %v81, %v109
  %111 = vmatmul.f32.gmra.mxu0 %v55
  %v112 = vpop.f32.mrf.mxu0
  %v113 = vadd.f32 %v84, %v112
  %114 = vdwg.mxu0
  %v115 = vmax.f32 %v104, 0.0
  %v116 = vmax.f32 %v107, 0.0
  %v117 = vmax.f32 %v110, 0.0
  %v118 = vmax.f32 %v113, 0.0
  %vm119 = vcmask 261120
  %120 = vst.msk [vmem:[%s3] sm:$0xff] %vm119, %v115
  %121 = vst.msk [vmem:[%s3 + $0x8] sm:$0xff] %vm119, %v116
  %122 = vst.msk [vmem:[%s3 + $0x10] sm:$0xff] %vm119, %v117
  %123 = vst.msk [vmem:[%s3 + $0x18] sm:$0xff] %vm119, %v118
  // Predicated region
  $region14: #{forward.8} parent=0 // pred_check
    _
  $region15: #{forward.8} parent=0 // pred_check_branch
    %125 = sbr.rel (0) target = $region17
  $region16: #{forward.8} parent=0 // pred_region
    _
  $region17: #{forward.8} parent=0 // pred_fallthru
    _
  // Predicated region
  $region18: #{forward.8} parent=0 // pred_check
    _
  $region19: #{forward.8} parent=0 // pred_check_branch
    %127 = sbr.rel (0) target = $region21
  $region20: #{forward.8} parent=0 // pred_region
    _
  $region21: #{forward.8} parent=0 // pred_fallthru
    _

// kernel: forward.9
$region0: #{forward.9}
  #allocation0 [shape = 'u32[]', space=smem, size = 0x4, offset = 0x4, fixed_abs, tag = 'smem constant byte address 0x4 - core index']
  #allocation1 [shape = 'u32[72,128]{1,0:T(1,128)}', space=vmem, size = 0x9000, scoped, tag = 'internal scratch']
  %s0 = inlined_call_operand.vmem [shape: f32[2,24,32], index: 0, kind: input, shape index: {}]
  %s1 = inlined_call_operand.vmem [shape: f32[2,32,96], index: 1, kind: input, shape index: {}]
  %s2 = inlined_call_operand.vmem [shape: f32[2,1,96], index: 2, kind: input, shape index: {}]
  %s3 = inlined_call_operand.vmem [shape: f32[2,32,32], index: 3, kind: input, shape index: {}]
  %s4 = inlined_call_operand.vmem [shape: f32[2,1,32], index: 4, kind: input, shape index: {}]
  %s5 = inlined_call_operand.vmem [shape: f32[2,1,32], index: 5, kind: input, shape index: {}]
  %s6 = inlined_call_operand.vmem [shape: f32[2,1,32], index: 6, kind: input, shape index: {}]
  %s7 = inlined_call_operand.vmem [shape: f32[2,32,64], index: 7, kind: input, shape index: {}]
  %s8 = inlined_call_operand.vmem [shape: f32[2,1,64], index: 8, kind: input, shape index: {}]
  %s9 = inlined_call_operand.vmem [shape: f32[2,64,32], index: 9, kind: input, shape index: {}]
  %s10 = inlined_call_operand.vmem [shape: f32[2,1,32], index: 10, kind: input, shape index: {}]
  %s11 = inlined_call_operand.vmem [shape: f32[2,1,32], index: 11, kind: input, shape index: {}]
  %s12 = inlined_call_operand.vmem [shape: f32[2,1,32], index: 12, kind: input, shape index: {}]
  %s13 = inlined_call_operand.vmem [shape: f32[32,4], index: 13, kind: input, shape index: {}]
  %s14 = inlined_call_operand.vmem [shape: f32[1,4], index: 14, kind: input, shape index: {}]
  %s15 = inlined_call_operand.vmem [shape: f32[32,128], index: 15, kind: input, shape index: {}]
  %s16 = inlined_call_operand.vmem [shape: f32[1,128], index: 16, kind: input, shape index: {}]
  %s17 = inlined_call_operand.hbm [shape: f32[2,1,32], index: 17, kind: output, shape index: {}]
  %s18 = sld [smem:[#allocation0]]
  $region101: #{forward.9} parent=0
    _
  %s20 = ssub.s32 1, %s18
  %s21 = scalar_select 0, %s20, %s18
  $region1: #{forward.9} parent=0
    #allocation2 [shape = 'u8[1024]{0}', space=vmem, size = 0x400, scoped, tag = 'output window, operand 0']
    #allocation3 [shape = 's32[2]{0}', space=sflag, size = 0x8, scoped, tag = 'scoped memory for forward.9']
    %22 = vsyncpa [#allocation3], 0
    %s23 = scalar_lea.sflag [#allocation3], 1
    %24 = vsyncpa %s23, 0
    loop: start=0, step=1, limit=4
    $region2: #{forward.9} parent=1 // loop_pre_header
      _
    $region3: #{forward.9} parent=1 // loop_header
      %s26 = sphi 0, %s30
      %p27 = scmp.ge.s32.totalorder %s26, 4
      %s36 = sphi 0, %s38
      %s39 = sphi 0, %s36
      %s40 = sphi 0, %s39
      %s56 = sphi 0, %s40
      %s60 = sphi 0, %s60
      %s62 = sphi 0, %s60
      %s63 = sphi 0, %s62
      %s77 = sphi 0, %s63
      %s81 = sphi 0, %s81
      %s83 = sphi 0, %s81
      %s84 = sphi 0, %s83
      %s98 = sphi 0, %s84
      %s102 = sphi 0, %s102
      %s104 = sphi 0, %s102
      %s105 = sphi 0, %s104
      %s119 = sphi 0, %s105
      %s123 = sphi 0, %s123
      %s125 = sphi 0, %s123
      %s126 = sphi 0, %s125
      %s140 = sphi 0, %s126
      %s144 = sphi 0, %s144
      %s146 = sphi 0, %s144
      %s147 = sphi 0, %s146
      %s161 = sphi 0, %s147
      %s165 = sphi 0, %s165
      %s167 = sphi 0, %s165
      %s168 = sphi 0, %s167
      %s182 = sphi 0, %s168
      %s186 = sphi 0, %s186
      %s188 = sphi 0, %s186
      %s189 = sphi 0, %s188
      %s203 = sphi 0, %s189
      %s207 = sphi 0, %s207
      %s209 = sphi 0, %s207
      %s210 = sphi 0, %s209
      %s224 = sphi 0, %s210
      %s228 = sphi 0, %s228
      %s230 = sphi 0, %s228
      %s231 = sphi 0, %s230
      %s245 = sphi 0, %s231
      %s249 = sphi 0, %s249
      %s251 = sphi 0, %s249
      %s252 = sphi 0, %s251
      %s266 = sphi 0, %s252
      %s270 = sphi 0, %s270
      %s272 = sphi 0, %s270
      %s273 = sphi 0, %s272
      %s287 = sphi 0, %s273
      %s291 = sphi 0, %s291
      %s293 = sphi 0, %s291
      %s294 = sphi 0, %s293
      %s308 = sphi 0, %s294
      %s312 = sphi 0, %s312
      %s314 = sphi 0, %s312
      %s315 = sphi 0, %s314
      %s329 = sphi 0, %s315
      %s333 = sphi 0, %s333
      %s335 = sphi 0, %s333
      %s336 = sphi 0, %s335
      %s350 = sphi 0, %s336
      %s354 = sphi 0, %s354
      %s356 = sphi 0, %s354
      %s357 = sphi 0, %s356
      %s371 = sphi 0, %s357
      %s375 = sphi 0, %s375
      %s377 = sphi 0, %s375
      %s378 = sphi 0, %s377
      %s392 = sphi 0, %s378
      %s398 = sphi 0, %s400
      %s401 = sphi 0, %s398
      %s402 = sphi 0, %s401
      %s418 = sphi 0, %s402
    $region4: #{forward.9} parent=1 // loop_header_branch
      %29 = sbr.rel (%p27) target = $region8
    $region5: #{forward.9} parent=1 // loop_body
      %s31 = ssub.s32 %s26, 1
      %s32 = ssub.s32 %s26, 2
      %s33 = sadd.s32 %s26, 1
      %s34 = ssub.s32 %s26, %s33
      %p35 = scmp.eq.s32.totalorder %s34, 0
      %s37 = sadd.s32 %s36, 1
      %s38 = scalar_select %p35, %s36, %s37
      %p41 = pneg %p35
      %p42 = scmp.eq.s32.totalorder %s26, 1
      %p43 = por %p41, %p42
      %p44 = scmp.ne.s32.totalorder %s36, %s39
      %p45 = scmp.eq.s32.totalorder %s26, 0
      %p46 = por %p44, %p45
      %p47 = scmp.ne.s32.totalorder %s36, %s39
      %p48 = scmp.eq.s32.totalorder %s31, 1
      %p49 = por %p47, %p48
      %p50 = scmp.ne.s32.totalorder %s39, %s40
      %p51 = scmp.eq.s32.totalorder %s31, 0
      %p52 = por %p50, %p51
      %p53 = scmp.ne.s32.totalorder %s39, %s40
      %p54 = scmp.eq.s32.totalorder %s32, 1
      %p55 = por %p53, %p54
      %p57 = scmp.ne.s32.totalorder %s40, %s56
      %p58 = scmp.eq.s32.totalorder %s32, 0
      %p59 = por %p57, %p58
      %s61 = sadd.s32 %s60, 1
      %p64 = scmp.eq.s32.totalorder %s26, 1
      %p65 = scmp.ne.s32.totalorder %s60, %s62
      %p66 = scmp.eq.s32.totalorder %s26, 0
      %p67 = por %p65, %p66
      %p68 = scmp.ne.s32.totalorder %s60, %s62
      %p69 = scmp.eq.s32.totalorder %s31, 1
      %p70 = por %p68, %p69
      %p71 = scmp.ne.s32.totalorder %s62, %s63
      %p72 = scmp.eq.s32.totalorder %s31, 0
      %p73 = por %p71, %p72
      %p74 = scmp.ne.s32.totalorder %s62, %s63
      %p75 = scmp.eq.s32.totalorder %s32, 1
      %p76 = por %p74, %p75
      %p78 = scmp.ne.s32.totalorder %s63, %s77
      %p79 = scmp.eq.s32.totalorder %s32, 0
      %p80 = por %p78, %p79
      %s82 = sadd.s32 %s81, 1
      %p85 = scmp.eq.s32.totalorder %s26, 1
      %p86 = scmp.ne.s32.totalorder %s81, %s83
      %p87 = scmp.eq.s32.totalorder %s26, 0
      %p88 = por %p86, %p87
      %p89 = scmp.ne.s32.totalorder %s81, %s83
      %p90 = scmp.eq.s32.totalorder %s31, 1
      %p91 = por %p89, %p90
      %p92 = scmp.ne.s32.totalorder %s83, %s84
      %p93 = scmp.eq.s32.totalorder %s31, 0
      %p94 = por %p92, %p93
      %p95 = scmp.ne.s32.totalorder %s83, %s84
      %p96 = scmp.eq.s32.totalorder %s32, 1
      %p97 = por %p95, %p96
      %p99 = scmp.ne.s32.totalorder %s84, %s98
      %p100 = scmp.eq.s32.totalorder %s32, 0
      %p101 = por %p99, %p100
      %s103 = sadd.s32 %s102, 1
      %p106 = scmp.eq.s32.totalorder %s26, 1
      %p107 = scmp.ne.s32.totalorder %s102, %s104
      %p108 = scmp.eq.s32.totalorder %s26, 0
      %p109 = por %p107, %p108
      %p110 = scmp.ne.s32.totalorder %s102, %s104
      %p111 = scmp.eq.s32.totalorder %s31, 1
      %p112 = por %p110, %p111
      %p113 = scmp.ne.s32.totalorder %s104, %s105
      %p114 = scmp.eq.s32.totalorder %s31, 0
      %p115 = por %p113, %p114
      %p116 = scmp.ne.s32.totalorder %s104, %s105
      %p117 = scmp.eq.s32.totalorder %s32, 1
      %p118 = por %p116, %p117
      %p120 = scmp.ne.s32.totalorder %s105, %s119
      %p121 = scmp.eq.s32.totalorder %s32, 0
      %p122 = por %p120, %p121
      %s124 = sadd.s32 %s123, 1
      %p127 = scmp.eq.s32.totalorder %s26, 1
      %p128 = scmp.ne.s32.totalorder %s123, %s125
      %p129 = scmp.eq.s32.totalorder %s26, 0
      %p130 = por %p128, %p129
      %p131 = scmp.ne.s32.totalorder %s123, %s125
      %p132 = scmp.eq.s32.totalorder %s31, 1
      %p133 = por %p131, %p132
      %p134 = scmp.ne.s32.totalorder %s125, %s126
      %p135 = scmp.eq.s32.totalorder %s31, 0
      %p136 = por %p134, %p135
      %p137 = scmp.ne.s32.totalorder %s125, %s126
      %p138 = scmp.eq.s32.totalorder %s32, 1
      %p139 = por %p137, %p138
      %p141 = scmp.ne.s32.totalorder %s126, %s140
      %p142 = scmp.eq.s32.totalorder %s32, 0
      %p143 = por %p141, %p142
      %s145 = sadd.s32 %s144, 1
      %p148 = scmp.eq.s32.totalorder %s26, 1
      %p149 = scmp.ne.s32.totalorder %s144, %s146
      %p150 = scmp.eq.s32.totalorder %s26, 0
      %p151 = por %p149, %p150
      %p152 = scmp.ne.s32.totalorder %s144, %s146
      %p153 = scmp.eq.s32.totalorder %s31, 1
      %p154 = por %p152, %p153
      %p155 = scmp.ne.s32.totalorder %s146, %s147
      %p156 = scmp.eq.s32.totalorder %s31, 0
      %p157 = por %p155, %p156
      %p158 = scmp.ne.s32.totalorder %s146, %s147
      %p159 = scmp.eq.s32.totalorder %s32, 1
      %p160 = por %p158, %p159
      %p162 = scmp.ne.s32.totalorder %s147, %s161
      %p163 = scmp.eq.s32.totalorder %s32, 0
      %p164 = por %p162, %p163
      %s166 = sadd.s32 %s165, 1
      %p169 = scmp.eq.s32.totalorder %s26, 1
      %p170 = scmp.ne.s32.totalorder %s165, %s167
      %p171 = scmp.eq.s32.totalorder %s26, 0
      %p172 = por %p170, %p171
      %p173 = scmp.ne.s32.totalorder %s165, %s167
      %p174 = scmp.eq.s32.totalorder %s31, 1
      %p175 = por %p173, %p174
      %p176 = scmp.ne.s32.totalorder %s167, %s168
      %p177 = scmp.eq.s32.totalorder %s31, 0
      %p178 = por %p176, %p177
      %p179 = scmp.ne.s32.totalorder %s167, %s168
      %p180 = scmp.eq.s32.totalorder %s32, 1
      %p181 = por %p179, %p180
      %p183 = scmp.ne.s32.totalorder %s168, %s182
      %p184 = scmp.eq.s32.totalorder %s32, 0
      %p185 = por %p183, %p184
      %s187 = sadd.s32 %s186, 1
      %p190 = scmp.eq.s32.totalorder %s26, 1
      %p191 = scmp.ne.s32.totalorder %s186, %s188
      %p192 = scmp.eq.s32.totalorder %s26, 0
      %p193 = por %p191, %p192
      %p194 = scmp.ne.s32.totalorder %s186, %s188
      %p195 = scmp.eq.s32.totalorder %s31, 1
      %p196 = por %p194, %p195
      %p197 = scmp.ne.s32.totalorder %s188, %s189
      %p198 = scmp.eq.s32.totalorder %s31, 0
      %p199 = por %p197, %p198
      %p200 = scmp.ne.s32.totalorder %s188, %s189
      %p201 = scmp.eq.s32.totalorder %s32, 1
      %p202 = por %p200, %p201
      %p204 = scmp.ne.s32.totalorder %s189, %s203
      %p205 = scmp.eq.s32.totalorder %s32, 0
      %p206 = por %p204, %p205
      %s208 = sadd.s32 %s207, 1
      %p211 = scmp.eq.s32.totalorder %s26, 1
      %p212 = scmp.ne.s32.totalorder %s207, %s209
      %p213 = scmp.eq.s32.totalorder %s26, 0
      %p214 = por %p212, %p213
      %p215 = scmp.ne.s32.totalorder %s207, %s209
      %p216 = scmp.eq.s32.totalorder %s31, 1
      %p217 = por %p215, %p216
      %p218 = scmp.ne.s32.totalorder %s209, %s210
      %p219 = scmp.eq.s32.totalorder %s31, 0
      %p220 = por %p218, %p219
      %p221 = scmp.ne.s32.totalorder %s209, %s210
      %p222 = scmp.eq.s32.totalorder %s32, 1
      %p223 = por %p221, %p222
      %p225 = scmp.ne.s32.totalorder %s210, %s224
      %p226 = scmp.eq.s32.totalorder %s32, 0
      %p227 = por %p225, %p226
      %s229 = sadd.s32 %s228, 1
      %p232 = scmp.eq.s32.totalorder %s26, 1
      %p233 = scmp.ne.s32.totalorder %s228, %s230
      %p234 = scmp.eq.s32.totalorder %s26, 0
      %p235 = por %p233, %p234
      %p236 = scmp.ne.s32.totalorder %s228, %s230
      %p237 = scmp.eq.s32.totalorder %s31, 1
      %p238 = por %p236, %p237
      %p239 = scmp.ne.s32.totalorder %s230, %s231
      %p240 = scmp.eq.s32.totalorder %s31, 0
      %p241 = por %p239, %p240
      %p242 = scmp.ne.s32.totalorder %s230, %s231
      %p243 = scmp.eq.s32.totalorder %s32, 1
      %p244 = por %p242, %p243
      %p246 = scmp.ne.s32.totalorder %s231, %s245
      %p247 = scmp.eq.s32.totalorder %s32, 0
      %p248 = por %p246, %p247
      %s250 = sadd.s32 %s249, 1
      %p253 = scmp.eq.s32.totalorder %s26, 1
      %p254 = scmp.ne.s32.totalorder %s249, %s251
      %p255 = scmp.eq.s32.totalorder %s26, 0
      %p256 = por %p254, %p255
      %p257 = scmp.ne.s32.totalorder %s249, %s251
      %p258 = scmp.eq.s32.totalorder %s31, 1
      %p259 = por %p257, %p258
      %p260 = scmp.ne.s32.totalorder %s251, %s252
      %p261 = scmp.eq.s32.totalorder %s31, 0
      %p262 = por %p260, %p261
      %p263 = scmp.ne.s32.totalorder %s251, %s252
      %p264 = scmp.eq.s32.totalorder %s32, 1
      %p265 = por %p263, %p264
      %p267 = scmp.ne.s32.totalorder %s252, %s266
      %p268 = scmp.eq.s32.totalorder %s32, 0
      %p269 = por %p267, %p268
      %s271 = sadd.s32 %s270, 1
      %p274 = scmp.eq.s32.totalorder %s26, 1
      %p275 = scmp.ne.s32.totalorder %s270, %s272
      %p276 = scmp.eq.s32.totalorder %s26, 0
      %p277 = por %p275, %p276
      %p278 = scmp.ne.s32.totalorder %s270, %s272
      %p279 = scmp.eq.s32.totalorder %s31, 1
      %p280 = por %p278, %p279
      %p281 = scmp.ne.s32.totalorder %s272, %s273
      %p282 = scmp.eq.s32.totalorder %s31, 0
      %p283 = por %p281, %p282
      %p284 = scmp.ne.s32.totalorder %s272, %s273
      %p285 = scmp.eq.s32.totalorder %s32, 1
      %p286 = por %p284, %p285
      %p288 = scmp.ne.s32.totalorder %s273, %s287
      %p289 = scmp.eq.s32.totalorder %s32, 0
      %p290 = por %p288, %p289
      %s292 = sadd.s32 %s291, 1
      %p295 = scmp.eq.s32.totalorder %s26, 1
      %p296 = scmp.ne.s32.totalorder %s291, %s293
      %p297 = scmp.eq.s32.totalorder %s26, 0
      %p298 = por %p296, %p297
      %p299 = scmp.ne.s32.totalorder %s291, %s293
      %p300 = scmp.eq.s32.totalorder %s31, 1
      %p301 = por %p299, %p300
      %p302 = scmp.ne.s32.totalorder %s293, %s294
      %p303 = scmp.eq.s32.totalorder %s31, 0
      %p304 = por %p302, %p303
      %p305 = scmp.ne.s32.totalorder %s293, %s294
      %p306 = scmp.eq.s32.totalorder %s32, 1
      %p307 = por %p305, %p306
      %p309 = scmp.ne.s32.totalorder %s294, %s308
      %p310 = scmp.eq.s32.totalorder %s32, 0
      %p311 = por %p309, %p310
      %s313 = sadd.s32 %s312, 1
      %p316 = scmp.eq.s32.totalorder %s26, 1
      %p317 = scmp.ne.s32.totalorder %s312, %s314
      %p318 = scmp.eq.s32.totalorder %s26, 0
      %p319 = por %p317, %p318
      %p320 = scmp.ne.s32.totalorder %s312, %s314
      %p321 = scmp.eq.s32.totalorder %s31, 1
      %p322 = por %p320, %p321
      %p323 = scmp.ne.s32.totalorder %s314, %s315
      %p324 = scmp.eq.s32.totalorder %s31, 0
      %p325 = por %p323, %p324
      %p326 = scmp.ne.s32.totalorder %s314, %s315
      %p327 = scmp.eq.s32.totalorder %s32, 1
      %p328 = por %p326, %p327
      %p330 = scmp.ne.s32.totalorder %s315, %s329
      %p331 = scmp.eq.s32.totalorder %s32, 0
      %p332 = por %p330, %p331
      %s334 = sadd.s32 %s333, 1
      %p337 = scmp.eq.s32.totalorder %s26, 1
      %p338 = scmp.ne.s32.totalorder %s333, %s335
      %p339 = scmp.eq.s32.totalorder %s26, 0
      %p340 = por %p338, %p339
      %p341 = scmp.ne.s32.totalorder %s333, %s335
      %p342 = scmp.eq.s32.totalorder %s31, 1
      %p343 = por %p341, %p342
      %p344 = scmp.ne.s32.totalorder %s335, %s336
      %p345 = scmp.eq.s32.totalorder %s31, 0
      %p346 = por %p344, %p345
      %p347 = scmp.ne.s32.totalorder %s335, %s336
      %p348 = scmp.eq.s32.totalorder %s32, 1
      %p349 = por %p347, %p348
      %p351 = scmp.ne.s32.totalorder %s336, %s350
      %p352 = scmp.eq.s32.totalorder %s32, 0
      %p353 = por %p351, %p352
      %s355 = sadd.s32 %s354, 1
      %p358 = scmp.eq.s32.totalorder %s26, 1
      %p359 = scmp.ne.s32.totalorder %s354, %s356
      %p360 = scmp.eq.s32.totalorder %s26, 0
      %p361 = por %p359, %p360
      %p362 = scmp.ne.s32.totalorder %s354, %s356
      %p363 = scmp.eq.s32.totalorder %s31, 1
      %p364 = por %p362, %p363
      %p365 = scmp.ne.s32.totalorder %s356, %s357
      %p366 = scmp.eq.s32.totalorder %s31, 0
      %p367 = por %p365, %p366
      %p368 = scmp.ne.s32.totalorder %s356, %s357
      %p369 = scmp.eq.s32.totalorder %s32, 1
      %p370 = por %p368, %p369
      %p372 = scmp.ne.s32.totalorder %s357, %s371
      %p373 = scmp.eq.s32.totalorder %s32, 0
      %p374 = por %p372, %p373
      %s376 = sadd.s32 %s375, 1
      %p379 = scmp.eq.s32.totalorder %s26, 1
      %p380 = scmp.ne.s32.totalorder %s375, %s377
      %p381 = scmp.eq.s32.totalorder %s26, 0
      %p382 = por %p380, %p381
      %p383 = scmp.ne.s32.totalorder %s375, %s377
      %p384 = scmp.eq.s32.totalorder %s31, 1
      %p385 = por %p383, %p384
      %p386 = scmp.ne.s32.totalorder %s377, %s378
      %p387 = scmp.eq.s32.totalorder %s31, 0
      %p388 = por %p386, %p387
      %p389 = scmp.ne.s32.totalorder %s377, %s378
      %p390 = scmp.eq.s32.totalorder %s32, 1
      %p391 = por %p389, %p390
      %p393 = scmp.ne.s32.totalorder %s378, %s392
      %p394 = scmp.eq.s32.totalorder %s32, 0
      %p395 = por %p393, %p394
      %s396 = ssub.s32 %s26, %s33
      %p397 = scmp.eq.s32.totalorder %s396, 0
      %s399 = sadd.s32 %s398, 1
      %s400 = scalar_select %p397, %s398, %s399
      %p403 = pneg %p397
      %p404 = scmp.eq.s32.totalorder %s26, 1
      %p405 = por %p403, %p404
      %p406 = scmp.ne.s32.totalorder %s398, %s401
      %p407 = scmp.eq.s32.totalorder %s26, 0
      %p408 = por %p406, %p407
      %p409 = scmp.ne.s32.totalorder %s398, %s401
      %p410 = scmp.eq.s32.totalorder %s31, 1
      %p411 = por %p409, %p410
      %p412 = scmp.ne.s32.totalorder %s401, %s402
      %p413 = scmp.eq.s32.totalorder %s31, 0
      %p414 = por %p412, %p413
      %p415 = scmp.ne.s32.totalorder %s401, %s402
      %p416 = scmp.eq.s32.totalorder %s32, 1
      %p417 = por %p415, %p416
      %p419 = scmp.ne.s32.totalorder %s402, %s418
      %p420 = scmp.eq.s32.totalorder %s32, 0
      %p421 = por %p419, %p420
      %p422 = scmp.le.s32.totalorder 1, %s26
      %p423 = scmp.lt.s32.totalorder %s26, 3
      %p424 = pnand %p422, %p423
      %p425 = pneg %p424
      // Predicated region
      $region9: #{forward.9} parent=5 // pred_check
        _
      $region10: #{forward.9} parent=5 // pred_check_branch
        %427 = sbr.rel (%p424) target = $region12
      $region11: #{forward.9} parent=5 // pred_region
        %s428 = ssub.s32 %s26, 1
        // Predicated region
        $region13: #{forward.9} parent=11 // pred_check
          %p429 = pneg %p73
        $region14: #{forward.9} parent=11 // pred_check_branch
          %431 = sbr.rel (%p429) target = $region16
        $region15: #{forward.9} parent=11 // pred_region
          _
        $region16: #{forward.9} parent=11 // pred_fallthru
          _
        // Predicated region
        $region17: #{forward.9} parent=11 // pred_check
          %p432 = pneg %p94
        $region18: #{forward.9} parent=11 // pred_check_branch
          %434 = sbr.rel (%p432) target = $region20
        $region19: #{forward.9} parent=11 // pred_region
          _
        $region20: #{forward.9} parent=11 // pred_fallthru
          _
        // Predicated region
        $region21: #{forward.9} parent=11 // pred_check
          %p435 = pneg %p115
        $region22: #{forward.9} parent=11 // pred_check_branch
          %437 = sbr.rel (%p435) target = $region24
        $region23: #{forward.9} parent=11 // pred_region
          _
        $region24: #{forward.9} parent=11 // pred_fallthru
          _
        // Predicated region
        $region25: #{forward.9} parent=11 // pred_check
          %p438 = pneg %p136
        $region26: #{forward.9} parent=11 // pred_check_branch
          %440 = sbr.rel (%p438) target = $region28
        $region27: #{forward.9} parent=11 // pred_region
          _
        $region28: #{forward.9} parent=11 // pred_fallthru
          _
        // Predicated region
        $region29: #{forward.9} parent=11 // pred_check
          %p441 = pneg %p157
        $region30: #{forward.9} parent=11 // pred_check_branch
          %443 = sbr.rel (%p441) target = $region32
        $region31: #{forward.9} parent=11 // pred_region
          _
        $region32: #{forward.9} parent=11 // pred_fallthru
          _
        // Predicated region
        $region33: #{forward.9} parent=11 // pred_check
          %p444 = pneg %p178
        $region34: #{forward.9} parent=11 // pred_check_branch
          %446 = sbr.rel (%p444) target = $region36
        $region35: #{forward.9} parent=11 // pred_region
          _
        $region36: #{forward.9} parent=11 // pred_fallthru
          _
        // Predicated region
        $region37: #{forward.9} parent=11 // pred_check
          %p447 = pneg %p199
        $region38: #{forward.9} parent=11 // pred_check_branch
          %449 = sbr.rel (%p447) target = $region40
        $region39: #{forward.9} parent=11 // pred_region
          _
        $region40: #{forward.9} parent=11 // pred_fallthru
          _
        // Predicated region
        $region41: #{forward.9} parent=11 // pred_check
          %p450 = pneg %p220
        $region42: #{forward.9} parent=11 // pred_check_branch
          %452 = sbr.rel (%p450) target = $region44
        $region43: #{forward.9} parent=11 // pred_region
          _
        $region44: #{forward.9} parent=11 // pred_fallthru
          _
        // Predicated region
        $region45: #{forward.9} parent=11 // pred_check
          %p453 = pneg %p241
        $region46: #{forward.9} parent=11 // pred_check_branch
          %455 = sbr.rel (%p453) target = $region48
        $region47: #{forward.9} parent=11 // pred_region
          _
        $region48: #{forward.9} parent=11 // pred_fallthru
          _
        // Predicated region
        $region49: #{forward.9} parent=11 // pred_check
          %p456 = pneg %p262
        $region50: #{forward.9} parent=11 // pred_check_branch
          %458 = sbr.rel (%p456) target = $region52
        $region51: #{forward.9} parent=11 // pred_region
          _
        $region52: #{forward.9} parent=11 // pred_fallthru
          _
        // Predicated region
        $region53: #{forward.9} parent=11 // pred_check
          %p459 = pneg %p283
        $region54: #{forward.9} parent=11 // pred_check_branch
          %461 = sbr.rel (%p459) target = $region56
        $region55: #{forward.9} parent=11 // pred_region
          _
        $region56: #{forward.9} parent=11 // pred_fallthru
          _
        // Predicated region
        $region57: #{forward.9} parent=11 // pred_check
          %p462 = pneg %p304
        $region58: #{forward.9} parent=11 // pred_check_branch
          %464 = sbr.rel (%p462) target = $region60
        $region59: #{forward.9} parent=11 // pred_region
          _
        $region60: #{forward.9} parent=11 // pred_fallthru
          _
        // Predicated region
        $region61: #{forward.9} parent=11 // pred_check
          %p465 = pneg %p325
        $region62: #{forward.9} parent=11 // pred_check_branch
          %467 = sbr.rel (%p465) target = $region64
        $region63: #{forward.9} parent=11 // pred_region
          _
        $region64: #{forward.9} parent=11 // pred_fallthru
          _
        // Predicated region
        $region65: #{forward.9} parent=11 // pred_check
          %p468 = pneg %p346
        $region66: #{forward.9} parent=11 // pred_check_branch
          %470 = sbr.rel (%p468) target = $region68
        $region67: #{forward.9} parent=11 // pred_region
          _
        $region68: #{forward.9} parent=11 // pred_fallthru
          _
        // Predicated region
        $region69: #{forward.9} parent=11 // pred_check
          %p471 = pneg %p367
        $region70: #{forward.9} parent=11 // pred_check_branch
          %473 = sbr.rel (%p471) target = $region72
        $region71: #{forward.9} parent=11 // pred_region
          _
        $region72: #{forward.9} parent=11 // pred_fallthru
          _
        // Predicated region
        $region73: #{forward.9} parent=11 // pred_check
          %p474 = pneg %p388
        $region74: #{forward.9} parent=11 // pred_check_branch
          %476 = sbr.rel (%p474) target = $region76
        $region75: #{forward.9} parent=11 // pred_region
          _
        $region76: #{forward.9} parent=11 // pred_fallthru
          _
      $region12: #{forward.9} parent=5 // pred_fallthru
        _
      %p477 = scmp.lt.s32.totalorder %s26, 2
      // Predicated region
      $region77: #{forward.9} parent=5 // pred_check
        %p478 = pneg %p477
      $region78: #{forward.9} parent=5 // pred_check_branch
        %480 = sbr.rel (%p478) target = $region80
      $region79: #{forward.9} parent=5 // pred_region
        // Predicated region
        $region81: #{forward.9} parent=79 // pred_check
          %p481 = pneg %p46
        $region82: #{forward.9} parent=79 // pred_check_branch
          %483 = sbr.rel (%p481) target = $region84
        $region83: #{forward.9} parent=79 // pred_region
          %p484 = scmp.lt.s32.totalorder %s26, 1
          %s485 = scalar_select %p484, %s26, 1
          %s486 = smul.addr %s485, 3
          %s487 = smul.addr %s486, 8
          %s488 = scalar_lea.vmem %s0, %s487
        $region84: #{forward.9} parent=79 // pred_fallthru
          _
      $region80: #{forward.9} parent=5 // pred_fallthru
        _
      %p489 = scmp.le.s32.totalorder 1, %s26
      %p490 = scmp.lt.s32.totalorder %s26, 3
      %p491 = pnand %p489, %p490
      %p492 = pneg %p491
      // Predicated region
      $region85: #{forward.9} parent=5 // pred_check
        _
      $region86: #{forward.9} parent=5 // pred_check_branch
        %494 = sbr.rel (%p491) target = $region88
      $region87: #{forward.9} parent=5 // pred_region
        %s495 = ssub.s32 %s26, 1
        %p496 = scmp.lt.s32.totalorder %s31, 1
        %s497 = scalar_select %p496, %s31, 1
        %s498 = smul.addr %s497, 3
        %s499 = smul.addr %s498, 8
        %s500 = scalar_lea.vmem %s0, %s499
        %p501 = pneg %p52
        %p502 = pneg %p49
        %p503 = pneg %p73
        %p504 = pneg %p70
        %p505 = pneg %p94
        %p506 = pneg %p91
        %p507 = pneg %p115
        %p508 = pneg %p112
        %p509 = pneg %p136
        %p510 = pneg %p133
        %p511 = pneg %p157
        %p512 = pneg %p154
        %p513 = pneg %p178
        %p514 = pneg %p175
        %p515 = pneg %p199
        %p516 = pneg %p196
        %p517 = pneg %p220
        %p518 = pneg %p217
        %p519 = pneg %p241
        %p520 = pneg %p238
        %p521 = pneg %p262
        %p522 = pneg %p259
        %p523 = pneg %p283
        %p524 = pneg %p280
        %p525 = pneg %p304
        %p526 = pneg %p301
        %p527 = pneg %p325
        %p528 = pneg %p322
        %p529 = pneg %p346
        %p530 = pneg %p343
        %p531 = pneg %p367
        %p532 = pneg %p364
        %p533 = pneg %p388
        %p534 = pneg %p385
        %p535 = pneg %p414
        %p536 = pneg %p411
        %s537 = sand.u32 %s401, 1
        %s538 = scalar_lea.sflag [#allocation3], %s537
        %s539 = sand.u32 %s401, 1
        %s540 = scalar_lea.vmem [#allocation2], %s539
        %p541 = scmp.lt.s32.totalorder %s31, 1
        %s542 = scalar_select %p541, %s31, 1
        %s543 = smul.addr %s542, 3
        %s544 = smul.addr %s543, 8
        %s545 = scalar_lea.vmem %s0, %s544
        %v546 = vld [vmem:[%s545] sm:$0xff]
        %v547 = vld [vmem:[%s545 + $0x8] sm:$0xff]
        %v548 = vld [vmem:[%s545 + $0x10] sm:$0xff]
        %v549 = vlaneseq
        %v550 = vand.u32 %v549, 127
        %vm551 = vcmp.lt.s32.totalorder %v550, 17
        %v552 = vld [vmem:[%s1] sm:$0xff]
        %v553 = vld [vmem:[%s1 + $0x8] sm:$0xff]
        %v554 = vld [vmem:[%s1 + $0x10] sm:$0xff]
        %v555 = vld [vmem:[%s1 + $0x18] sm:$0xff]
        %v556 = vld [vmem:[%s2] sm:$0x1]
        %v558 = vperm.slane %v556, 0
        %vm560 = vcmask 261120
        %v562 = vsel %vm560, %v546, 0
        %v565 = vsel %vm560, %v547, 0
        %v568 = vsel %vm560, %v548, 0
        %570 = vmatpush.msra.mxu0 0.0
        %571 = vmatpush.msra.mxu0 0.0
        %572 = vmatpush.msra.mxu0 0.0
        %573 = vmatpush.msra.mxu0 0.0
        %574 = vmatpush.msra.mxu0 0.0
        %575 = vmatpush.msra.mxu0 0.0
        %576 = vmatpush.msra.mxu0 0.0
        %577 = vmatpush.msra.mxu0 0.0
        %578 = vmatpush.msra.mxu0 0.0
        %579 = vmatpush.msra.mxu0 0.0
        %580 = vmatpush.msra.mxu0 0.0
        %581 = vmatpush.msra.mxu0 0.0
        %582 = vmatpush.msra.mxu0 %v555
        %583 = vmatpush.msra.mxu0 %v554
        %584 = vmatpush.msra.mxu0 %v553
        %585 = vmatpush.msra.mxu0 %v552
        %586 = vmatmul.f32.gmra.mxu0 %v562
        %v587 = vpop.f32.mrf.mxu0
        %v588 = vadd.f32 %v558, %v587
        %589 = vmatmul.f32.gmra.mxu0 %v565
        %v590 = vpop.f32.mrf.mxu0
        %v591 = vadd.f32 %v558, %v590
        %592 = vmatmul.f32.gmra.mxu0 %v568
        %v593 = vpop.f32.mrf.mxu0
        %v594 = vadd.f32 %v558, %v593
        %595 = vdwg.mxu0
        %599 = vrot.lane.b32.xlu0 %v588, 96
        %v600 = vpop.permute.xlu0 %599
        %601 = vrot.lane.b32.xlu0 %v591, 96
        %v602 = vpop.permute.xlu0 %601
        %603 = vrot.lane.b32.xlu0 %v594, 96
        %v604 = vpop.permute.xlu0 %603
        %vm605 = vcmask 64512
        %v606 = vsel %vm605, %v588, 0
        %v608 = vsel %vm605, %v591, 0
        %v610 = vsel %vm605, %v594, 0
        %v612 = vsel %vm605, %v600, 0
        %v614 = vsel %vm605, %v602, 0
        %v616 = vsel %vm605, %v604, 0
        %618 = vmatpush.xpose.msra.mxu0 0.0
        %619 = vmatpush.xpose.msra.mxu0 0.0
        %620 = vmatpush.xpose.msra.mxu0 0.0
        %621 = vmatpush.xpose.msra.mxu0 0.0
        %622 = vmatpush.xpose.msra.mxu0 0.0
        %623 = vmatpush.xpose.msra.mxu0 0.0
        %624 = vmatpush.xpose.msra.mxu0 0.0
        %625 = vmatpush.xpose.msra.mxu0 0.0
        %626 = vmatpush.xpose.msra.mxu0 0.0
        %627 = vmatpush.xpose.msra.mxu0 0.0
        %628 = vmatpush.xpose.msra.mxu0 0.0
        %629 = vmatpush.xpose.msra.mxu0 0.0
        %630 = vmatpush.xpose.msra.mxu0 0.0
        %631 = vmatpush.xpose.msra.mxu0 %v616
        %632 = vmatpush.xpose.msra.mxu0 %v614
        %633 = vmatpush.xpose.msra.mxu0 %v612
        %634 = vmatmul.f32.gmra.mxu0 %v606
        %v635 = vpop.f32.mrf.mxu0
        %v636 = vadd.f32 0.0, %v635
        %637 = vmatmul.f32.gmra.mxu0 %v608
        %v638 = vpop.f32.mrf.mxu0
        %v639 = vadd.f32 0.0, %v638
        %640 = vmatmul.f32.gmra.mxu0 %v610
        %v641 = vpop.f32.mrf.mxu0
        %v642 = vadd.f32 0.0, %v641
        %643 = vdwg.mxu0
        %v644 = vmul.f32 %v636, 0.35355338
        %v645 = vmul.f32 %v639, 0.35355338
        %v646 = vmul.f32 %v642, 0.35355338
        %v647 = vsel %vm551, 1, 0
        %vm648 = vcmp.eq.s32.totalorder %v647, 1
        %v649 = vsel %vm648, %v644, -1e+30
        %v650 = vsel %vm648, %v645, -1e+30
        %v651 = vsel %vm648, %v646, -1e+30
        %vm652 = vcmask 195584
        %v653 = vsel %vm652, %v649, -inf
        %654 = vmax.xlane.f32.xlu0 %v653
        %v655 = vpop.xlane.xlu0 %654
        %v656 = vsel %vm652, %v650, -inf
        %657 = vmax.xlane.f32.xlu0 %v656
        %v658 = vpop.xlane.xlu0 %657
        %v659 = vsel %vm652, %v651, -inf
        %660 = vmax.xlane.f32.xlu0 %v659
        %v661 = vpop.xlane.xlu0 %660
        %v662 = vsub.f32 %v649, %v655
        %v663 = vsub.f32 %v650, %v658
        %v664 = vsub.f32 %v651, %v661
        %v665 = vmul.f32 %v662, 1.442695
        %v666 = vpow.pop %v665
        %v667 = vmul.f32 %v663, 1.442695
        %v668 = vpow.pop %v667
        %v669 = vmul.f32 %v664, 1.442695
        %v670 = vpow.pop %v669
        %v671 = vsel %vm652, %v666, 0.0
        %672 = vadd.xlane.f32.xlu0 %v671
        %v673 = vpop.xlane.xlu0 %672
        %v674 = vsel %vm652, %v668, 0.0
        %675 = vadd.xlane.f32.xlu0 %v674
        %v676 = vpop.xlane.xlu0 %675
        %v677 = vsel %vm652, %v670, 0.0
        %678 = vadd.xlane.f32.xlu0 %v677
        %v679 = vpop.xlane.xlu0 %678
        %v680 = vrcp.pop %v673
        %v681 = vrcp.pop %v676
        %v682 = vrcp.pop %v679
        %v683 = vmul.f32 %v666, %v680
        %v684 = vmul.f32 %v668, %v681
        %v685 = vmul.f32 %v670, %v682
        %686 = vrot.lane.b32.xlu0 %v588, 64
        %v687 = vpop.permute.xlu0 %686
        %688 = vrot.lane.b32.xlu0 %v591, 64
        %v689 = vpop.permute.xlu0 %688
        %690 = vrot.lane.b32.xlu0 %v594, 64
        %v691 = vpop.permute.xlu0 %690
        %v696 = vsel %vm652, %v683, 0
        %v699 = vsel %vm652, %v684, 0
        %v702 = vsel %vm652, %v685, 0
        %704 = vmatpush.msra.mxu0 0.0
        %705 = vmatpush.msra.mxu0 0.0
        %706 = vmatpush.msra.mxu0 0.0
        %707 = vmatpush.msra.mxu0 0.0
        %708 = vmatpush.msra.mxu0 0.0
        %709 = vmatpush.msra.mxu0 0.0
        %710 = vmatpush.msra.mxu0 0.0
        %711 = vmatpush.msra.mxu0 0.0
        %712 = vmatpush.msra.mxu0 0.0
        %713 = vmatpush.msra.mxu0 0.0
        %714 = vmatpush.msra.mxu0 0.0
        %715 = vmatpush.msra.mxu0 0.0
        %716 = vmatpush.msra.mxu0 0.0
        %717 = vmatpush.msra.mxu0 %v691
        %718 = vmatpush.msra.mxu0 %v689
        %719 = vmatpush.msra.mxu0 %v687
        %720 = vmatmul.f32.gmra.mxu0 %v696
        %v721 = vpop.f32.mrf.mxu0
        %v722 = vadd.f32 0.0, %v721
        %723 = vmatmul.f32.gmra.mxu0 %v699
        %v724 = vpop.f32.mrf.mxu0
        %v725 = vadd.f32 0.0, %v724
        %726 = vmatmul.f32.gmra.mxu0 %v702
        %v727 = vpop.f32.mrf.mxu0
        %v728 = vadd.f32 0.0, %v727
        %729 = vdwg.mxu0
        %730 = vrot.lane.b32.xlu0 %v588, 120
        %v731 = vpop.permute.xlu0 %730
        %732 = vrot.lane.b32.xlu0 %v591, 120
        %v733 = vpop.permute.xlu0 %732
        %734 = vrot.lane.b32.xlu0 %v594, 120
        %v735 = vpop.permute.xlu0 %734
        %736 = vrot.lane.b32.xlu0 %v588, 88
        %v737 = vpop.permute.xlu0 %736
        %738 = vrot.lane.b32.xlu0 %v591, 88
        %v739 = vpop.permute.xlu0 %738
        %740 = vrot.lane.b32.xlu0 %v594, 88
        %v741 = vpop.permute.xlu0 %740
        %v742 = vsel %vm605, %v731, 0
        %v744 = vsel %vm605, %v733, 0
        %v746 = vsel %vm605, %v735, 0
        %v748 = vsel %vm605, %v737, 0
        %v750 = vsel %vm605, %v739, 0
        %v752 = vsel %vm605, %v741, 0
        %754 = vmatpush.xpose.msra.mxu0 0.0
        %755 = vmatpush.xpose.msra.mxu0 0.0
        %756 = vmatpush.xpose.msra.mxu0 0.0
        %757 = vmatpush.xpose.msra.mxu0 0.0
        %758 = vmatpush.xpose.msra.mxu0 0.0
        %759 = vmatpush.xpose.msra.mxu0 0.0
        %760 = vmatpush.xpose.msra.mxu0 0.0
        %761 = vmatpush.xpose.msra.mxu0 0.0
        %762 = vmatpush.xpose.msra.mxu0 0.0
        %763 = vmatpush.xpose.msra.mxu0 0.0
        %764 = vmatpush.xpose.msra.mxu0 0.0
        %765 = vmatpush.xpose.msra.mxu0 0.0
        %766 = vmatpush.xpose.msra.mxu0 0.0
        %767 = vmatpush.xpose.msra.mxu0 %v752
        %768 = vmatpush.xpose.msra.mxu0 %v750
        %769 = vmatpush.xpose.msra.mxu0 %v748
        %770 = vmatmul.f32.gmra.mxu0 %v742
        %v771 = vpop.f32.mrf.mxu0
        %v772 = vadd.f32 0.0, %v771
        %773 = vmatmul.f32.gmra.mxu0 %v744
        %v774 = vpop.f32.mrf.mxu0
        %v775 = vadd.f32 0.0, %v774
        %776 = vmatmul.f32.gmra.mxu0 %v746
        %v777 = vpop.f32.mrf.mxu0
        %v778 = vadd.f32 0.0, %v777
        %779 = vdwg.mxu0
        %v780 = vmul.f32 %v772, 0.35355338
        %v781 = vmul.f32 %v775, 0.35355338
        %v782 = vmul.f32 %v778, 0.35355338
        %v783 = vsel %vm648, %v780, -1e+30
        %v784 = vsel %vm648, %v781, -1e+30
        %v785 = vsel %vm648, %v782, -1e+30
        %v786 = vsel %vm652, %v783, -inf
        %787 = vmax.xlane.f32.xlu0 %v786
        %v788 = vpop.xlane.xlu0 %787
        %v789 = vsel %vm652, %v784, -inf
        %790 = vmax.xlane.f32.xlu0 %v789
        %v791 = vpop.xlane.xlu0 %790
        %v792 = vsel %vm652, %v785, -inf
        %793 = vmax.xlane.f32.xlu0 %v792
        %v794 = vpop.xlane.xlu0 %793
        %v795 = vsub.f32 %v783, %v788
        %v796 = vsub.f32 %v784, %v791
        %v797 = vsub.f32 %v785, %v794
        %v798 = vmul.f32 %v795, 1.442695
        %v799 = vpow.pop %v798
        %v800 = vmul.f32 %v796, 1.442695
        %v801 = vpow.pop %v800
        %v802 = vmul.f32 %v797, 1.442695
        %v803 = vpow.pop %v802
        %v804 = vsel %vm652, %v799, 0.0
        %805 = vadd.xlane.f32.xlu0 %v804
        %v806 = vpop.xlane.xlu0 %805
        %v807 = vsel %vm652, %v801, 0.0
        %808 = vadd.xlane.f32.xlu0 %v807
        %v809 = vpop.xlane.xlu0 %808
        %v810 = vsel %vm652, %v803, 0.0
        %811 = vadd.xlane.f32.xlu0 %v810
        %v812 = vpop.xlane.xlu0 %811
        %v813 = vrcp.pop %v806
        %v814 = vrcp.pop %v809
        %v815 = vrcp.pop %v812
        %v816 = vmul.f32 %v799, %v813
        %v817 = vmul.f32 %v801, %v814
        %v818 = vmul.f32 %v803, %v815
        %819 = vrot.lane.b32.xlu0 %v588, 56
        %v820 = vpop.permute.xlu0 %819
        %821 = vrot.lane.b32.xlu0 %v591, 56
        %v822 = vpop.permute.xlu0 %821
        %823 = vrot.lane.b32.xlu0 %v594, 56
        %v824 = vpop.permute.xlu0 %823
        %v829 = vsel %vm652, %v816, 0
        %v832 = vsel %vm652, %v817, 0
        %v835 = vsel %vm652, %v818, 0
        %837 = vmatpush.msra.mxu0 0.0
        %838 = vmatpush.msra.mxu0 0.0
        %839 = vmatpush.msra.mxu0 0.0
        %840 = vmatpush.msra.mxu0 0.0
        %841 = vmatpush.msra.mxu0 0.0
        %842 = vmatpush.msra.mxu0 0.0
        %843 = vmatpush.msra.mxu0 0.0
        %844 = vmatpush.msra.mxu0 0.0
        %845 = vmatpush.msra.mxu0 0.0
        %846 = vmatpush.msra.mxu0 0.0
        %847 = vmatpush.msra.mxu0 0.0
        %848 = vmatpush.msra.mxu0 0.0
        %849 = vmatpush.msra.mxu0 0.0
        %850 = vmatpush.msra.mxu0 %v824
        %851 = vmatpush.msra.mxu0 %v822
        %852 = vmatpush.msra.mxu0 %v820
        %853 = vmatmul.f32.gmra.mxu0 %v829
        %v854 = vpop.f32.mrf.mxu0
        %v855 = vadd.f32 0.0, %v854
        %856 = vmatmul.f32.gmra.mxu0 %v832
        %v857 = vpop.f32.mrf.mxu0
        %v858 = vadd.f32 0.0, %v857
        %859 = vmatmul.f32.gmra.mxu0 %v835
        %v860 = vpop.f32.mrf.mxu0
        %v861 = vadd.f32 0.0, %v860
        %862 = vdwg.mxu0
        %863 = vrot.lane.b32.xlu0 %v588, 112
        %v864 = vpop.permute.xlu0 %863
        %865 = vrot.lane.b32.xlu0 %v591, 112
        %v866 = vpop.permute.xlu0 %865
        %867 = vrot.lane.b32.xlu0 %v594, 112
        %v868 = vpop.permute.xlu0 %867
        %869 = vrot.lane.b32.xlu0 %v588, 80
        %v870 = vpop.permute.xlu0 %869
        %871 = vrot.lane.b32.xlu0 %v591, 80
        %v872 = vpop.permute.xlu0 %871
        %873 = vrot.lane.b32.xlu0 %v594, 80
        %v874 = vpop.permute.xlu0 %873
        %v875 = vsel %vm605, %v864, 0
        %v877 = vsel %vm605, %v866, 0
        %v879 = vsel %vm605, %v868, 0
        %v881 = vsel %vm605, %v870, 0
        %v883 = vsel %vm605, %v872, 0
        %v885 = vsel %vm605, %v874, 0
        %887 = vmatpush.xpose.msra.mxu0 0.0
        %888 = vmatpush.xpose.msra.mxu0 0.0
        %889 = vmatpush.xpose.msra.mxu0 0.0
        %890 = vmatpush.xpose.msra.mxu0 0.0
        %891 = vmatpush.xpose.msra.mxu0 0.0
        %892 = vmatpush.xpose.msra.mxu0 0.0
        %893 = vmatpush.xpose.msra.mxu0 0.0
        %894 = vmatpush.xpose.msra.mxu0 0.0
        %895 = vmatpush.xpose.msra.mxu0 0.0
        %896 = vmatpush.xpose.msra.mxu0 0.0
        %897 = vmatpush.xpose.msra.mxu0 0.0
        %898 = vmatpush.xpose.msra.mxu0 0.0
        %899 = vmatpush.xpose.msra.mxu0 0.0
        %900 = vmatpush.xpose.msra.mxu0 %v885
        %901 = vmatpush.xpose.msra.mxu0 %v883
        %902 = vmatpush.xpose.msra.mxu0 %v881
        %903 = vmatmul.f32.gmra.mxu0 %v875
        %v904 = vpop.f32.mrf.mxu0
        %v905 = vadd.f32 0.0, %v904
        %906 = vmatmul.f32.gmra.mxu0 %v877
        %v907 = vpop.f32.mrf.mxu0
        %v908 = vadd.f32 0.0, %v907
        %909 = vmatmul.f32.gmra.mxu0 %v879
        %v910 = vpop.f32.mrf.mxu0
        %v911 = vadd.f32 0.0, %v910
        %912 = vdwg.mxu0
        %v913 = vmul.f32 %v905, 0.35355338
        %v914 = vmul.f32 %v908, 0.35355338
        %v915 = vmul.f32 %v911, 0.35355338
        %v916 = vsel %vm648, %v913, -1e+30
        %v917 = vsel %vm648, %v914, -1e+30
        %v918 = vsel %vm648, %v915, -1e+30
        %v919 = vsel %vm652, %v916, -inf
        %920 = vmax.xlane.f32.xlu0 %v919
        %v921 = vpop.xlane.xlu0 %920
        %v922 = vsel %vm652, %v917, -inf
        %923 = vmax.xlane.f32.xlu0 %v922
        %v924 = vpop.xlane.xlu0 %923
        %v925 = vsel %vm652, %v918, -inf
        %926 = vmax.xlane.f32.xlu0 %v925
        %v927 = vpop.xlane.xlu0 %926
        %v928 = vsub.f32 %v916, %v921
        %v929 = vsub.f32 %v917, %v924
        %v930 = vsub.f32 %v918, %v927
        %v931 = vmul.f32 %v928, 1.442695
        %v932 = vpow.pop %v931
        %v933 = vmul.f32 %v929, 1.442695
        %v934 = vpow.pop %v933
        %v935 = vmul.f32 %v930, 1.442695
        %v936 = vpow.pop %v935
        %v937 = vsel %vm652, %v932, 0.0
        %938 = vadd.xlane.f32.xlu0 %v937
        %v939 = vpop.xlane.xlu0 %938
        %v940 = vsel %vm652, %v934, 0.0
        %941 = vadd.xlane.f32.xlu0 %v940
        %v942 = vpop.xlane.xlu0 %941
        %v943 = vsel %vm652, %v936, 0.0
        %944 = vadd.xlane.f32.xlu0 %v943
        %v945 = vpop.xlane.xlu0 %944
        %v946 = vrcp.pop %v939
        %v947 = vrcp.pop %v942
        %v948 = vrcp.pop %v945
        %v949 = vmul.f32 %v932, %v946
        %v950 = vmul.f32 %v934, %v947
        %v951 = vmul.f32 %v936, %v948
        %952 = vrot.lane.b32.xlu0 %v588, 48
        %v953 = vpop.permute.xlu0 %952
        %954 = vrot.lane.b32.xlu0 %v591, 48
        %v955 = vpop.permute.xlu0 %954
        %956 = vrot.lane.b32.xlu0 %v594, 48
        %v957 = vpop.permute.xlu0 %956
        %v962 = vsel %vm652, %v949, 0
        %v965 = vsel %vm652, %v950, 0
        %v968 = vsel %vm652, %v951, 0
        %970 = vmatpush.msra.mxu0 0.0
        %971 = vmatpush.msra.mxu0 0.0
        %972 = vmatpush.msra.mxu0 0.0
        %973 = vmatpush.msra.mxu0 0.0
        %974 = vmatpush.msra.mxu0 0.0
        %975 = vmatpush.msra.mxu0 0.0
        %976 = vmatpush.msra.mxu0 0.0
        %977 = vmatpush.msra.mxu0 0.0
        %978 = vmatpush.msra.mxu0 0.0
        %979 = vmatpush.msra.mxu0 0.0
        %980 = vmatpush.msra.mxu0 0.0
        %981 = vmatpush.msra.mxu0 0.0
        %982 = vmatpush.msra.mxu0 0.0
        %983 = vmatpush.msra.mxu0 %v957
        %984 = vmatpush.msra.mxu0 %v955
        %985 = vmatpush.msra.mxu0 %v953
        %986 = vmatmul.f32.gmra.mxu0 %v962
        %v987 = vpop.f32.mrf.mxu0
        %v988 = vadd.f32 0.0, %v987
        %989 = vmatmul.f32.gmra.mxu0 %v965
        %v990 = vpop.f32.mrf.mxu0
        %v991 = vadd.f32 0.0, %v990
        %992 = vmatmul.f32.gmra.mxu0 %v968
        %v993 = vpop.f32.mrf.mxu0
        %v994 = vadd.f32 0.0, %v993
        %995 = vdwg.mxu0
        %996 = vrot.lane.b32.xlu0 %v588, 104
        %v997 = vpop.permute.xlu0 %996
        %998 = vrot.lane.b32.xlu0 %v591, 104
        %v999 = vpop.permute.xlu0 %998
        %1000 = vrot.lane.b32.xlu0 %v594, 104
        %v1001 = vpop.permute.xlu0 %1000
        %1002 = vrot.lane.b32.xlu0 %v588, 72
        %v1003 = vpop.permute.xlu0 %1002
        %1004 = vrot.lane.b32.xlu0 %v591, 72
        %v1005 = vpop.permute.xlu0 %1004
        %1006 = vrot.lane.b32.xlu0 %v594, 72
        %v1007 = vpop.permute.xlu0 %1006
        %v1008 = vsel %vm605, %v997, 0
        %v1010 = vsel %vm605, %v999, 0
        %v1012 = vsel %vm605, %v1001, 0
        %v1014 = vsel %vm605, %v1003, 0
        %v1016 = vsel %vm605, %v1005, 0
        %v1018 = vsel %vm605, %v1007, 0
        %1020 = vmatpush.xpose.msra.mxu0 0.0
        %1021 = vmatpush.xpose.msra.mxu0 0.0
        %1022 = vmatpush.xpose.msra.mxu0 0.0
        %1023 = vmatpush.xpose.msra.mxu0 0.0
        %1024 = vmatpush.xpose.msra.mxu0 0.0
        %1025 = vmatpush.xpose.msra.mxu0 0.0
        %1026 = vmatpush.xpose.msra.mxu0 0.0
        %1027 = vmatpush.xpose.msra.mxu0 0.0
        %1028 = vmatpush.xpose.msra.mxu0 0.0
        %1029 = vmatpush.xpose.msra.mxu0 0.0
        %1030 = vmatpush.xpose.msra.mxu0 0.0
        %1031 = vmatpush.xpose.msra.mxu0 0.0
        %1032 = vmatpush.xpose.msra.mxu0 0.0
        %1033 = vmatpush.xpose.msra.mxu0 %v1018
        %1034 = vmatpush.xpose.msra.mxu0 %v1016
        %1035 = vmatpush.xpose.msra.mxu0 %v1014
        %1036 = vmatmul.f32.gmra.mxu0 %v1008
        %v1037 = vpop.f32.mrf.mxu0
        %v1038 = vadd.f32 0.0, %v1037
        %1039 = vmatmul.f32.gmra.mxu0 %v1010
        %v1040 = vpop.f32.mrf.mxu0
        %v1041 = vadd.f32 0.0, %v1040
        %1042 = vmatmul.f32.gmra.mxu0 %v1012
        %v1043 = vpop.f32.mrf.mxu0
        %v1044 = vadd.f32 0.0, %v1043
        %1045 = vdwg.mxu0
        %v1046 = vmul.f32 %v1038, 0.35355338
        %v1047 = vmul.f32 %v1041, 0.35355338
        %v1048 = vmul.f32 %v1044, 0.35355338
        %v1049 = vsel %vm648, %v1046, -1e+30
        %v1050 = vsel %vm648, %v1047, -1e+30
        %v1051 = vsel %vm648, %v1048, -1e+30
        %v1052 = vsel %vm652, %v1049, -inf
        %1053 = vmax.xlane.f32.xlu0 %v1052
        %v1054 = vpop.xlane.xlu0 %1053
        %v1055 = vsel %vm652, %v1050, -inf
        %1056 = vmax.xlane.f32.xlu0 %v1055
        %v1057 = vpop.xlane.xlu0 %1056
        %v1058 = vsel %vm652, %v1051, -inf
        %1059 = vmax.xlane.f32.xlu0 %v1058
        %v1060 = vpop.xlane.xlu0 %1059
        %v1061 = vsub.f32 %v1049, %v1054
        %v1062 = vsub.f32 %v1050, %v1057
        %v1063 = vsub.f32 %v1051, %v1060
        %v1064 = vmul.f32 %v1061, 1.442695
        %v1065 = vpow.pop %v1064
        %v1066 = vmul.f32 %v1062, 1.442695
        %v1067 = vpow.pop %v1066
        %v1068 = vmul.f32 %v1063, 1.442695
        %v1069 = vpow.pop %v1068
        %v1070 = vsel %vm652, %v1065, 0.0
        %1071 = vadd.xlane.f32.xlu0 %v1070
        %v1072 = vpop.xlane.xlu0 %1071
        %v1073 = vsel %vm652, %v1067, 0.0
        %1074 = vadd.xlane.f32.xlu0 %v1073
        %v1075 = vpop.xlane.xlu0 %1074
        %v1076 = vsel %vm652, %v1069, 0.0
        %1077 = vadd.xlane.f32.xlu0 %v1076
        %v1078 = vpop.xlane.xlu0 %1077
        %v1079 = vrcp.pop %v1072
        %v1080 = vrcp.pop %v1075
        %v1081 = vrcp.pop %v1078
        %v1082 = vmul.f32 %v1065, %v1079
        %v1083 = vmul.f32 %v1067, %v1080
        %v1084 = vmul.f32 %v1069, %v1081
        %1085 = vrot.lane.b32.xlu0 %v588, 40
        %v1086 = vpop.permute.xlu0 %1085
        %1087 = vrot.lane.b32.xlu0 %v591, 40
        %v1088 = vpop.permute.xlu0 %1087
        %1089 = vrot.lane.b32.xlu0 %v594, 40
        %v1090 = vpop.permute.xlu0 %1089
        %v1095 = vsel %vm652, %v1082, 0
        %v1098 = vsel %vm652, %v1083, 0
        %v1101 = vsel %vm652, %v1084, 0
        %1103 = vmatpush.msra.mxu0 0.0
        %1104 = vmatpush.msra.mxu0 0.0
        %1105 = vmatpush.msra.mxu0 0.0
        %1106 = vmatpush.msra.mxu0 0.0
        %1107 = vmatpush.msra.mxu0 0.0
        %1108 = vmatpush.msra.mxu0 0.0
        %1109 = vmatpush.msra.mxu0 0.0
        %1110 = vmatpush.msra.mxu0 0.0
        %1111 = vmatpush.msra.mxu0 0.0
        %1112 = vmatpush.msra.mxu0 0.0
        %1113 = vmatpush.msra.mxu0 0.0
        %1114 = vmatpush.msra.mxu0 0.0
        %1115 = vmatpush.msra.mxu0 0.0
        %1116 = vmatpush.msra.mxu0 %v1090
        %1117 = vmatpush.msra.mxu0 %v1088
        %1118 = vmatpush.msra.mxu0 %v1086
        %1119 = vmatmul.f32.gmra.mxu0 %v1095
        %v1120 = vpop.f32.mrf.mxu0
        %v1121 = vadd.f32 0.0, %v1120
        %1122 = vmatmul.f32.gmra.mxu0 %v1098
        %v1123 = vpop.f32.mrf.mxu0
        %v1124 = vadd.f32 0.0, %v1123
        %1125 = vmatmul.f32.gmra.mxu0 %v1101
        %v1126 = vpop.f32.mrf.mxu0
        %v1127 = vadd.f32 0.0, %v1126
        %1128 = vdwg.mxu0
        %1132 = vrot.lane.b32.xlu0 %v855, 8
        %v1133 = vpop.permute.xlu0 %1132
        %1134 = vrot.lane.b32.xlu0 %v858, 8
        %v1135 = vpop.permute.xlu0 %1134
        %1136 = vrot.lane.b32.xlu0 %v861, 8
        %v1137 = vpop.permute.xlu0 %1136
        %1144 = vrot.lane.b32.xlu0 %v988, 16
        %v1145 = vpop.permute.xlu0 %1144
        %1146 = vrot.lane.b32.xlu0 %v991, 16
        %v1147 = vpop.permute.xlu0 %1146
        %1148 = vrot.lane.b32.xlu0 %v994, 16
        %v1149 = vpop.permute.xlu0 %1148
        %1156 = vrot.lane.b32.xlu0 %v1121, 24
        %v1157 = vpop.permute.xlu0 %1156
        %1158 = vrot.lane.b32.xlu0 %v1124, 24
        %v1159 = vpop.permute.xlu0 %1158
        %1160 = vrot.lane.b32.xlu0 %v1127, 24
        %v1161 = vpop.permute.xlu0 %1160
        %v1165 = vsel %vm605, %v722, %v1133
        %v1166 = vsel %vm605, %v725, %v1135
        %v1167 = vsel %vm605, %v728, %v1137
        %vm1168 = vcmask 130048
        %v1169 = vsel %vm1168, %v1165, %v1145
        %v1170 = vsel %vm1168, %v1166, %v1147
        %v1171 = vsel %vm1168, %v1167, %v1149
        %v1172 = vsel %vm652, %v1169, %v1157
        %v1173 = vsel %vm652, %v1170, %v1159
        %v1174 = vsel %vm652, %v1171, %v1161
        %v1175 = vld [vmem:[%s3] sm:$0xff]
        %v1176 = vld [vmem:[%s3 + $0x8] sm:$0xff]
        %v1177 = vld [vmem:[%s3 + $0x10] sm:$0xff]
        %v1178 = vld [vmem:[%s3 + $0x18] sm:$0xff]
        %v1179 = vld [vmem:[%s4] sm:$0x1]
        %v1181 = vperm.slane %v1179, 0
        %v1184 = vsel %vm560, %v1172, 0
        %v1187 = vsel %vm560, %v1173, 0
        %v1190 = vsel %vm560, %v1174, 0
        %1192 = vmatpush.msra.mxu0 0.0
        %1193 = vmatpush.msra.mxu0 0.0
        %1194 = vmatpush.msra.mxu0 0.0
        %1195 = vmatpush.msra.mxu0 0.0
        %1196 = vmatpush.msra.mxu0 0.0
        %1197 = vmatpush.msra.mxu0 0.0
        %1198 = vmatpush.msra.mxu0 0.0
        %1199 = vmatpush.msra.mxu0 0.0
        %1200 = vmatpush.msra.mxu0 0.0
        %1201 = vmatpush.msra.mxu0 0.0
        %1202 = vmatpush.msra.mxu0 0.0
        %1203 = vmatpush.msra.mxu0 0.0
        %1204 = vmatpush.msra.mxu0 %v1178
        %1205 = vmatpush.msra.mxu0 %v1177
        %1206 = vmatpush.msra.mxu0 %v1176
        %1207 = vmatpush.msra.mxu0 %v1175
        %1208 = vmatmul.f32.gmra.mxu0 %v1184
        %v1209 = vpop.f32.mrf.mxu0
        %v1210 = vadd.f32 %v1181, %v1209
        %1211 = vmatmul.f32.gmra.mxu0 %v1187
        %v1212 = vpop.f32.mrf.mxu0
        %v1213 = vadd.f32 %v1181, %v1212
        %1214 = vmatmul.f32.gmra.mxu0 %v1190
        %v1215 = vpop.f32.mrf.mxu0
        %v1216 = vadd.f32 %v1181, %v1215
        %1217 = vdwg.mxu0
        %v1218 = vadd.f32 %v546, %v1210
        %v1219 = vadd.f32 %v547, %v1213
        %v1220 = vadd.f32 %v548, %v1216
        %v1221 = vld [vmem:[%s5] sm:$0x1]
        %v1222 = vld [vmem:[%s6] sm:$0x1]
        %v1223 = vsel %vm560, %v1218, 0.0
        %1224 = vadd.xlane.f32.xlu0 %v1223
        %v1225 = vpop.xlane.xlu0 %1224
        %v1226 = vsel %vm560, %v1219, 0.0
        %1227 = vadd.xlane.f32.xlu0 %v1226
        %v1228 = vpop.xlane.xlu0 %1227
        %v1229 = vsel %vm560, %v1220, 0.0
        %1230 = vadd.xlane.f32.xlu0 %v1229
        %v1231 = vpop.xlane.xlu0 %1230
        %v1232 = vrcp.pop 32.0
        %v1233 = vmul.f32 32.0, %v1232
        %v1234 = vsub.f32 1.0, %v1233
        %v1235 = vmul.f32 %v1232, %v1234
        %v1236 = vadd.f32 %v1232, %v1235
        %vm1237 = vweird.f32 %v1232
        %v1238 = vsel %vm1237, %v1232, %v1236
        %v1239 = vmul.f32 %v1225, %v1238
        %v1240 = vmul.f32 %v1228, %v1238
        %v1241 = vmul.f32 %v1231, %v1238
        %v1242 = vsub.f32 %v1218, %v1239
        %v1243 = vsub.f32 %v1219, %v1240
        %v1244 = vsub.f32 %v1220, %v1241
        %v1245 = vmul.f32 %v1242, %v1242
        %v1246 = vmul.f32 %v1243, %v1243
        %v1247 = vmul.f32 %v1244, %v1244
        %v1248 = vsel %vm560, %v1245, 0.0
        %1249 = vadd.xlane.f32.xlu0 %v1248
        %v1250 = vpop.xlane.xlu0 %1249
        %v1251 = vsel %vm560, %v1246, 0.0
        %1252 = vadd.xlane.f32.xlu0 %v1251
        %v1253 = vpop.xlane.xlu0 %1252
        %v1254 = vsel %vm560, %v1247, 0.0
        %1255 = vadd.xlane.f32.xlu0 %v1254
        %v1256 = vpop.xlane.xlu0 %1255
        %v1257 = vmul.f32 %v1250, %v1238
        %v1258 = vmul.f32 %v1253, %v1238
        %v1259 = vmul.f32 %v1256, %v1238
        %v1260 = vadd.f32 %v1257, 1e-05
        %v1261 = vadd.f32 %v1258, 1e-05
        %v1262 = vadd.f32 %v1259, 1e-05
        %v1263 = vrsqrt.pop %v1260
        %v1264 = vmul.f32 %v1263, %v1260
        %v1265 = vmul.f32 %v1264, %v1263
        %v1266 = vmul.f32 0.5, %v1265
        %v1267 = vsub.f32 1.5, %v1266
        %v1268 = vmul.f32 %v1263, %v1267
        %vm1269 = vweird.f32 %v1260
        %vm1270 = vweird.f32 %v1263
        %vm1271 = vmor %vm1269, %vm1270
        %v1272 = vsel %vm1271, %v1263, %v1268
        %v1273 = vrsqrt.pop %v1261
        %v1274 = vmul.f32 %v1273, %v1261
        %v1275 = vmul.f32 %v1274, %v1273
        %v1276 = vmul.f32 0.5, %v1275
        %v1277 = vsub.f32 1.5, %v1276
        %v1278 = vmul.f32 %v1273, %v1277
        %vm1279 = vweird.f32 %v1261
        %vm1280 = vweird.f32 %v1273
        %vm1281 = vmor %vm1279, %vm1280
        %v1282 = vsel %vm1281, %v1273, %v1278
        %v1283 = vrsqrt.pop %v1262
        %v1284 = vmul.f32 %v1283, %v1262
        %v1285 = vmul.f32 %v1284, %v1283
        %v1286 = vmul.f32 0.5, %v1285
        %v1287 = vsub.f32 1.5, %v1286
        %v1288 = vmul.f32 %v1283, %v1287
        %vm1289 = vweird.f32 %v1262
        %vm1290 = vweird.f32 %v1283
        %vm1291 = vmor %vm1289, %vm1290
        %v1292 = vsel %vm1291, %v1283, %v1288
        %v1293 = vmul.f32 %v1242, %v1272
        %v1294 = vmul.f32 %v1243, %v1282
        %v1295 = vmul.f32 %v1244, %v1292
        %v1297 = vperm.slane %v1221, 0
        %v1299 = vmul.f32 %v1293, %v1297
        %v1300 = vmul.f32 %v1294, %v1297
        %v1301 = vmul.f32 %v1295, %v1297
        %v1303 = vperm.slane %v1222, 0
        %v1305 = vadd.f32 %v1299, %v1303
        %v1306 = vadd.f32 %v1300, %v1303
        %v1307 = vadd.f32 %v1301, %v1303
        %v1308 = vld [vmem:[%s7] sm:$0xff]
        %v1309 = vld [vmem:[%s7 + $0x8] sm:$0xff]
        %v1310 = vld [vmem:[%s7 + $0x10] sm:$0xff]
        %v1311 = vld [vmem:[%s7 + $0x18] sm:$0xff]
        %v1312 = vld [vmem:[%s8] sm:$0x1]
        %v1314 = vperm.slane %v1312, 0
        %v1317 = vsel %vm560, %v1305, 0
        %v1320 = vsel %vm560, %v1306, 0
        %v1323 = vsel %vm560, %v1307, 0
        %1325 = vmatpush.msra.mxu0 0.0
        %1326 = vmatpush.msra.mxu0 0.0
        %1327 = vmatpush.msra.mxu0 0.0
        %1328 = vmatpush.msra.mxu0 0.0
        %1329 = vmatpush.msra.mxu0 0.0
        %1330 = vmatpush.msra.mxu0 0.0
        %1331 = vmatpush.msra.mxu0 0.0
        %1332 = vmatpush.msra.mxu0 0.0
        %1333 = vmatpush.msra.mxu0 0.0
        %1334 = vmatpush.msra.mxu0 0.0
        %1335 = vmatpush.msra.mxu0 0.0
        %1336 = vmatpush.msra.mxu0 0.0
        %1337 = vmatpush.msra.mxu0 %v1311
        %1338 = vmatpush.msra.mxu0 %v1310
        %1339 = vmatpush.msra.mxu0 %v1309
        %1340 = vmatpush.msra.mxu0 %v1308
        %1341 = vmatmul.f32.gmra.mxu0 %v1317
        %v1342 = vpop.f32.mrf.mxu0
        %v1343 = vadd.f32 %v1314, %v1342
        %1344 = vmatmul.f32.gmra.mxu0 %v1320
        %v1345 = vpop.f32.mrf.mxu0
        %v1346 = vadd.f32 %v1314, %v1345
        %1347 = vmatmul.f32.gmra.mxu0 %v1323
        %v1348 = vpop.f32.mrf.mxu0
        %v1349 = vadd.f32 %v1314, %v1348
        %1350 = vdwg.mxu0
        %v1351 = vmax.f32 %v1343, 0.0
        %v1352 = vmax.f32 %v1346, 0.0
        %v1353 = vmax.f32 %v1349, 0.0
        %v1354 = vld [vmem:[%s9] sm:$0xff]
        %v1355 = vld [vmem:[%s9 + $0x8] sm:$0xff]
        %v1356 = vld [vmem:[%s9 + $0x10] sm:$0xff]
        %v1357 = vld [vmem:[%s9 + $0x18] sm:$0xff]
        %v1358 = vld [vmem:[%s9 + $0x20] sm:$0xff]
        %v1359 = vld [vmem:[%s9 + $0x28] sm:$0xff]
        %v1360 = vld [vmem:[%s9 + $0x30] sm:$0xff]
        %v1361 = vld [vmem:[%s9 + $0x38] sm:$0xff]
        %v1362 = vld [vmem:[%s10] sm:$0x1]
        %v1364 = vperm.slane %v1362, 0
        %vm1366 = vcmask 523264
        %v1368 = vsel %vm1366, %v1351, 0
        %v1371 = vsel %vm1366, %v1352, 0
        %v1374 = vsel %vm1366, %v1353, 0
        %1376 = vmatpush.msra.mxu0 0.0
        %1377 = vmatpush.msra.mxu0 0.0
        %1378 = vmatpush.msra.mxu0 0.0
        %1379 = vmatpush.msra.mxu0 0.0
        %1380 = vmatpush.msra.mxu0 0.0
        %1381 = vmatpush.msra.mxu0 0.0
        %1382 = vmatpush.msra.mxu0 0.0
        %1383 = vmatpush.msra.mxu0 0.0
        %1384 = vmatpush.msra.mxu0 %v1361
        %1385 = vmatpush.msra.mxu0 %v1360
        %1386 = vmatpush.msra.mxu0 %v1359
        %1387 = vmatpush.msra.mxu0 %v1358
        %1388 = vmatpush.msra.mxu0 %v1357
        %1389 = vmatpush.msra.mxu0 %v1356
        %1390 = vmatpush.msra.mxu0 %v1355
        %1391 = vmatpush.msra.mxu0 %v1354
        %1392 = vmatmul.f32.gmra.mxu0 %v1368
        %v1393 = vpop.f32.mrf.mxu0
        %v1394 = vadd.f32 %v1364, %v1393
        %1395 = vmatmul.f32.gmra.mxu0 %v1371
        %v1396 = vpop.f32.mrf.mxu0
        %v1397 = vadd.f32 %v1364, %v1396
        %1398 = vmatmul.f32.gmra.mxu0 %v1374
        %v1399 = vpop.f32.mrf.mxu0
        %v1400 = vadd.f32 %v1364, %v1399
        %1401 = vdwg.mxu0
        %v1402 = vadd.f32 %v1305, %v1394
        %v1403 = vadd.f32 %v1306, %v1397
        %v1404 = vadd.f32 %v1307, %v1400
        %v1405 = vld [vmem:[%s11] sm:$0x1]
        %v1406 = vld [vmem:[%s12] sm:$0x1]
        %v1407 = vsel %vm560, %v1402, 0.0
        %1408 = vadd.xlane.f32.xlu0 %v1407
        %v1409 = vpop.xlane.xlu0 %1408
        %v1410 = vsel %vm560, %v1403, 0.0
        %1411 = vadd.xlane.f32.xlu0 %v1410
        %v1412 = vpop.xlane.xlu0 %1411
        %v1413 = vsel %vm560, %v1404, 0.0
        %1414 = vadd.xlane.f32.xlu0 %v1413
        %v1415 = vpop.xlane.xlu0 %1414
        %v1416 = vmul.f32 %v1409, %v1238
        %v1417 = vmul.f32 %v1412, %v1238
        %v1418 = vmul.f32 %v1415, %v1238
        %v1419 = vsub.f32 %v1402, %v1416
        %v1420 = vsub.f32 %v1403, %v1417
        %v1421 = vsub.f32 %v1404, %v1418
        %v1422 = vmul.f32 %v1419, %v1419
        %v1423 = vmul.f32 %v1420, %v1420
        %v1424 = vmul.f32 %v1421, %v1421
        %v1425 = vsel %vm560, %v1422, 0.0
        %1426 = vadd.xlane.f32.xlu0 %v1425
        %v1427 = vpop.xlane.xlu0 %1426
        %v1428 = vsel %vm560, %v1423, 0.0
        %1429 = vadd.xlane.f32.xlu0 %v1428
        %v1430 = vpop.xlane.xlu0 %1429
        %v1431 = vsel %vm560, %v1424, 0.0
        %1432 = vadd.xlane.f32.xlu0 %v1431
        %v1433 = vpop.xlane.xlu0 %1432
        %v1434 = vmul.f32 %v1427, %v1238
        %v1435 = vmul.f32 %v1430, %v1238
        %v1436 = vmul.f32 %v1433, %v1238
        %v1437 = vadd.f32 %v1434, 1e-05
        %v1438 = vadd.f32 %v1435, 1e-05
        %v1439 = vadd.f32 %v1436, 1e-05
        %v1440 = vrsqrt.pop %v1437
        %v1441 = vmul.f32 %v1440, %v1437
        %v1442 = vmul.f32 %v1441, %v1440
        %v1443 = vmul.f32 0.5, %v1442
        %v1444 = vsub.f32 1.5, %v1443
        %v1445 = vmul.f32 %v1440, %v1444
        %vm1446 = vweird.f32 %v1437
        %vm1447 = vweird.f32 %v1440
        %vm1448 = vmor %vm1446, %vm1447
        %v1449 = vsel %vm1448, %v1440, %v1445
        %v1450 = vrsqrt.pop %v1438
        %v1451 = vmul.f32 %v1450, %v1438
        %v1452 = vmul.f32 %v1451, %v1450
        %v1453 = vmul.f32 0.5, %v1452
        %v1454 = vsub.f32 1.5, %v1453
        %v1455 = vmul.f32 %v1450, %v1454
        %vm1456 = vweird.f32 %v1438
        %vm1457 = vweird.f32 %v1450
        %vm1458 = vmor %vm1456, %vm1457
        %v1459 = vsel %vm1458, %v1450, %v1455
        %v1460 = vrsqrt.pop %v1439
        %v1461 = vmul.f32 %v1460, %v1439
        %v1462 = vmul.f32 %v1461, %v1460
        %v1463 = vmul.f32 0.5, %v1462
        %v1464 = vsub.f32 1.5, %v1463
        %v1465 = vmul.f32 %v1460, %v1464
        %vm1466 = vweird.f32 %v1439
        %vm1467 = vweird.f32 %v1460
        %vm1468 = vmor %vm1466, %vm1467
        %v1469 = vsel %vm1468, %v1460, %v1465
        %v1470 = vmul.f32 %v1419, %v1449
        %v1471 = vmul.f32 %v1420, %v1459
        %v1472 = vmul.f32 %v1421, %v1469
        %v1474 = vperm.slane %v1405, 0
        %v1476 = vmul.f32 %v1470, %v1474
        %v1477 = vmul.f32 %v1471, %v1474
        %v1478 = vmul.f32 %v1472, %v1474
        %v1480 = vperm.slane %v1406, 0
        %v1482 = vadd.f32 %v1476, %v1480
        %v1483 = vadd.f32 %v1477, %v1480
        %v1484 = vadd.f32 %v1478, %v1480
        %s1485 = scalar_lea.vmem %s1, 32
        %v1486 = vld [vmem:[%s1485] sm:$0xff]
        %v1487 = vld [vmem:[%s1485 + $0x8] sm:$0xff]
        %v1488 = vld [vmem:[%s1485 + $0x10] sm:$0xff]
        %v1489 = vld [vmem:[%s1485 + $0x18] sm:$0xff]
        %s1490 = scalar_lea.vmem %s2, 1
        %v1491 = vld [vmem:[%s1490] sm:$0x1]
        %v1493 = vperm.slane %v1491, 0
        %v1496 = vsel %vm560, %v1482, 0
        %v1499 = vsel %vm560, %v1483, 0
        %v1502 = vsel %vm560, %v1484, 0
        %1504 = vmatpush.msra.mxu0 0.0
        %1505 = vmatpush.msra.mxu0 0.0
        %1506 = vmatpush.msra.mxu0 0.0
        %1507 = vmatpush.msra.mxu0 0.0
        %1508 = vmatpush.msra.mxu0 0.0
        %1509 = vmatpush.msra.mxu0 0.0
        %1510 = vmatpush.msra.mxu0 0.0
        %1511 = vmatpush.msra.mxu0 0.0
        %1512 = vmatpush.msra.mxu0 0.0
        %1513 = vmatpush.msra.mxu0 0.0
        %1514 = vmatpush.msra.mxu0 0.0
        %1515 = vmatpush.msra.mxu0 0.0
        %1516 = vmatpush.msra.mxu0 %v1489
        %1517 = vmatpush.msra.mxu0 %v1488
        %1518 = vmatpush.msra.mxu0 %v1487
        %1519 = vmatpush.msra.mxu0 %v1486
        %1520 = vmatmul.f32.gmra.mxu0 %v1496
        %v1521 = vpop.f32.mrf.mxu0
        %v1522 = vadd.f32 %v1493, %v1521
        %1523 = vmatmul.f32.gmra.mxu0 %v1499
        %v1524 = vpop.f32.mrf.mxu0
        %v1525 = vadd.f32 %v1493, %v1524
        %1526 = vmatmul.f32.gmra.mxu0 %v1502
        %v1527 = vpop.f32.mrf.mxu0
        %v1528 = vadd.f32 %v1493, %v1527
        %1529 = vdwg.mxu0
        %1533 = vrot.lane.b32.xlu0 %v1522, 96
        %v1534 = vpop.permute.xlu0 %1533
        %1535 = vrot.lane.b32.xlu0 %v1525, 96
        %v1536 = vpop.permute.xlu0 %1535
        %1537 = vrot.lane.b32.xlu0 %v1528, 96
        %v1538 = vpop.permute.xlu0 %1537
        %v1539 = vsel %vm605, %v1522, 0
        %v1541 = vsel %vm605, %v1525, 0
        %v1543 = vsel %vm605, %v1528, 0
        %v1545 = vsel %vm605, %v1534, 0
        %v1547 = vsel %vm605, %v1536, 0
        %v1549 = vsel %vm605, %v1538, 0
        %1551 = vmatpush.xpose.msra.mxu0 0.0
        %1552 = vmatpush.xpose.msra.mxu0 0.0
        %1553 = vmatpush.xpose.msra.mxu0 0.0
        %1554 = vmatpush.xpose.msra.mxu0 0.0
        %1555 = vmatpush.xpose.msra.mxu0 0.0
        %1556 = vmatpush.xpose.msra.mxu0 0.0
        %1557 = vmatpush.xpose.msra.mxu0 0.0
        %1558 = vmatpush.xpose.msra.mxu0 0.0
        %1559 = vmatpush.xpose.msra.mxu0 0.0
        %1560 = vmatpush.xpose.msra.mxu0 0.0
        %1561 = vmatpush.xpose.msra.mxu0 0.0
        %1562 = vmatpush.xpose.msra.mxu0 0.0
        %1563 = vmatpush.xpose.msra.mxu0 0.0
        %1564 = vmatpush.xpose.msra.mxu0 %v1549
        %1565 = vmatpush.xpose.msra.mxu0 %v1547
        %1566 = vmatpush.xpose.msra.mxu0 %v1545
        %1567 = vmatmul.f32.gmra.mxu0 %v1539
        %v1568 = vpop.f32.mrf.mxu0
        %v1569 = vadd.f32 0.0, %v1568
        %1570 = vmatmul.f32.gmra.mxu0 %v1541
        %v1571 = vpop.f32.mrf.mxu0
        %v1572 = vadd.f32 0.0, %v1571
        %1573 = vmatmul.f32.gmra.mxu0 %v1543
        %v1574 = vpop.f32.mrf.mxu0
        %v1575 = vadd.f32 0.0, %v1574
        %1576 = vdwg.mxu0
        %v1577 = vmul.f32 %v1569, 0.35355338
        %v1578 = vmul.f32 %v1572, 0.35355338
        %v1579 = vmul.f32 %v1575, 0.35355338
        %v1580 = vsel %vm648, %v1577, -1e+30
        %v1581 = vsel %vm648, %v1578, -1e+30
        %v1582 = vsel %vm648, %v1579, -1e+30
        %v1583 = vsel %vm652, %v1580, -inf
        %1584 = vmax.xlane.f32.xlu0 %v1583
        %v1585 = vpop.xlane.xlu0 %1584
        %v1586 = vsel %vm652, %v1581, -inf
        %1587 = vmax.xlane.f32.xlu0 %v1586
        %v1588 = vpop.xlane.xlu0 %1587
        %v1589 = vsel %vm652, %v1582, -inf
        %1590 = vmax.xlane.f32.xlu0 %v1589
        %v1591 = vpop.xlane.xlu0 %1590
        %v1592 = vsub.f32 %v1580, %v1585
        %v1593 = vsub.f32 %v1581, %v1588
        %v1594 = vsub.f32 %v1582, %v1591
        %v1595 = vmul.f32 %v1592, 1.442695
        %v1596 = vpow.pop %v1595
        %v1597 = vmul.f32 %v1593, 1.442695
        %v1598 = vpow.pop %v1597
        %v1599 = vmul.f32 %v1594, 1.442695
        %v1600 = vpow.pop %v1599
        %v1601 = vsel %vm652, %v1596, 0.0
        %1602 = vadd.xlane.f32.xlu0 %v1601
        %v1603 = vpop.xlane.xlu0 %1602
        %v1604 = vsel %vm652, %v1598, 0.0
        %1605 = vadd.xlane.f32.xlu0 %v1604
        %v1606 = vpop.xlane.xlu0 %1605
        %v1607 = vsel %vm652, %v1600, 0.0
        %1608 = vadd.xlane.f32.xlu0 %v1607
        %v1609 = vpop.xlane.xlu0 %1608
        %v1610 = vrcp.pop %v1603
        %v1611 = vrcp.pop %v1606
        %v1612 = vrcp.pop %v1609
        %v1613 = vmul.f32 %v1596, %v1610
        %v1614 = vmul.f32 %v1598, %v1611
        %v1615 = vmul.f32 %v1600, %v1612
        %1616 = vrot.lane.b32.xlu0 %v1522, 64
        %v1617 = vpop.permute.xlu0 %1616
        %1618 = vrot.lane.b32.xlu0 %v1525, 64
        %v1619 = vpop.permute.xlu0 %1618
        %1620 = vrot.lane.b32.xlu0 %v1528, 64
        %v1621 = vpop.permute.xlu0 %1620
        %v1626 = vsel %vm652, %v1613, 0
        %v1629 = vsel %vm652, %v1614, 0
        %v1632 = vsel %vm652, %v1615, 0
        %1634 = vmatpush.msra.mxu0 0.0
        %1635 = vmatpush.msra.mxu0 0.0
        %1636 = vmatpush.msra.mxu0 0.0
        %1637 = vmatpush.msra.mxu0 0.0
        %1638 = vmatpush.msra.mxu0 0.0
        %1639 = vmatpush.msra.mxu0 0.0
        %1640 = vmatpush.msra.mxu0 0.0
        %1641 = vmatpush.msra.mxu0 0.0
        %1642 = vmatpush.msra.mxu0 0.0
        %1643 = vmatpush.msra.mxu0 0.0
        %1644 = vmatpush.msra.mxu0 0.0
        %1645 = vmatpush.msra.mxu0 0.0
        %1646 = vmatpush.msra.mxu0 0.0
        %1647 = vmatpush.msra.mxu0 %v1621
        %1648 = vmatpush.msra.mxu0 %v1619
        %1649 = vmatpush.msra.mxu0 %v1617
        %1650 = vmatmul.f32.gmra.mxu0 %v1626
        %v1651 = vpop.f32.mrf.mxu0
        %v1652 = vadd.f32 0.0, %v1651
        %1653 = vmatmul.f32.gmra.mxu0 %v1629
        %v1654 = vpop.f32.mrf.mxu0
        %v1655 = vadd.f32 0.0, %v1654
        %1656 = vmatmul.f32.gmra.mxu0 %v1632
        %v1657 = vpop.f32.mrf.mxu0
        %v1658 = vadd.f32 0.0, %v1657
        %1659 = vdwg.mxu0
        %1660 = vrot.lane.b32.xlu0 %v1522, 120
        %v1661 = vpop.permute.xlu0 %1660
        %1662 = vrot.lane.b32.xlu0 %v1525, 120
        %v1663 = vpop.permute.xlu0 %1662
        %1664 = vrot.lane.b32.xlu0 %v1528, 120
        %v1665 = vpop.permute.xlu0 %1664
        %1666 = vrot.lane.b32.xlu0 %v1522, 88
        %v1667 = vpop.permute.xlu0 %1666
        %1668 = vrot.lane.b32.xlu0 %v1525, 88
        %v1669 = vpop.permute.xlu0 %1668
        %1670 = vrot.lane.b32.xlu0 %v1528, 88
        %v1671 = vpop.permute.xlu0 %1670
        %v1672 = vsel %vm605, %v1661, 0
        %v1674 = vsel %vm605, %v1663, 0
        %v1676 = vsel %vm605, %v1665, 0
        %v1678 = vsel %vm605, %v1667, 0
        %v1680 = vsel %vm605, %v1669, 0
        %v1682 = vsel %vm605, %v1671, 0
        %1684 = vmatpush.xpose.msra.mxu0 0.0
        %1685 = vmatpush.xpose.msra.mxu0 0.0
        %1686 = vmatpush.xpose.msra.mxu0 0.0
        %1687 = vmatpush.xpose.msra.mxu0 0.0
        %1688 = vmatpush.xpose.msra.mxu0 0.0
        %1689 = vmatpush.xpose.msra.mxu0 0.0
        %1690 = vmatpush.xpose.msra.mxu0 0.0
        %1691 = vmatpush.xpose.msra.mxu0 0.0
        %1692 = vmatpush.xpose.msra.mxu0 0.0
        %1693 = vmatpush.xpose.msra.mxu0 0.0
        %1694 = vmatpush.xpose.msra.mxu0 0.0
        %1695 = vmatpush.xpose.msra.mxu0 0.0
        %1696 = vmatpush.xpose.msra.mxu0 0.0
        %1697 = vmatpush.xpose.msra.mxu0 %v1682
        %1698 = vmatpush.xpose.msra.mxu0 %v1680
        %1699 = vmatpush.xpose.msra.mxu0 %v1678
        %1700 = vmatmul.f32.gmra.mxu0 %v1672
        %v1701 = vpop.f32.mrf.mxu0
        %v1702 = vadd.f32 0.0, %v1701
        %1703 = vmatmul.f32.gmra.mxu0 %v1674
        %v1704 = vpop.f32.mrf.mxu0
        %v1705 = vadd.f32 0.0, %v1704
        %1706 = vmatmul.f32.gmra.mxu0 %v1676
        %v1707 = vpop.f32.mrf.mxu0
        %v1708 = vadd.f32 0.0, %v1707
        %1709 = vdwg.mxu0
        %v1710 = vmul.f32 %v1702, 0.35355338
        %v1711 = vmul.f32 %v1705, 0.35355338
        %v1712 = vmul.f32 %v1708, 0.35355338
        %v1713 = vsel %vm648, %v1710, -1e+30
        %v1714 = vsel %vm648, %v1711, -1e+30
        %v1715 = vsel %vm648, %v1712, -1e+30
        %v1716 = vsel %vm652, %v1713, -inf
        %1717 = vmax.xlane.f32.xlu0 %v1716
        %v1718 = vpop.xlane.xlu0 %1717
        %v1719 = vsel %vm652, %v1714, -inf
        %1720 = vmax.xlane.f32.xlu0 %v1719
        %v1721 = vpop.xlane.xlu0 %1720
        %v1722 = vsel %vm652, %v1715, -inf
        %1723 = vmax.xlane.f32.xlu0 %v1722
        %v1724 = vpop.xlane.xlu0 %1723
        %v1725 = vsub.f32 %v1713, %v1718
        %v1726 = vsub.f32 %v1714, %v1721
        %v1727 = vsub.f32 %v1715, %v1724
        %v1728 = vmul.f32 %v1725, 1.442695
        %v1729 = vpow.pop %v1728
        %v1730 = vmul.f32 %v1726, 1.442695
        %v1731 = vpow.pop %v1730
        %v1732 = vmul.f32 %v1727, 1.442695
        %v1733 = vpow.pop %v1732
        %v1734 = vsel %vm652, %v1729, 0.0
        %1735 = vadd.xlane.f32.xlu0 %v1734
        %v1736 = vpop.xlane.xlu0 %1735
        %v1737 = vsel %vm652, %v1731, 0.0
        %1738 = vadd.xlane.f32.xlu0 %v1737
        %v1739 = vpop.xlane.xlu0 %1738
        %v1740 = vsel %vm652, %v1733, 0.0
        %1741 = vadd.xlane.f32.xlu0 %v1740
        %v1742 = vpop.xlane.xlu0 %1741
        %v1743 = vrcp.pop %v1736
        %v1744 = vrcp.pop %v1739
        %v1745 = vrcp.pop %v1742
        %v1746 = vmul.f32 %v1729, %v1743
        %v1747 = vmul.f32 %v1731, %v1744
        %v1748 = vmul.f32 %v1733, %v1745
        %1749 = vrot.lane.b32.xlu0 %v1522, 56
        %v1750 = vpop.permute.xlu0 %1749
        %1751 = vrot.lane.b32.xlu0 %v1525, 56
        %v1752 = vpop.permute.xlu0 %1751
        %1753 = vrot.lane.b32.xlu0 %v1528, 56
        %v1754 = vpop.permute.xlu0 %1753
        %v1759 = vsel %vm652, %v1746, 0
        %v1762 = vsel %vm652, %v1747, 0
        %v1765 = vsel %vm652, %v1748, 0
        %1767 = vmatpush.msra.mxu0 0.0
        %1768 = vmatpush.msra.mxu0 0.0
        %1769 = vmatpush.msra.mxu0 0.0
        %1770 = vmatpush.msra.mxu0 0.0
        %1771 = vmatpush.msra.mxu0 0.0
        %1772 = vmatpush.msra.mxu0 0.0
        %1773 = vmatpush.msra.mxu0 0.0
        %1774 = vmatpush.msra.mxu0 0.0
        %1775 = vmatpush.msra.mxu0 0.0
        %1776 = vmatpush.msra.mxu0 0.0
        %1777 = vmatpush.msra.mxu0 0.0
        %1778 = vmatpush.msra.mxu0 0.0
        %1779 = vmatpush.msra.mxu0 0.0
        %1780 = vmatpush.msra.mxu0 %v1754
        %1781 = vmatpush.msra.mxu0 %v1752
        %1782 = vmatpush.msra.mxu0 %v1750
        %1783 = vmatmul.f32.gmra.mxu0 %v1759
        %v1784 = vpop.f32.mrf.mxu0
        %v1785 = vadd.f32 0.0, %v1784
        %1786 = vmatmul.f32.gmra.mxu0 %v1762
        %v1787 = vpop.f32.mrf.mxu0
        %v1788 = vadd.f32 0.0, %v1787
        %1789 = vmatmul.f32.gmra.mxu0 %v1765
        %v1790 = vpop.f32.mrf.mxu0
        %v1791 = vadd.f32 0.0, %v1790
        %1792 = vdwg.mxu0
        %1793 = vrot.lane.b32.xlu0 %v1522, 112
        %v1794 = vpop.permute.xlu0 %1793
        %1795 = vrot.lane.b32.xlu0 %v1525, 112
        %v1796 = vpop.permute.xlu0 %1795
        %1797 = vrot.lane.b32.xlu0 %v1528, 112
        %v1798 = vpop.permute.xlu0 %1797
        %1799 = vrot.lane.b32.xlu0 %v1522, 80
        %v1800 = vpop.permute.xlu0 %1799
        %1801 = vrot.lane.b32.xlu0 %v1525, 80
        %v1802 = vpop.permute.xlu0 %1801
        %1803 = vrot.lane.b32.xlu0 %v1528, 80
        %v1804 = vpop.permute.xlu0 %1803
        %v1805 = vsel %vm605, %v1794, 0
        %v1807 = vsel %vm605, %v1796, 0
        %v1809 = vsel %vm605, %v1798, 0
        %v1811 = vsel %vm605, %v1800, 0
        %v1813 = vsel %vm605, %v1802, 0
        %v1815 = vsel %vm605, %v1804, 0
        %1817 = vmatpush.xpose.msra.mxu0 0.0
        %1818 = vmatpush.xpose.msra.mxu0 0.0
        %1819 = vmatpush.xpose.msra.mxu0 0.0
        %1820 = vmatpush.xpose.msra.mxu0 0.0
        %1821 = vmatpush.xpose.msra.mxu0 0.0
        %1822 = vmatpush.xpose.msra.mxu0 0.0
        %1823 = vmatpush.xpose.msra.mxu0 0.0
        %1824 = vmatpush.xpose.msra.mxu0 0.0
        %1825 = vmatpush.xpose.msra.mxu0 0.0
        %1826 = vmatpush.xpose.msra.mxu0 0.0
        %1827 = vmatpush.xpose.msra.mxu0 0.0
        %1828 = vmatpush.xpose.msra.mxu0 0.0
        %1829 = vmatpush.xpose.msra.mxu0 0.0
        %1830 = vmatpush.xpose.msra.mxu0 %v1815
        %1831 = vmatpush.xpose.msra.mxu0 %v1813
        %1832 = vmatpush.xpose.msra.mxu0 %v1811
        %1833 = vmatmul.f32.gmra.mxu0 %v1805
        %v1834 = vpop.f32.mrf.mxu0
        %v1835 = vadd.f32 0.0, %v1834
        %1836 = vmatmul.f32.gmra.mxu0 %v1807
        %v1837 = vpop.f32.mrf.mxu0
        %v1838 = vadd.f32 0.0, %v1837
        %1839 = vmatmul.f32.gmra.mxu0 %v1809
        %v1840 = vpop.f32.mrf.mxu0
        %v1841 = vadd.f32 0.0, %v1840
        %1842 = vdwg.mxu0
        %v1843 = vmul.f32 %v1835, 0.35355338
        %v1844 = vmul.f32 %v1838, 0.35355338
        %v1845 = vmul.f32 %v1841, 0.35355338
        %v1846 = vsel %vm648, %v1843, -1e+30
        %v1847 = vsel %vm648, %v1844, -1e+30
        %v1848 = vsel %vm648, %v1845, -1e+30
        %v1849 = vsel %vm652, %v1846, -inf
        %1850 = vmax.xlane.f32.xlu0 %v1849
        %v1851 = vpop.xlane.xlu0 %1850
        %v1852 = vsel %vm652, %v1847, -inf
        %1853 = vmax.xlane.f32.xlu0 %v1852
        %v1854 = vpop.xlane.xlu0 %1853
        %v1855 = vsel %vm652, %v1848, -inf
        %1856 = vmax.xlane.f32.xlu0 %v1855
        %v1857 = vpop.xlane.xlu0 %1856
        %v1858 = vsub.f32 %v1846, %v1851
        %v1859 = vsub.f32 %v1847, %v1854
        %v1860 = vsub.f32 %v1848, %v1857
        %v1861 = vmul.f32 %v1858, 1.442695
        %v1862 = vpow.pop %v1861
        %v1863 = vmul.f32 %v1859, 1.442695
        %v1864 = vpow.pop %v1863
        %v1865 = vmul.f32 %v1860, 1.442695
        %v1866 = vpow.pop %v1865
        %v1867 = vsel %vm652, %v1862, 0.0
        %1868 = vadd.xlane.f32.xlu0 %v1867
        %v1869 = vpop.xlane.xlu0 %1868
        %v1870 = vsel %vm652, %v1864, 0.0
        %1871 = vadd.xlane.f32.xlu0 %v1870
        %v1872 = vpop.xlane.xlu0 %1871
        %v1873 = vsel %vm652, %v1866, 0.0
        %1874 = vadd.xlane.f32.xlu0 %v1873
        %v1875 = vpop.xlane.xlu0 %1874
        %v1876 = vrcp.pop %v1869
        %v1877 = vrcp.pop %v1872
        %v1878 = vrcp.pop %v1875
        %v1879 = vmul.f32 %v1862, %v1876
        %v1880 = vmul.f32 %v1864, %v1877
        %v1881 = vmul.f32 %v1866, %v1878
        %1882 = vrot.lane.b32.xlu0 %v1522, 48
        %v1883 = vpop.permute.xlu0 %1882
        %1884 = vrot.lane.b32.xlu0 %v1525, 48
        %v1885 = vpop.permute.xlu0 %1884
        %1886 = vrot.lane.b32.xlu0 %v1528, 48
        %v1887 = vpop.permute.xlu0 %1886
        %v1892 = vsel %vm652, %v1879, 0
        %v1895 = vsel %vm652, %v1880, 0
        %v1898 = vsel %vm652, %v1881, 0
        %1900 = vmatpush.msra.mxu0 0.0
        %1901 = vmatpush.msra.mxu0 0.0
        %1902 = vmatpush.msra.mxu0 0.0
        %1903 = vmatpush.msra.mxu0 0.0
        %1904 = vmatpush.msra.mxu0 0.0
        %1905 = vmatpush.msra.mxu0 0.0
        %1906 = vmatpush.msra.mxu0 0.0
        %1907 = vmatpush.msra.mxu0 0.0
        %1908 = vmatpush.msra.mxu0 0.0
        %1909 = vmatpush.msra.mxu0 0.0
        %1910 = vmatpush.msra.mxu0 0.0
        %1911 = vmatpush.msra.mxu0 0.0
        %1912 = vmatpush.msra.mxu0 0.0
        %1913 = vmatpush.msra.mxu0 %v1887
        %1914 = vmatpush.msra.mxu0 %v1885
        %1915 = vmatpush.msra.mxu0 %v1883
        %1916 = vmatmul.f32.gmra.mxu0 %v1892
        %v1917 = vpop.f32.mrf.mxu0
        %v1918 = vadd.f32 0.0, %v1917
        %1919 = vmatmul.f32.gmra.mxu0 %v1895
        %v1920 = vpop.f32.mrf.mxu0
        %v1921 = vadd.f32 0.0, %v1920
        %1922 = vmatmul.f32.gmra.mxu0 %v1898
        %v1923 = vpop.f32.mrf.mxu0
        %v1924 = vadd.f32 0.0, %v1923
        %1925 = vdwg.mxu0
        %1926 = vrot.lane.b32.xlu0 %v1522, 104
        %v1927 = vpop.permute.xlu0 %1926
        %1928 = vrot.lane.b32.xlu0 %v1525, 104
        %v1929 = vpop.permute.xlu0 %1928
        %1930 = vrot.lane.b32.xlu0 %v1528, 104
        %v1931 = vpop.permute.xlu0 %1930
        %1932 = vrot.lane.b32.xlu0 %v1522, 72
        %v1933 = vpop.permute.xlu0 %1932
        %1934 = vrot.lane.b32.xlu0 %v1525, 72
        %v1935 = vpop.permute.xlu0 %1934
        %1936 = vrot.lane.b32.xlu0 %v1528, 72
        %v1937 = vpop.permute.xlu0 %1936
        %v1938 = vsel %vm605, %v1927, 0
        %v1940 = vsel %vm605, %v1929, 0
        %v1942 = vsel %vm605, %v1931, 0
        %v1944 = vsel %vm605, %v1933, 0
        %v1946 = vsel %vm605, %v1935, 0
        %v1948 = vsel %vm605, %v1937, 0
        %1950 = vmatpush.xpose.msra.mxu0 0.0
        %1951 = vmatpush.xpose.msra.mxu0 0.0
        %1952 = vmatpush.xpose.msra.mxu0 0.0
        %1953 = vmatpush.xpose.msra.mxu0 0.0
        %1954 = vmatpush.xpose.msra.mxu0 0.0
        %1955 = vmatpush.xpose.msra.mxu0 0.0
        %1956 = vmatpush.xpose.msra.mxu0 0.0
        %1957 = vmatpush.xpose.msra.mxu0 0.0
        %1958 = vmatpush.xpose.msra.mxu0 0.0
        %1959 = vmatpush.xpose.msra.mxu0 0.0
        %1960 = vmatpush.xpose.msra.mxu0 0.0
        %1961 = vmatpush.xpose.msra.mxu0 0.0
        %1962 = vmatpush.xpose.msra.mxu0 0.0
        %1963 = vmatpush.xpose.msra.mxu0 %v1948
        %1964 = vmatpush.xpose.msra.mxu0 %v1946
        %1965 = vmatpush.xpose.msra.mxu0 %v1944
        %1966 = vmatmul.f32.gmra.mxu0 %v1938
        %v1967 = vpop.f32.mrf.mxu0
        %v1968 = vadd.f32 0.0, %v1967
        %1969 = vmatmul.f32.gmra.mxu0 %v1940
        %v1970 = vpop.f32.mrf.mxu0
        %v1971 = vadd.f32 0.0, %v1970
        %1972 = vmatmul.f32.gmra.mxu0 %v1942
        %v1973 = vpop.f32.mrf.mxu0
        %v1974 = vadd.f32 0.0, %v1973
        %1975 = vdwg.mxu0
        %v1976 = vmul.f32 %v1968, 0.35355338
        %v1977 = vmul.f32 %v1971, 0.35355338
        %v1978 = vmul.f32 %v1974, 0.35355338
        %v1979 = vsel %vm648, %v1976, -1e+30
        %v1980 = vsel %vm648, %v1977, -1e+30
        %v1981 = vsel %vm648, %v1978, -1e+30
        %v1982 = vsel %vm652, %v1979, -inf
        %1983 = vmax.xlane.f32.xlu0 %v1982
        %v1984 = vpop.xlane.xlu0 %1983
        %v1985 = vsel %vm652, %v1980, -inf
        %1986 = vmax.xlane.f32.xlu0 %v1985
        %v1987 = vpop.xlane.xlu0 %1986
        %v1988 = vsel %vm652, %v1981, -inf
        %1989 = vmax.xlane.f32.xlu0 %v1988
        %v1990 = vpop.xlane.xlu0 %1989
        %v1991 = vsub.f32 %v1979, %v1984
        %v1992 = vsub.f32 %v1980, %v1987
        %v1993 = vsub.f32 %v1981, %v1990
        %v1994 = vmul.f32 %v1991, 1.442695
        %v1995 = vpow.pop %v1994
        %v1996 = vmul.f32 %v1992, 1.442695
        %v1997 = vpow.pop %v1996
        %v1998 = vmul.f32 %v1993, 1.442695
        %v1999 = vpow.pop %v1998
        %v2000 = vsel %vm652, %v1995, 0.0
        %2001 = vadd.xlane.f32.xlu0 %v2000
        %v2002 = vpop.xlane.xlu0 %2001
        %v2003 = vsel %vm652, %v1997, 0.0
        %2004 = vadd.xlane.f32.xlu0 %v2003
        %v2005 = vpop.xlane.xlu0 %2004
        %v2006 = vsel %vm652, %v1999, 0.0
        %2007 = vadd.xlane.f32.xlu0 %v2006
        %v2008 = vpop.xlane.xlu0 %2007
        %v2009 = vrcp.pop %v2002
        %v2010 = vrcp.pop %v2005
        %v2011 = vrcp.pop %v2008
        %v2012 = vmul.f32 %v1995, %v2009
        %v2013 = vmul.f32 %v1997, %v2010
        %v2014 = vmul.f32 %v1999, %v2011
        %2015 = vrot.lane.b32.xlu0 %v1522, 40
        %v2016 = vpop.permute.xlu0 %2015
        %2017 = vrot.lane.b32.xlu0 %v1525, 40
        %v2018 = vpop.permute.xlu0 %2017
        %2019 = vrot.lane.b32.xlu0 %v1528, 40
        %v2020 = vpop.permute.xlu0 %2019
        %v2025 = vsel %vm652, %v2012, 0
        %v2028 = vsel %vm652, %v2013, 0
        %v2031 = vsel %vm652, %v2014, 0
        %2033 = vmatpush.msra.mxu0 0.0
        %2034 = vmatpush.msra.mxu0 0.0
        %2035 = vmatpush.msra.mxu0 0.0
        %2036 = vmatpush.msra.mxu0 0.0
        %2037 = vmatpush.msra.mxu0 0.0
        %2038 = vmatpush.msra.mxu0 0.0
        %2039 = vmatpush.msra.mxu0 0.0
        %2040 = vmatpush.msra.mxu0 0.0
        %2041 = vmatpush.msra.mxu0 0.0
        %2042 = vmatpush.msra.mxu0 0.0
        %2043 = vmatpush.msra.mxu0 0.0
        %2044 = vmatpush.msra.mxu0 0.0
        %2045 = vmatpush.msra.mxu0 0.0
        %2046 = vmatpush.msra.mxu0 %v2020
        %2047 = vmatpush.msra.mxu0 %v2018
        %2048 = vmatpush.msra.mxu0 %v2016
        %2049 = vmatmul.f32.gmra.mxu0 %v2025
        %v2050 = vpop.f32.mrf.mxu0
        %v2051 = vadd.f32 0.0, %v2050
        %2052 = vmatmul.f32.gmra.mxu0 %v2028
        %v2053 = vpop.f32.mrf.mxu0
        %v2054 = vadd.f32 0.0, %v2053
        %2055 = vmatmul.f32.gmra.mxu0 %v2031
        %v2056 = vpop.f32.mrf.mxu0
        %v2057 = vadd.f32 0.0, %v2056
        %2058 = vdwg.mxu0
        %2062 = vrot.lane.b32.xlu0 %v1785, 8
        %v2063 = vpop.permute.xlu0 %2062
        %2064 = vrot.lane.b32.xlu0 %v1788, 8
        %v2065 = vpop.permute.xlu0 %2064
        %2066 = vrot.lane.b32.xlu0 %v1791, 8
        %v2067 = vpop.permute.xlu0 %2066
        %2074 = vrot.lane.b32.xlu0 %v1918, 16
        %v2075 = vpop.permute.xlu0 %2074
        %2076 = vrot.lane.b32.xlu0 %v1921, 16
        %v2077 = vpop.permute.xlu0 %2076
        %2078 = vrot.lane.b32.xlu0 %v1924, 16
        %v2079 = vpop.permute.xlu0 %2078
        %2086 = vrot.lane.b32.xlu0 %v2051, 24
        %v2087 = vpop.permute.xlu0 %2086
        %2088 = vrot.lane.b32.xlu0 %v2054, 24
        %v2089 = vpop.permute.xlu0 %2088
        %2090 = vrot.lane.b32.xlu0 %v2057, 24
        %v2091 = vpop.permute.xlu0 %2090
        %v2095 = vsel %vm605, %v1652, %v2063
        %v2096 = vsel %vm605, %v1655, %v2065
        %v2097 = vsel %vm605, %v1658, %v2067
        %v2098 = vsel %vm1168, %v2095, %v2075
        %v2099 = vsel %vm1168, %v2096, %v2077
        %v2100 = vsel %vm1168, %v2097, %v2079
        %v2101 = vsel %vm652, %v2098, %v2087
        %v2102 = vsel %vm652, %v2099, %v2089
        %v2103 = vsel %vm652, %v2100, %v2091
        %s2104 = scalar_lea.vmem %s3, 32
        %v2105 = vld [vmem:[%s2104] sm:$0xff]
        %v2106 = vld [vmem:[%s2104 + $0x8] sm:$0xff]
        %v2107 = vld [vmem:[%s2104 + $0x10] sm:$0xff]
        %v2108 = vld [vmem:[%s2104 + $0x18] sm:$0xff]
        %s2109 = scalar_lea.vmem %s4, 1
        %v2110 = vld [vmem:[%s2109] sm:$0x1]
        %v2112 = vperm.slane %v2110, 0
        %v2115 = vsel %vm560, %v2101, 0
        %v2118 = vsel %vm560, %v2102, 0
        %v2121 = vsel %vm560, %v2103, 0
        %2123 = vmatpush.msra.mxu0 0.0
        %2124 = vmatpush.msra.mxu0 0.0
        %2125 = vmatpush.msra.mxu0 0.0
        %2126 = vmatpush.msra.mxu0 0.0
        %2127 = vmatpush.msra.mxu0 0.0
        %2128 = vmatpush.msra.mxu0 0.0
        %2129 = vmatpush.msra.mxu0 0.0
        %2130 = vmatpush.msra.mxu0 0.0
        %2131 = vmatpush.msra.mxu0 0.0
        %2132 = vmatpush.msra.mxu0 0.0
        %2133 = vmatpush.msra.mxu0 0.0
        %2134 = vmatpush.msra.mxu0 0.0
        %2135 = vmatpush.msra.mxu0 %v2108
        %2136 = vmatpush.msra.mxu0 %v2107
        %2137 = vmatpush.msra.mxu0 %v2106
        %2138 = vmatpush.msra.mxu0 %v2105
        %2139 = vmatmul.f32.gmra.mxu0 %v2115
        %v2140 = vpop.f32.mrf.mxu0
        %v2141 = vadd.f32 %v2112, %v2140
        %2142 = vmatmul.f32.gmra.mxu0 %v2118
        %v2143 = vpop.f32.mrf.mxu0
        %v2144 = vadd.f32 %v2112, %v2143
        %2145 = vmatmul.f32.gmra.mxu0 %v2121
        %v2146 = vpop.f32.mrf.mxu0
        %v2147 = vadd.f32 %v2112, %v2146
        %2148 = vdwg.mxu0
        %v2149 = vadd.f32 %v1482, %v2141
        %v2150 = vadd.f32 %v1483, %v2144
        %v2151 = vadd.f32 %v1484, %v2147
        %s2152 = scalar_lea.vmem %s5, 1
        %v2153 = vld [vmem:[%s2152] sm:$0x1]
        %s2154 = scalar_lea.vmem %s6, 1
        %v2155 = vld [vmem:[%s2154] sm:$0x1]
        %v2156 = vsel %vm560, %v2149, 0.0
        %2157 = vadd.xlane.f32.xlu0 %v2156
        %v2158 = vpop.xlane.xlu0 %2157
        %v2159 = vsel %vm560, %v2150, 0.0
        %2160 = vadd.xlane.f32.xlu0 %v2159
        %v2161 = vpop.xlane.xlu0 %2160
        %v2162 = vsel %vm560, %v2151, 0.0
        %2163 = vadd.xlane.f32.xlu0 %v2162
        %v2164 = vpop.xlane.xlu0 %2163
        %v2165 = vmul.f32 %v2158, %v1238
        %v2166 = vmul.f32 %v2161, %v1238
        %v2167 = vmul.f32 %v2164, %v1238
        %v2168 = vsub.f32 %v2149, %v2165
        %v2169 = vsub.f32 %v2150, %v2166
        %v2170 = vsub.f32 %v2151, %v2167
        %v2171 = vmul.f32 %v2168, %v2168
        %v2172 = vmul.f32 %v2169, %v2169
        %v2173 = vmul.f32 %v2170, %v2170
        %v2174 = vsel %vm560, %v2171, 0.0
        %2175 = vadd.xlane.f32.xlu0 %v2174
        %v2176 = vpop.xlane.xlu0 %2175
        %v2177 = vsel %vm560, %v2172, 0.0
        %2178 = vadd.xlane.f32.xlu0 %v2177
        %v2179 = vpop.xlane.xlu0 %2178
        %v2180 = vsel %vm560, %v2173, 0.0
        %2181 = vadd.xlane.f32.xlu0 %v2180
        %v2182 = vpop.xlane.xlu0 %2181
        %v2183 = vmul.f32 %v2176, %v1238
        %v2184 = vmul.f32 %v2179, %v1238
        %v2185 = vmul.f32 %v2182, %v1238
        %v2186 = vadd.f32 %v2183, 1e-05
        %v2187 = vadd.f32 %v2184, 1e-05
        %v2188 = vadd.f32 %v2185, 1e-05
        %v2189 = vrsqrt.pop %v2186
        %v2190 = vmul.f32 %v2189, %v2186
        %v2191 = vmul.f32 %v2190, %v2189
        %v2192 = vmul.f32 0.5, %v2191
        %v2193 = vsub.f32 1.5, %v2192
        %v2194 = vmul.f32 %v2189, %v2193
        %vm2195 = vweird.f32 %v2186
        %vm2196 = vweird.f32 %v2189
        %vm2197 = vmor %vm2195, %vm2196
        %v2198 = vsel %vm2197, %v2189, %v2194
        %v2199 = vrsqrt.pop %v2187
        %v2200 = vmul.f32 %v2199, %v2187
        %v2201 = vmul.f32 %v2200, %v2199
        %v2202 = vmul.f32 0.5, %v2201
        %v2203 = vsub.f32 1.5, %v2202
        %v2204 = vmul.f32 %v2199, %v2203
        %vm2205 = vweird.f32 %v2187
        %vm2206 = vweird.f32 %v2199
        %vm2207 = vmor %vm2205, %vm2206
        %v2208 = vsel %vm2207, %v2199, %v2204
        %v2209 = vrsqrt.pop %v2188
        %v2210 = vmul.f32 %v2209, %v2188
        %v2211 = vmul.f32 %v2210, %v2209
        %v2212 = vmul.f32 0.5, %v2211
        %v2213 = vsub.f32 1.5, %v2212
        %v2214 = vmul.f32 %v2209, %v2213
        %vm2215 = vweird.f32 %v2188
        %vm2216 = vweird.f32 %v2209
        %vm2217 = vmor %vm2215, %vm2216
        %v2218 = vsel %vm2217, %v2209, %v2214
        %v2219 = vmul.f32 %v2168, %v2198
        %v2220 = vmul.f32 %v2169, %v2208
        %v2221 = vmul.f32 %v2170, %v2218
        %v2223 = vperm.slane %v2153, 0
        %v2225 = vmul.f32 %v2219, %v2223
        %v2226 = vmul.f32 %v2220, %v2223
        %v2227 = vmul.f32 %v2221, %v2223
        %v2229 = vperm.slane %v2155, 0
        %v2231 = vadd.f32 %v2225, %v2229
        %v2232 = vadd.f32 %v2226, %v2229
        %v2233 = vadd.f32 %v2227, %v2229
        %s2234 = scalar_lea.vmem %s7, 32
        %v2235 = vld [vmem:[%s2234] sm:$0xff]
        %v2236 = vld [vmem:[%s2234 + $0x8] sm:$0xff]
        %v2237 = vld [vmem:[%s2234 + $0x10] sm:$0xff]
        %v2238 = vld [vmem:[%s2234 + $0x18] sm:$0xff]
        %s2239 = scalar_lea.vmem %s8, 1
        %v2240 = vld [vmem:[%s2239] sm:$0x1]
        %v2242 = vperm.slane %v2240, 0
        %v2245 = vsel %vm560, %v2231, 0
        %v2248 = vsel %vm560, %v2232, 0
        %v2251 = vsel %vm560, %v2233, 0
        %2253 = vmatpush.msra.mxu0 0.0
        %2254 = vmatpush.msra.mxu0 0.0
        %2255 = vmatpush.msra.mxu0 0.0
        %2256 = vmatpush.msra.mxu0 0.0
        %2257 = vmatpush.msra.mxu0 0.0
        %2258 = vmatpush.msra.mxu0 0.0
        %2259 = vmatpush.msra.mxu0 0.0
        %2260 = vmatpush.msra.mxu0 0.0
        %2261 = vmatpush.msra.mxu0 0.0
        %2262 = vmatpush.msra.mxu0 0.0
        %2263 = vmatpush.msra.mxu0 0.0
        %2264 = vmatpush.msra.mxu0 0.0
        %2265 = vmatpush.msra.mxu0 %v2238
        %2266 = vmatpush.msra.mxu0 %v2237
        %2267 = vmatpush.msra.mxu0 %v2236
        %2268 = vmatpush.msra.mxu0 %v2235
        %2269 = vmatmul.f32.gmra.mxu0 %v2245
        %v2270 = vpop.f32.mrf.mxu0
        %v2271 = vadd.f32 %v2242, %v2270
        %2272 = vmatmul.f32.gmra.mxu0 %v2248
        %v2273 = vpop.f32.mrf.mxu0
        %v2274 = vadd.f32 %v2242, %v2273
        %2275 = vmatmul.f32.gmra.mxu0 %v2251
        %v2276 = vpop.f32.mrf.mxu0
        %v2277 = vadd.f32 %v2242, %v2276
        %2278 = vdwg.mxu0
        %v2279 = vmax.f32 %v2271, 0.0
        %v2280 = vmax.f32 %v2274, 0.0
        %v2281 = vmax.f32 %v2277, 0.0
        %s2282 = scalar_lea.vmem %s9, 64
        %v2283 = vld [vmem:[%s2282] sm:$0xff]
        %v2284 = vld [vmem:[%s2282 + $0x8] sm:$0xff]
        %v2285 = vld [vmem:[%s2282 + $0x10] sm:$0xff]
        %v2286 = vld [vmem:[%s2282 + $0x18] sm:$0xff]
        %v2287 = vld [vmem:[%s2282 + $0x20] sm:$0xff]
        %v2288 = vld [vmem:[%s2282 + $0x28] sm:$0xff]
        %v2289 = vld [vmem:[%s2282 + $0x30] sm:$0xff]
        %v2290 = vld [vmem:[%s2282 + $0x38] sm:$0xff]
        %s2291 = scalar_lea.vmem %s10, 1
        %v2292 = vld [vmem:[%s2291] sm:$0x1]
        %v2294 = vperm.slane %v2292, 0
        %v2297 = vsel %vm1366, %v2279, 0
        %v2300 = vsel %vm1366, %v2280, 0
        %v2303 = vsel %vm1366, %v2281, 0
        %2305 = vmatpush.msra.mxu0 0.0
        %2306 = vmatpush.msra.mxu0 0.0
        %2307 = vmatpush.msra.mxu0 0.0
        %2308 = vmatpush.msra.mxu0 0.0
        %2309 = vmatpush.msra.mxu0 0.0
        %2310 = vmatpush.msra.mxu0 0.0
        %2311 = vmatpush.msra.mxu0 0.0
        %2312 = vmatpush.msra.mxu0 0.0
        %2313 = vmatpush.msra.mxu0 %v2290
        %2314 = vmatpush.msra.mxu0 %v2289
        %2315 = vmatpush.msra.mxu0 %v2288
        %2316 = vmatpush.msra.mxu0 %v2287
        %2317 = vmatpush.msra.mxu0 %v2286
        %2318 = vmatpush.msra.mxu0 %v2285
        %2319 = vmatpush.msra.mxu0 %v2284
        %2320 = vmatpush.msra.mxu0 %v2283
        %2321 = vmatmul.f32.gmra.mxu0 %v2297
        %v2322 = vpop.f32.mrf.mxu0
        %v2323 = vadd.f32 %v2294, %v2322
        %2324 = vmatmul.f32.gmra.mxu0 %v2300
        %v2325 = vpop.f32.mrf.mxu0
        %2326 = vmatmul.f32.gmra.mxu0 %v2303
        %v2327 = vpop.f32.mrf.mxu0
        %2328 = vdwg.mxu0
        %v2329 = vadd.f32 %v2231, %v2323
        %s2330 = scalar_lea.vmem %s11, 1
        %v2331 = vld [vmem:[%s2330] sm:$0x1]
        %s2332 = scalar_lea.vmem %s12, 1
        %v2333 = vld [vmem:[%s2332] sm:$0x1]
        %v2334 = vsel %vm560, %v2329, 0.0
        %2335 = vadd.xlane.f32.xlu0 %v2334
        %v2336 = vpop.xlane.xlu0 %2335
        %v2337 = vmul.f32 %v2336, %v1238
        %v2338 = vsub.f32 %v2329, %v2337
        %v2339 = vmul.f32 %v2338, %v2338
        %v2340 = vsel %vm560, %v2339, 0.0
        %2341 = vadd.xlane.f32.xlu0 %v2340
        %v2342 = vpop.xlane.xlu0 %2341
        %v2343 = vmul.f32 %v2342, %v1238
        %v2344 = vadd.f32 %v2343, 1e-05
        %v2345 = vrsqrt.pop %v2344
        %v2346 = vmul.f32 %v2345, %v2344
        %v2347 = vmul.f32 %v2346, %v2345
        %v2348 = vmul.f32 0.5, %v2347
        %v2349 = vsub.f32 1.5, %v2348
        %v2350 = vmul.f32 %v2345, %v2349
        %vm2351 = vweird.f32 %v2344
        %vm2352 = vweird.f32 %v2345
        %vm2353 = vmor %vm2351, %vm2352
        %v2354 = vsel %vm2353, %v2345, %v2350
        %v2355 = vmul.f32 %v2338, %v2354
        %v2357 = vperm.slane %v2331, 0
        %v2359 = vmul.f32 %v2355, %v2357
        %v2361 = vperm.slane %v2333, 0
        %v2363 = vadd.f32 %v2359, %v2361
        %v2364 = vld [vmem:[%s13] sm:$0xff]
        %v2365 = vld [vmem:[%s13 + $0x8] sm:$0xff]
        %v2366 = vld [vmem:[%s13 + $0x10] sm:$0xff]
        %v2367 = vld [vmem:[%s13 + $0x18] sm:$0xff]
        %v2368 = vld [vmem:[%s14] sm:$0x1]
        %v2370 = vsel %vm560, %v2363, 0
        %2372 = vmatpush.msra.mxu0 0.0
        %2373 = vmatpush.msra.mxu0 0.0
        %2374 = vmatpush.msra.mxu0 0.0
        %2375 = vmatpush.msra.mxu0 0.0
        %2376 = vmatpush.msra.mxu0 0.0
        %2377 = vmatpush.msra.mxu0 0.0
        %2378 = vmatpush.msra.mxu0 0.0
        %2379 = vmatpush.msra.mxu0 0.0
        %2380 = vmatpush.msra.mxu0 0.0
        %2381 = vmatpush.msra.mxu0 0.0
        %2382 = vmatpush.msra.mxu0 0.0
        %2383 = vmatpush.msra.mxu0 0.0
        %2384 = vmatpush.msra.mxu0 %v2367
        %2385 = vmatpush.msra.mxu0 %v2366
        %2386 = vmatpush.msra.mxu0 %v2365
        %2387 = vmatpush.msra.mxu0 %v2364
        %2388 = vmatmul.f32.gmra.mxu0 %v2370
        %v2389 = vpop.f32.mrf.mxu0
        %v2390 = vadd.f32 %v2368, %v2389
        %2391 = vdwg.mxu0
        %vm2392 = vcmask 24576
        %v2393 = vsel %vm2392, %v2390, -inf
        %2394 = vmax.xlane.f32.xlu0 %v2393
        %v2395 = vpop.xlane.xlu0 %2394
        %v2396 = vsub.f32 %v2390, %v2395
        %v2397 = vmul.f32 %v2396, 1.442695
        %v2398 = vpow.pop %v2397
        %v2399 = vsel %vm2392, %v2398, 0.0
        %2400 = vadd.xlane.f32.xlu0 %v2399
        %v2401 = vpop.xlane.xlu0 %2400
        %v2402 = vrcp.pop %v2401
        %v2403 = vmul.f32 %v2398, %v2402
        %v2404 = vld [vmem:[%s15] sm:$0xff]
        %v2405 = vld [vmem:[%s15 + $0x8] sm:$0xff]
        %v2406 = vld [vmem:[%s15 + $0x10] sm:$0xff]
        %v2407 = vld [vmem:[%s15 + $0x18] sm:$0xff]
        %v2408 = vld [vmem:[%s16] sm:$0x1]
        %2409 = vmatpush.msra.mxu0 0.0
        %2410 = vmatpush.msra.mxu0 0.0
        %2411 = vmatpush.msra.mxu0 0.0
        %2412 = vmatpush.msra.mxu0 0.0
        %2413 = vmatpush.msra.mxu0 0.0
        %2414 = vmatpush.msra.mxu0 0.0
        %2415 = vmatpush.msra.mxu0 0.0
        %2416 = vmatpush.msra.mxu0 0.0
        %2417 = vmatpush.msra.mxu0 0.0
        %2418 = vmatpush.msra.mxu0 0.0
        %2419 = vmatpush.msra.mxu0 0.0
        %2420 = vmatpush.msra.mxu0 0.0
        %2421 = vmatpush.msra.mxu0 %v2407
        %2422 = vmatpush.msra.mxu0 %v2406
        %2423 = vmatpush.msra.mxu0 %v2405
        %2424 = vmatpush.msra.mxu0 %v2404
        %2425 = vmatmul.f32.gmra.mxu0 %v2370
        %v2426 = vpop.f32.mrf.mxu0
        %v2427 = vadd.f32 %v2408, %v2426
        %2428 = vdwg.mxu0
        %2430 = vset.pattern.permute.xlu0 0
        %2431 = vperm.xlu0 %2430, %v2403
        %v2432 = vpop.permute.xlu0 %2431
        %v2434 = vmul.f32 %v2432, %v2427
        %2435 = vset.pattern.permute.xlu0 1
        %2436 = vperm.xlu0 %2435, %v2403
        %v2437 = vpop.permute.xlu0 %2436
        %v2439 = vmul.f32 %v2437, %v2427
        %2441 = vrot.lane.b32.xlu0 %v2439, 96
        %v2442 = vpop.permute.xlu0 %2441
        %v2444 = vadd.f32 %v2434, %v2442
        %2445 = vset.pattern.permute.xlu0 2
        %2446 = vperm.xlu0 %2445, %v2403
        %v2447 = vpop.permute.xlu0 %2446
        %v2449 = vmul.f32 %v2447, %v2427
        %2451 = vrot.lane.b32.xlu0 %v2449, 64
        %v2452 = vpop.permute.xlu0 %2451
        %v2454 = vadd.f32 %v2444, %v2452
        %2455 = vset.pattern.permute.xlu0 3
        %2456 = vperm.xlu0 %2455, %v2403
        %v2457 = vpop.permute.xlu0 %2456
        %v2459 = vmul.f32 %v2457, %v2427
        %2461 = vrot.lane.b32.xlu0 %v2459, 32
        %v2462 = vpop.permute.xlu0 %2461
        %v2464 = vadd.f32 %v2454, %v2462
        %vm2465 = vcmask 253952
        %2466 = vst.msk [vmem:[%s540] sm:$0x1] %vm2465, %v2464
        %s2467 = sand.u32 %s401, 1
        %s2468 = scalar_lea.sflag [#allocation3], %s2467
        %s2469 = sand.u32 %s401, 1
        %s2470 = scalar_lea.vmem [#allocation2], %s2469
        // Predicated region
        $region89: #{forward.9} parent=87 // pred_check
          %p2471 = pneg %p411
        $region90: #{forward.9} parent=87 // pred_check_branch
          %2473 = sbr.rel (%p2471) target = $region92
        $region91: #{forward.9} parent=87 // pred_region
          %2475 = vsyncadd %s2468, 0
          %s2476 = scalar_lea.hbm %s17, %s31
          %s2478 = sshll.u32 %s2470, 4
          %s2479 = int_to_ptr.vmem [resolvable:$true] %s2478
          %s2480 = sshll.u32 %s2476, 4
          %s2481 = int_to_ptr.hbm [resolvable:$true] %s2480
          %2483 = dma.vmem_to_hbm [thread:$0]  %s2479, 16, %s2481, %s2468
        $region92: #{forward.9} parent=87 // pred_fallthru
          _
      $region88: #{forward.9} parent=5 // pred_fallthru
        _
      %p2484 = scmp.le.s32.totalorder 2, %s26
      // Predicated region
      $region93: #{forward.9} parent=5 // pred_check
        %p2485 = pneg %p2484
      $region94: #{forward.9} parent=5 // pred_check_branch
        %2487 = sbr.rel (%p2485) target = $region96
      $region95: #{forward.9} parent=5 // pred_region
        %s2488 = ssub.s32 %s26, 2
        // Predicated region
        $region97: #{forward.9} parent=95 // pred_check
          %p2489 = pneg %p417
        $region98: #{forward.9} parent=95 // pred_check_branch
          %2491 = sbr.rel (%p2489) target = $region100
        $region99: #{forward.9} parent=95 // pred_region
          %s2492 = sand.u32 %s402, 1
          %s2493 = scalar_lea.sflag [#allocation3], %s2492
          %s2494 = sand.u32 %s402, 1
          %s2495 = scalar_lea.vmem [#allocation2], %s2494
          %2497 = dma.done %s2493, 16
        $region100: #{forward.9} parent=95 // pred_fallthru
          _
      $region96: #{forward.9} parent=5 // pred_fallthru
        _
    $region6: #{forward.9} parent=1 // loop_footer
      %s30 = sadd.s32 1, %s26
    $region7: #{forward.9} parent=1 // loop_footer_branch
      %25 = sbr.rel target = $region3
    $region8: #{forward.9} parent=1 // loop_exit
      _
    %2498 = vsyncpa [#allocation3], 1
    %s2499 = scalar_lea.sflag [#allocation3], 1
    %2500 = vsyncpa %s2499, 1

</llo_original>
